<compile_context>
chip_gen: v7x
topology: tpu7x:2x2x1
jax: 0.10.0
libtpu: 0.0.40
codegen_flags: <defaults>
</compile_context>

<pallas_src>
import functools

import jax
import jax.numpy as jnp
from jax import lax
from jax.experimental import pallas as pl
from jax.experimental.pallas import tpu as pltpu

MASK_BIG = 1e9            # additive penalty injected via the matmul for masked chars
NEG_THRESH = -1e8         # anything below this => char position was masked
POOL_INIT = -3e9          # init for the running max (below any masked value)


def _round_up(x, m):
    return ((x + m - 1) // m) * m


def _default_kernel_params():
    """Per-generation tile / scoped-VMEM defaults.
       v5e/v6e (128 MiB physical VMEM): tile_m=1024, ~80 MiB scoped limit.
       v7x / unknown (64 MiB VMEM):     tile_m=1024, ~48 MiB scoped limit."""
    kind = ""
    try:
        kind = jax.devices()[0].device_kind.lower()
    except Exception:
        pass
    if "v5" in kind or "v6" in kind:
        return 1024, 80 * 1024 * 1024
    return 1024, 48 * 1024 * 1024


def _encoder_kernel(xaug_ref, lexf_ref, bert_ref, wblk_ref, bias_ref,
                    rlex_ref, rpin_ref, slex_ref, spin_ref, out_ref, *, gw):
    # xaug_ref : (P, TM, GW*(C+1))     bf16  conv input (char-pos leading, NO pad slabs)
    # lexf_ref : (TM, GW + GW*Wd)      f32   freq lanes packed in front of lex lanes
    # bert_ref : (TM, Hb)              f32
    # wblk_ref : (3, GW*(C+1), GW*C2)  bf16  block-diag tap weights (+ mask-indicator row)
    # bias_ref : (1, GW*C2)            f32   conv bias tiled per slot
    # rlex_ref : (fk, GW + GW*Wd)      f32   0/1: broadcast freq[s] onto slot s's lex lanes
    # rpin_ref : (fk, GW*C2)           f32   0/1: broadcast freq[s] onto slot s's pin lanes
    # slex_ref : (GW + GW*Wd, Dtail)   f32   0/1: sum over W slots + place lex part
    # spin_ref : (GW*C2, Dtail)        f32   0/1: sum over W slots + place pin part
    # out_ref  : (TM, Hb + Dtail)      f32
    P = xaug_ref.shape[0]
    TM = out_ref.shape[0]
    GWC2 = rpin_ref.shape[1]
    fk = rlex_ref.shape[0]

    w0 = wblk_ref[0]          # left tap   (applies to char position p-1)
    w1 = wblk_ref[1]          # center tap (also maps mask indicator -> -MASK_BIG)
    w2 = wblk_ref[2]          # right tap  (applies to char position p+1)

    # Conv1d(k=3, pad=1) as block-diagonal MXU matmuls + masked max-pool over the
    # char axis.  Edges are peeled statically (no all-zero padding slabs DMA'd).
    pooled = jnp.full((TM, GWC2), POOL_INIT, dtype=jnp.float32)
    for p in range(P):
        y_p = jnp.dot(xaug_ref[p], w1, preferred_element_type=jnp.float32)
        if p > 0:
            y_p = y_p + jnp.dot(xaug_ref[p - 1], w0, preferred_element_type=jnp.float32)
        if p + 1 < P:
            y_p = y_p + jnp.dot(xaug_ref[p + 1], w2, preferred_element_type=jnp.float32)
        pooled = jnp.maximum(pooled, y_p)
    # fully-masked slots -> 0 (no bias); otherwise add the (hoisted) conv bias.
    pooled = jnp.where(pooled > NEG_THRESH, pooled + bias_ref[...], 0.0)

    # Frequency-weighted mean over the matched-lexicon slots, fully lane-dense:
    #   frep_* = freq @ R   (0/1 selection matmuls; lane-broadcast each slot's freq)
    #   tail   = (lexf * frep_lex) @ S_lex + (pooled * frep_pin) @ S_pin
    # The S matmuls sum over the W slots of each group AND permute into the final
    # [lex_g | pin_g] output order.  They run at HIGHEST precision so the weighted
    # sums stay f32-exact (tiny matmuls; the kernel is HBM-bound -> MXU slack).
    lexf = lexf_ref[...]                                   # (TM, GW + GW*Wd)
    fsum = jnp.sum(lexf[:, :gw], axis=1, keepdims=True)    # (TM, 1)
    inv = 1.0 / jnp.where(fsum == 0.0, 1.0, fsum)          # exact reciprocal

    freqk = lexf[:, :fk]                                   # 8-aligned K slab; R rows >= GW are 0
    frep_lex = jnp.dot(freqk, rlex_ref[...], preferred_element_type=jnp.float32)
    frep_pin = jnp.dot(freqk, rpin_ref[...], preferred_element_type=jnp.float32)
    tail = (jnp.dot(lexf * frep_lex, slex_ref[...],
                    preferred_element_type=jnp.float32,
                    precision=lax.Precision.HIGHEST)
            + jnp.dot(pooled * frep_pin, spin_ref[...],
                      preferred_element_type=jnp.float32,
                      precision=lax.Precision.HIGHEST))

    # single lane-dense full-width store.
    out_ref[...] = jnp.concatenate([bert_ref[...], tail * inv], axis=1)


def bmes_lexicon_pinyin_freq_encode(bert_embed, lex_embed, pin_char_embed,
                                    pin_char_mask, lexicons_freq,
                                    conv_weight, conv_bias, *,
                                    tile_m=None, vmem_limit_bytes=None):
    B, L, G, W, P, C = pin_char_embed.shape
    C2 = conv_weight.shape[0]
    Wd = lex_embed.shape[-1]
    Hb = bert_embed.shape[-1]
    M = B * L
    GW = G * W
    C1 = C + 1
    Caug = GW * C1
    GWC2 = GW * C2
    Dlex = GW * Wd
    Dlexf = GW + Dlex                 # freq lanes packed in front of lex lanes
    Dtail = G * (Wd + C2)
    Hout = Hb + Dtail

    dflt_tm, dflt_vmem = _default_kernel_params()
    if tile_m is None:
        tile_m = dflt_tm
    if vmem_limit_bytes is None:
        vmem_limit_bytes = dflt_vmem

    # row tiling: multiple of 8 sublanes, clamped for tiny inputs.
    tile_m = max(8, min(_round_up(tile_m, 8), _round_up(M, 8)))
    M_pad = _round_up(M, tile_m)

    # ---- glue: layout plumbing (pure XLA) ----
    # conv input augmented with a "masked" indicator channel.  No char-axis padding
    # slabs; the conv edges are peeled inside the kernel.
    pin = pin_char_embed.astype(jnp.float32).reshape(M, GW, P, C)
    ind = 1.0 - pin_char_mask.astype(jnp.float32).reshape(M, GW, P)
    xa = jnp.concatenate([pin, ind[..., None]], axis=-1)            # (M, GW, P, C+1)
    xa = jnp.pad(xa, ((0, M_pad - M), (0, 0), (0, 0), (0, 0)))      # row pad only
    xa = jnp.transpose(xa, (2, 0, 1, 3)).reshape(P, M_pad, Caug)
    xa = xa.astype(jnp.bfloat16)      # bf16 conv path (f32 accumulation)

    # freq lanes packed as the first GW lanes of the lex slab (one fewer DMA stream).
    freq2d = lexicons_freq.astype(jnp.float32).reshape(M, GW)
    lex2d = lex_embed.astype(jnp.float32).reshape(M, Dlex)
    lexf2d = jnp.pad(jnp.concatenate([freq2d, lex2d], axis=1),
                     ((0, M_pad - M), (0, 0)))
    bert2d = jnp.pad(bert_embed.astype(jnp.float32).reshape(M, Hb),
                     ((0, M_pad - M), (0, 0)))

    # block-diagonal tap weights; center tap maps the indicator channel to -MASK_BIG.
    w_taps = jnp.transpose(conv_weight.astype(jnp.float32), (2, 1, 0))   # (3, C, C2)
    extra = jnp.zeros((3, 1, C2), jnp.float32).at[1].set(-MASK_BIG)
    w_aug = jnp.concatenate([w_taps, extra], axis=1)                      # (3, C1, C2)
    eye = jnp.eye(GW, dtype=jnp.float32)
    wblk = (eye[None, :, None, :, None] * w_aug[:, None, :, None, :])     # (3,GW,C1,GW,C2)
    wblk = wblk.reshape(3, Caug, GWC2).astype(jnp.bfloat16)
    bias_row = jnp.tile(conv_bias.astype(jnp.float32), GW).reshape(1, GWC2)

    # constant 0/1 selection matrices for the freq-weighted mean.
    # NOTE: the freq-broadcast matmuls are exact as long as freq values are exactly
    # representable after the MXU's operand handling (true for the frequencies here).
    fk = min(_round_up(GW, 8), Dlexf)          # 8-aligned K for the broadcast matmuls
    slot_ids = jnp.arange(GW, dtype=jnp.int32)
    row_ids = jnp.arange(fk, dtype=jnp.int32)
    no_slot = jnp.full((GW,), -1, jnp.int32)   # the packed freq lanes themselves
    # R_lex (fk, Dlexf): broadcast freq[s] onto slot s's lex lanes (freq lanes -> 0).
    lex_lane_slot = jnp.concatenate([no_slot, jnp.repeat(slot_ids, Wd)])
    r_lex = (row_ids[:, None] == lex_lane_slot[None, :]).astype(jnp.float32)
    # R_pin (fk, GWC2): broadcast freq[s] onto slot s's pooled-pinyin lanes.
    pin_lane_slot = jnp.repeat(slot_ids, C2)
    r_pin = (row_ids[:, None] == pin_lane_slot[None, :]).astype(jnp.float32)
    # S_lex (Dlexf, Dtail): lex lane (slot s, dim j) -> out col (s//W)*(Wd+C2) + j.
    out_cols = jnp.arange(Dtail, dtype=jnp.int32)
    lex_lane_col = jnp.concatenate(
        [no_slot,
         (jnp.repeat(slot_ids, Wd) // W) * (Wd + C2)
         + jnp.tile(jnp.arange(Wd, dtype=jnp.int32), GW)])
    s_lex = (lex_lane_col[:, None] == out_cols[None, :]).astype(jnp.float32)
    # S_pin (GWC2, Dtail): pin lane (slot s, dim j) -> out col (s//W)*(Wd+C2) + Wd + j.
    pin_lane_col = ((jnp.repeat(slot_ids, C2) // W) * (Wd + C2) + Wd
                    + jnp.tile(jnp.arange(C2, dtype=jnp.int32), GW))
    s_pin = (pin_lane_col[:, None] == out_cols[None, :]).astype(jnp.float32)

    kernel = functools.partial(_encoder_kernel, gw=GW)
    out2d = pl.pallas_call(
        kernel,
        out_shape=jax.ShapeDtypeStruct((M_pad, Hout), jnp.float32),
        grid_spec=pltpu.PrefetchScalarGridSpec(
            num_scalar_prefetch=0,
            grid=(M_pad // tile_m,),
            in_specs=[
                pl.BlockSpec((P, tile_m, Caug), lambda i: (0, i, 0)),
                pl.BlockSpec((tile_m, Dlexf), lambda i: (i, 0)),
                pl.BlockSpec((tile_m, Hb), lambda i: (i, 0)),
                pl.BlockSpec((3, Caug, GWC2), lambda i: (0, 0, 0)),
                pl.BlockSpec((1, GWC2), lambda i: (0, 0)),
                pl.BlockSpec((fk, Dlexf), lambda i: (0, 0)),
                pl.BlockSpec((fk, GWC2), lambda i: (0, 0)),
                pl.BlockSpec((Dlexf, Dtail), lambda i: (0, 0)),
                pl.BlockSpec((GWC2, Dtail), lambda i: (0, 0)),
            ],
            out_specs=pl.BlockSpec((tile_m, Hout), lambda i: (i, 0)),
        ),
        compiler_params=pltpu.CompilerParams(
            dimension_semantics=("parallel",),
            vmem_limit_bytes=vmem_limit_bytes),
    )(xa, lexf2d, bert2d, wblk, bias_row, r_lex, r_pin, s_lex, s_pin)
    return out2d[:M].reshape(B, L, Hout)


def forward(params, seqs_token_ids, seqs_lexicon_embed, seqs_pinyin_char_ids,
            att_pinyin_char_mask, lexicons_freq, att_token_mask):
    # TODO(synk): the pretrained multi-layer HuggingFace BertModel is not replicated;
    # a deterministic token+position embedding with LayerNorm stands in for
    # bert_seqs_embed (same (B, L, H_bert) contract).
    h = params["tok_table"][seqs_token_ids] + params["pos_table"][None, :, :]
    bert_embed = (h - h.mean(-1, keepdims=True)) / jnp.sqrt(h.var(-1, keepdims=True) + 1e-12)
    pin_embed = params["pinyin_emb"][seqs_pinyin_char_ids]     # nn.Embedding lookup (glue)
    return bmes_lexicon_pinyin_freq_encode(
        bert_embed, seqs_lexicon_embed, pin_embed, att_pinyin_char_mask,
        lexicons_freq, params["conv_w"], params["conv_b"])


def reference_forward(bert_embed, lex_embed, pin_embed, pin_mask, freq, conv_w, conv_b):
    """Pure-JAX mirror of the PyTorch forward (used as a correctness check)."""
    B, L, G, W, P, C = pin_embed.shape
    C2 = conv_w.shape[0]
    x = pin_embed.astype(jnp.float32).reshape(-1, P, C).transpose(0, 2, 1)   # (N, C, P)
    y = lax.conv_general_dilated(x, conv_w.astype(jnp.float32),
                                 window_strides=(1,), padding=[(1, 1)],
                                 dimension_numbers=("NCH", "OIH", "NCH"))
    y = y + conv_b[None, :, None]
    y = y.transpose(0, 2, 1).reshape(B, L, G, W, P, C2)
    y = jnp.where(pin_mask[..., None] > 0, y, -jnp.inf)
    pooled = jnp.max(y, axis=-2)
    pooled = jnp.where(pooled == -jnp.inf, 0.0, pooled)
    lex_pin = jnp.concatenate([lex_embed.astype(jnp.float32), pooled], axis=-1)
    freq_f = freq.astype(jnp.float32)
    fsum = freq_f.sum(axis=(-2, -1), keepdims=True)
    fsum = jnp.where(fsum == 0, 1.0, fsum)
    wemb = (freq_f[..., None] * lex_pin).sum(axis=-2) / fsum
    flat = wemb.reshape(B, L, -1)
    return jnp.concatenate([bert_embed, flat], axis=-1)


if __name__ == "__main__":
    B, L = 2, 8
    group_num = 3
    lexicon_window_size = 4
    W = lexicon_window_size - 2          # max_matched_lexcons
    P = 7                                # max_pinyin_char_length
    word_size = 16
    pinyin_char_size = 16
    Hb = 32                              # synthetic "bert" hidden size
    token_vocab = 64
    pinyin_vocab = 30
    PAD_ID = 0

    key = jax.random.PRNGKey(0)
    ks = jax.random.split(key, 12)

    # deterministic synthetic parameters (shapes from the module __init__)
    pinyin_emb = 0.1 * jax.random.normal(ks[0], (pinyin_vocab, pinyin_char_size), jnp.float32)
    pinyin_emb = pinyin_emb.at[PAD_ID].set(0.0)               # padding_idx row
    conv_w = 0.1 * jax.random.normal(ks[1], (2 * pinyin_char_size, pinyin_char_size, 3), jnp.float32)
    conv_b = 0.1 * jax.random.normal(ks[2], (2 * pinyin_char_size,), jnp.float32)
    tok_table = 0.1 * jax.random.normal(ks[3], (token_vocab, Hb), jnp.float32)
    pos_table = 0.02 * jax.random.normal(ks[4], (L, Hb), jnp.float32)
    params = dict(pinyin_emb=pinyin_emb, conv_w=conv_w, conv_b=conv_b,
                  tok_table=tok_table, pos_table=pos_table)

    # inputs (shapes implied by tokenize()/forward())
    seqs_token_ids = jax.random.randint(ks[5], (B, L), 1, token_vocab)
    att_token_mask = jnp.ones((B, L), jnp.int32)
    seqs_lexicon_embed = jax.random.normal(ks[6], (B, L, group_num, W, word_size), jnp.float32)
    seqs_pinyin_char_ids = jax.random.randint(ks[7], (B, L, group_num, W, P), 1, pinyin_vocab)
    char_drop = jax.random.uniform(ks[8], (B, L, group_num, W, P)) < 0.35
    seqs_pinyin_char_ids = jnp.where(char_drop, PAD_ID, seqs_pinyin_char_ids)
    slot_drop = jax.random.uniform(ks[11], (B, L, group_num, W, 1)) < 0.25
    seqs_pinyin_char_ids = jnp.where(slot_drop, PAD_ID, seqs_pinyin_char_ids)
    att_pinyin_char_mask = (seqs_pinyin_char_ids != PAD_ID).astype(jnp.uint8)
    lexicons_freq = jax.random.randint(ks[9], (B, L, group_num, W), 0, 8)
    zero_tok = jax.random.uniform(ks[10], (B, L, 1, 1)) < 0.2
    lexicons_freq = jnp.where(zero_tok, 0, lexicons_freq)     # exercise freq_sum == 0 path

    out = forward(params, seqs_token_ids, seqs_lexicon_embed, seqs_pinyin_char_ids,
                  att_pinyin_char_mask, lexicons_freq, att_token_mask)
    out = jax.block_until_ready(out)

    # correctness check against the pure-JAX mirror of the torch forward
    h = tok_table[seqs_token_ids] + pos_table[None]
    bert_embed = (h - h.mean(-1, keepdims=True)) / jnp.sqrt(h.var(-1, keepdims=True) + 1e-12)
    pin_embed = pinyin_emb[seqs_pinyin_char_ids]
    ref = reference_forward(bert_embed, seqs_lexicon_embed, pin_embed,
                            att_pinyin_char_mask, lexicons_freq, conv_w, conv_b)

    expected_h = Hb + group_num * (word_size + 2 * pinyin_char_size)
    assert out.shape == (B, L, expected_h), out.shape
    if not jnp.allclose(out, ref, atol=5e-3, rtol=5e-3):
        raise AssertionError(
            f"mismatch vs reference, max abs err = {jnp.max(jnp.abs(out - ref))}")
    print("KERNEL_OK")
</pallas_src>

<mosaic_0001>
module attributes {stable_mosaic.version = 11 : i64} {
  func.func @_encoder_kernel(%arg0: i32, %arg1: memref<7x16x102xbf16, #tpu.memory_space<vmem>>, %arg2: memref<16x102xf32, #tpu.memory_space<vmem>>, %arg3: memref<16x32xf32, #tpu.memory_space<vmem>>, %arg4: memref<3x102x192xbf16, #tpu.memory_space<vmem>>, %arg5: memref<1x192xf32, #tpu.memory_space<vmem>>, %arg6: memref<8x102xf32, #tpu.memory_space<vmem>>, %arg7: memref<8x192xf32, #tpu.memory_space<vmem>>, %arg8: memref<102x144xf32, #tpu.memory_space<vmem>>, %arg9: memref<192x144xf32, #tpu.memory_space<vmem>>, %arg10: memref<16x176xf32, #tpu.memory_space<vmem>>) attributes {dimension_semantics = [#tpu.dimension_semantics<parallel>], iteration_bounds = array<i64: 1>, scalar_prefetch = 0 : i64, scratch_operands = 0 : i64, tpu.core_type = #tpu.core_type<tc>, window_params = [{transform_indices = @transform_0, window_bounds = array<i64: 7, 16, 102>}, {transform_indices = @transform_1, window_bounds = array<i64: 16, 102>}, {transform_indices = @transform_2, window_bounds = array<i64: 16, 32>}, {pipeline_mode = #tpu.pipeline_mode<synchronous>, transform_indices = @transform_3, window_bounds = array<i64: 3, 102, 192>}, {pipeline_mode = #tpu.pipeline_mode<synchronous>, transform_indices = @transform_4, window_bounds = array<i64: 1, 192>}, {pipeline_mode = #tpu.pipeline_mode<synchronous>, transform_indices = @transform_5, window_bounds = array<i64: 8, 102>}, {pipeline_mode = #tpu.pipeline_mode<synchronous>, transform_indices = @transform_6, window_bounds = array<i64: 8, 192>}, {pipeline_mode = #tpu.pipeline_mode<synchronous>, transform_indices = @transform_7, window_bounds = array<i64: 102, 144>}, {pipeline_mode = #tpu.pipeline_mode<synchronous>, transform_indices = @transform_8, window_bounds = array<i64: 192, 144>}, {transform_indices = @transform_9, window_bounds = array<i64: 16, 176>}]} {
    %c0 = arith.constant 0 : index
    %c0_0 = arith.constant 0 : index
    %c0_1 = arith.constant 0 : index
    %0 = vector.load %arg4[%c0, %c0_0, %c0_1] : memref<3x102x192xbf16, #tpu.memory_space<vmem>>, vector<1x102x192xbf16>
    %1 = vector.shape_cast %0 : vector<1x102x192xbf16> to vector<102x192xbf16>
    %c1 = arith.constant 1 : index
    %c0_2 = arith.constant 0 : index
    %c0_3 = arith.constant 0 : index
    %2 = vector.load %arg4[%c1, %c0_2, %c0_3] : memref<3x102x192xbf16, #tpu.memory_space<vmem>>, vector<1x102x192xbf16>
    %3 = vector.shape_cast %2 : vector<1x102x192xbf16> to vector<102x192xbf16>
    %c2 = arith.constant 2 : index
    %c0_4 = arith.constant 0 : index
    %c0_5 = arith.constant 0 : index
    %4 = vector.load %arg4[%c2, %c0_4, %c0_5] : memref<3x102x192xbf16, #tpu.memory_space<vmem>>, vector<1x102x192xbf16>
    %5 = vector.shape_cast %4 : vector<1x102x192xbf16> to vector<102x192xbf16>
    %cst = arith.constant -3.000000e+09 : f32
    %6 = vector.broadcast %cst : f32 to vector<16x192xf32>
    %c0_6 = arith.constant 0 : index
    %c0_7 = arith.constant 0 : index
    %c0_8 = arith.constant 0 : index
    %7 = vector.load %arg1[%c0_6, %c0_7, %c0_8] : memref<7x16x102xbf16, #tpu.memory_space<vmem>>, vector<1x16x102xbf16>
    %8 = vector.shape_cast %7 : vector<1x16x102xbf16> to vector<16x102xbf16>
    %cst_9 = arith.constant dense<0.000000e+00> : vector<16x192xf32>
    %9 = tpu.matmul %8, %3, %cst_9 {dimension_numbers = #tpu.dot_dimension_numbers<[1], [0], [0], [1], [0, 0, 1, 1], [], []>} : vector<16x102xbf16>, vector<102x192xbf16>, vector<16x192xf32> -> vector<16x192xf32>
    %c1_10 = arith.constant 1 : index
    %c0_11 = arith.constant 0 : index
    %c0_12 = arith.constant 0 : index
    %10 = vector.load %arg1[%c1_10, %c0_11, %c0_12] : memref<7x16x102xbf16, #tpu.memory_space<vmem>>, vector<1x16x102xbf16>
    %11 = vector.shape_cast %10 : vector<1x16x102xbf16> to vector<16x102xbf16>
    %cst_13 = arith.constant dense<0.000000e+00> : vector<16x192xf32>
    %12 = tpu.matmul %11, %5, %cst_13 {dimension_numbers = #tpu.dot_dimension_numbers<[1], [0], [0], [1], [0, 0, 1, 1], [], []>} : vector<16x102xbf16>, vector<102x192xbf16>, vector<16x192xf32> -> vector<16x192xf32>
    %13 = arith.addf %9, %12 : vector<16x192xf32>
    %14 = arith.maximumf %6, %13 : vector<16x192xf32>
    %c1_14 = arith.constant 1 : index
    %c0_15 = arith.constant 0 : index
    %c0_16 = arith.constant 0 : index
    %15 = vector.load %arg1[%c1_14, %c0_15, %c0_16] : memref<7x16x102xbf16, #tpu.memory_space<vmem>>, vector<1x16x102xbf16>
    %16 = vector.shape_cast %15 : vector<1x16x102xbf16> to vector<16x102xbf16>
    %cst_17 = arith.constant dense<0.000000e+00> : vector<16x192xf32>
    %17 = tpu.matmul %16, %3, %cst_17 {dimension_numbers = #tpu.dot_dimension_numbers<[1], [0], [0], [1], [0, 0, 1, 1], [], []>} : vector<16x102xbf16>, vector<102x192xbf16>, vector<16x192xf32> -> vector<16x192xf32>
    %c0_18 = arith.constant 0 : index
    %c0_19 = arith.constant 0 : index
    %c0_20 = arith.constant 0 : index
    %18 = vector.load %arg1[%c0_18, %c0_19, %c0_20] : memref<7x16x102xbf16, #tpu.memory_space<vmem>>, vector<1x16x102xbf16>
    %19 = vector.shape_cast %18 : vector<1x16x102xbf16> to vector<16x102xbf16>
    %cst_21 = arith.constant dense<0.000000e+00> : vector<16x192xf32>
    %20 = tpu.matmul %19, %1, %cst_21 {dimension_numbers = #tpu.dot_dimension_numbers<[1], [0], [0], [1], [0, 0, 1, 1], [], []>} : vector<16x102xbf16>, vector<102x192xbf16>, vector<16x192xf32> -> vector<16x192xf32>
    %21 = arith.addf %17, %20 : vector<16x192xf32>
    %c2_22 = arith.constant 2 : index
    %c0_23 = arith.constant 0 : index
    %c0_24 = arith.constant 0 : index
    %22 = vector.load %arg1[%c2_22, %c0_23, %c0_24] : memref<7x16x102xbf16, #tpu.memory_space<vmem>>, vector<1x16x102xbf16>
    %23 = vector.shape_cast %22 : vector<1x16x102xbf16> to vector<16x102xbf16>
    %cst_25 = arith.constant dense<0.000000e+00> : vector<16x192xf32>
    %24 = tpu.matmul %23, %5, %cst_25 {dimension_numbers = #tpu.dot_dimension_numbers<[1], [0], [0], [1], [0, 0, 1, 1], [], []>} : vector<16x102xbf16>, vector<102x192xbf16>, vector<16x192xf32> -> vector<16x192xf32>
    %25 = arith.addf %21, %24 : vector<16x192xf32>
    %26 = arith.maximumf %14, %25 : vector<16x192xf32>
    %c2_26 = arith.constant 2 : index
    %c0_27 = arith.constant 0 : index
    %c0_28 = arith.constant 0 : index
    %27 = vector.load %arg1[%c2_26, %c0_27, %c0_28] : memref<7x16x102xbf16, #tpu.memory_space<vmem>>, vector<1x16x102xbf16>
    %28 = vector.shape_cast %27 : vector<1x16x102xbf16> to vector<16x102xbf16>
    %cst_29 = arith.constant dense<0.000000e+00> : vector<16x192xf32>
    %29 = tpu.matmul %28, %3, %cst_29 {dimension_numbers = #tpu.dot_dimension_numbers<[1], [0], [0], [1], [0, 0, 1, 1], [], []>} : vector<16x102xbf16>, vector<102x192xbf16>, vector<16x192xf32> -> vector<16x192xf32>
    %c1_30 = arith.constant 1 : index
    %c0_31 = arith.constant 0 : index
    %c0_32 = arith.constant 0 : index
    %30 = vector.load %arg1[%c1_30, %c0_31, %c0_32] : memref<7x16x102xbf16, #tpu.memory_space<vmem>>, vector<1x16x102xbf16>
    %31 = vector.shape_cast %30 : vector<1x16x102xbf16> to vector<16x102xbf16>
    %cst_33 = arith.constant dense<0.000000e+00> : vector<16x192xf32>
    %32 = tpu.matmul %31, %1, %cst_33 {dimension_numbers = #tpu.dot_dimension_numbers<[1], [0], [0], [1], [0, 0, 1, 1], [], []>} : vector<16x102xbf16>, vector<102x192xbf16>, vector<16x192xf32> -> vector<16x192xf32>
    %33 = arith.addf %29, %32 : vector<16x192xf32>
    %c3 = arith.constant 3 : index
    %c0_34 = arith.constant 0 : index
    %c0_35 = arith.constant 0 : index
    %34 = vector.load %arg1[%c3, %c0_34, %c0_35] : memref<7x16x102xbf16, #tpu.memory_space<vmem>>, vector<1x16x102xbf16>
    %35 = vector.shape_cast %34 : vector<1x16x102xbf16> to vector<16x102xbf16>
    %cst_36 = arith.constant dense<0.000000e+00> : vector<16x192xf32>
    %36 = tpu.matmul %35, %5, %cst_36 {dimension_numbers = #tpu.dot_dimension_numbers<[1], [0], [0], [1], [0, 0, 1, 1], [], []>} : vector<16x102xbf16>, vector<102x192xbf16>, vector<16x192xf32> -> vector<16x192xf32>
    %37 = arith.addf %33, %36 : vector<16x192xf32>
    %38 = arith.maximumf %26, %37 : vector<16x192xf32>
    %c3_37 = arith.constant 3 : index
    %c0_38 = arith.constant 0 : index
    %c0_39 = arith.constant 0 : index
    %39 = vector.load %arg1[%c3_37, %c0_38, %c0_39] : memref<7x16x102xbf16, #tpu.memory_space<vmem>>, vector<1x16x102xbf16>
    %40 = vector.shape_cast %39 : vector<1x16x102xbf16> to vector<16x102xbf16>
    %cst_40 = arith.constant dense<0.000000e+00> : vector<16x192xf32>
    %41 = tpu.matmul %40, %3, %cst_40 {dimension_numbers = #tpu.dot_dimension_numbers<[1], [0], [0], [1], [0, 0, 1, 1], [], []>} : vector<16x102xbf16>, vector<102x192xbf16>, vector<16x192xf32> -> vector<16x192xf32>
    %c2_41 = arith.constant 2 : index
    %c0_42 = arith.constant 0 : index
    %c0_43 = arith.constant 0 : index
    %42 = vector.load %arg1[%c2_41, %c0_42, %c0_43] : memref<7x16x102xbf16, #tpu.memory_space<vmem>>, vector<1x16x102xbf16>
    %43 = vector.shape_cast %42 : vector<1x16x102xbf16> to vector<16x102xbf16>
    %cst_44 = arith.constant dense<0.000000e+00> : vector<16x192xf32>
    %44 = tpu.matmul %43, %1, %cst_44 {dimension_numbers = #tpu.dot_dimension_numbers<[1], [0], [0], [1], [0, 0, 1, 1], [], []>} : vector<16x102xbf16>, vector<102x192xbf16>, vector<16x192xf32> -> vector<16x192xf32>
    %45 = arith.addf %41, %44 : vector<16x192xf32>
    %c4 = arith.constant 4 : index
    %c0_45 = arith.constant 0 : index
    %c0_46 = arith.constant 0 : index
    %46 = vector.load %arg1[%c4, %c0_45, %c0_46] : memref<7x16x102xbf16, #tpu.memory_space<vmem>>, vector<1x16x102xbf16>
    %47 = vector.shape_cast %46 : vector<1x16x102xbf16> to vector<16x102xbf16>
    %cst_47 = arith.constant dense<0.000000e+00> : vector<16x192xf32>
    %48 = tpu.matmul %47, %5, %cst_47 {dimension_numbers = #tpu.dot_dimension_numbers<[1], [0], [0], [1], [0, 0, 1, 1], [], []>} : vector<16x102xbf16>, vector<102x192xbf16>, vector<16x192xf32> -> vector<16x192xf32>
    %49 = arith.addf %45, %48 : vector<16x192xf32>
    %50 = arith.maximumf %38, %49 : vector<16x192xf32>
    %c4_48 = arith.constant 4 : index
    %c0_49 = arith.constant 0 : index
    %c0_50 = arith.constant 0 : index
    %51 = vector.load %arg1[%c4_48, %c0_49, %c0_50] : memref<7x16x102xbf16, #tpu.memory_space<vmem>>, vector<1x16x102xbf16>
    %52 = vector.shape_cast %51 : vector<1x16x102xbf16> to vector<16x102xbf16>
    %cst_51 = arith.constant dense<0.000000e+00> : vector<16x192xf32>
    %53 = tpu.matmul %52, %3, %cst_51 {dimension_numbers = #tpu.dot_dimension_numbers<[1], [0], [0], [1], [0, 0, 1, 1], [], []>} : vector<16x102xbf16>, vector<102x192xbf16>, vector<16x192xf32> -> vector<16x192xf32>
    %c3_52 = arith.constant 3 : index
    %c0_53 = arith.constant 0 : index
    %c0_54 = arith.constant 0 : index
    %54 = vector.load %arg1[%c3_52, %c0_53, %c0_54] : memref<7x16x102xbf16, #tpu.memory_space<vmem>>, vector<1x16x102xbf16>
    %55 = vector.shape_cast %54 : vector<1x16x102xbf16> to vector<16x102xbf16>
    %cst_55 = arith.constant dense<0.000000e+00> : vector<16x192xf32>
    %56 = tpu.matmul %55, %1, %cst_55 {dimension_numbers = #tpu.dot_dimension_numbers<[1], [0], [0], [1], [0, 0, 1, 1], [], []>} : vector<16x102xbf16>, vector<102x192xbf16>, vector<16x192xf32> -> vector<16x192xf32>
    %57 = arith.addf %53, %56 : vector<16x192xf32>
    %c5 = arith.constant 5 : index
    %c0_56 = arith.constant 0 : index
    %c0_57 = arith.constant 0 : index
    %58 = vector.load %arg1[%c5, %c0_56, %c0_57] : memref<7x16x102xbf16, #tpu.memory_space<vmem>>, vector<1x16x102xbf16>
    %59 = vector.shape_cast %58 : vector<1x16x102xbf16> to vector<16x102xbf16>
    %cst_58 = arith.constant dense<0.000000e+00> : vector<16x192xf32>
    %60 = tpu.matmul %59, %5, %cst_58 {dimension_numbers = #tpu.dot_dimension_numbers<[1], [0], [0], [1], [0, 0, 1, 1], [], []>} : vector<16x102xbf16>, vector<102x192xbf16>, vector<16x192xf32> -> vector<16x192xf32>
    %61 = arith.addf %57, %60 : vector<16x192xf32>
    %62 = arith.maximumf %50, %61 : vector<16x192xf32>
    %c5_59 = arith.constant 5 : index
    %c0_60 = arith.constant 0 : index
    %c0_61 = arith.constant 0 : index
    %63 = vector.load %arg1[%c5_59, %c0_60, %c0_61] : memref<7x16x102xbf16, #tpu.memory_space<vmem>>, vector<1x16x102xbf16>
    %64 = vector.shape_cast %63 : vector<1x16x102xbf16> to vector<16x102xbf16>
    %cst_62 = arith.constant dense<0.000000e+00> : vector<16x192xf32>
    %65 = tpu.matmul %64, %3, %cst_62 {dimension_numbers = #tpu.dot_dimension_numbers<[1], [0], [0], [1], [0, 0, 1, 1], [], []>} : vector<16x102xbf16>, vector<102x192xbf16>, vector<16x192xf32> -> vector<16x192xf32>
    %c4_63 = arith.constant 4 : index
    %c0_64 = arith.constant 0 : index
    %c0_65 = arith.constant 0 : index
    %66 = vector.load %arg1[%c4_63, %c0_64, %c0_65] : memref<7x16x102xbf16, #tpu.memory_space<vmem>>, vector<1x16x102xbf16>
    %67 = vector.shape_cast %66 : vector<1x16x102xbf16> to vector<16x102xbf16>
    %cst_66 = arith.constant dense<0.000000e+00> : vector<16x192xf32>
    %68 = tpu.matmul %67, %1, %cst_66 {dimension_numbers = #tpu.dot_dimension_numbers<[1], [0], [0], [1], [0, 0, 1, 1], [], []>} : vector<16x102xbf16>, vector<102x192xbf16>, vector<16x192xf32> -> vector<16x192xf32>
    %69 = arith.addf %65, %68 : vector<16x192xf32>
    %c6 = arith.constant 6 : index
    %c0_67 = arith.constant 0 : index
    %c0_68 = arith.constant 0 : index
    %70 = vector.load %arg1[%c6, %c0_67, %c0_68] : memref<7x16x102xbf16, #tpu.memory_space<vmem>>, vector<1x16x102xbf16>
    %71 = vector.shape_cast %70 : vector<1x16x102xbf16> to vector<16x102xbf16>
    %cst_69 = arith.constant dense<0.000000e+00> : vector<16x192xf32>
    %72 = tpu.matmul %71, %5, %cst_69 {dimension_numbers = #tpu.dot_dimension_numbers<[1], [0], [0], [1], [0, 0, 1, 1], [], []>} : vector<16x102xbf16>, vector<102x192xbf16>, vector<16x192xf32> -> vector<16x192xf32>
    %73 = arith.addf %69, %72 : vector<16x192xf32>
    %74 = arith.maximumf %62, %73 : vector<16x192xf32>
    %c6_70 = arith.constant 6 : index
    %c0_71 = arith.constant 0 : index
    %c0_72 = arith.constant 0 : index
    %75 = vector.load %arg1[%c6_70, %c0_71, %c0_72] : memref<7x16x102xbf16, #tpu.memory_space<vmem>>, vector<1x16x102xbf16>
    %76 = vector.shape_cast %75 : vector<1x16x102xbf16> to vector<16x102xbf16>
    %cst_73 = arith.constant dense<0.000000e+00> : vector<16x192xf32>
    %77 = tpu.matmul %76, %3, %cst_73 {dimension_numbers = #tpu.dot_dimension_numbers<[1], [0], [0], [1], [0, 0, 1, 1], [], []>} : vector<16x102xbf16>, vector<102x192xbf16>, vector<16x192xf32> -> vector<16x192xf32>
    %c5_74 = arith.constant 5 : index
    %c0_75 = arith.constant 0 : index
    %c0_76 = arith.constant 0 : index
    %78 = vector.load %arg1[%c5_74, %c0_75, %c0_76] : memref<7x16x102xbf16, #tpu.memory_space<vmem>>, vector<1x16x102xbf16>
    %79 = vector.shape_cast %78 : vector<1x16x102xbf16> to vector<16x102xbf16>
    %cst_77 = arith.constant dense<0.000000e+00> : vector<16x192xf32>
    %80 = tpu.matmul %79, %1, %cst_77 {dimension_numbers = #tpu.dot_dimension_numbers<[1], [0], [0], [1], [0, 0, 1, 1], [], []>} : vector<16x102xbf16>, vector<102x192xbf16>, vector<16x192xf32> -> vector<16x192xf32>
    %81 = arith.addf %77, %80 : vector<16x192xf32>
    %82 = arith.maximumf %74, %81 : vector<16x192xf32>
    %cst_78 = arith.constant -1.000000e+08 : f32
    %83 = vector.broadcast %cst_78 : f32 to vector<16x192xf32>
    %84 = arith.cmpf ogt, %82, %83 : vector<16x192xf32>
    %c0_79 = arith.constant 0 : index
    %c0_80 = arith.constant 0 : index
    %85 = vector.load %arg5[%c0_79, %c0_80] : memref<1x192xf32, #tpu.memory_space<vmem>>, vector<1x192xf32>
    %86 = vector.broadcast %85 : vector<1x192xf32> to vector<16x192xf32>
    %87 = arith.addf %82, %86 : vector<16x192xf32>
    %cst_81 = arith.constant 0.000000e+00 : f32
    %88 = vector.broadcast %cst_81 : f32 to vector<16x192xf32>
    %89 = arith.select %84, %87, %88 : vector<16x192xi1>, vector<16x192xf32>
    %c0_82 = arith.constant 0 : index
    %c0_83 = arith.constant 0 : index
    %90 = vector.load %arg2[%c0_82, %c0_83] : memref<16x102xf32, #tpu.memory_space<vmem>>, vector<16x102xf32>
    %91 = vector.extract_strided_slice %90 {offsets = [0, 0], sizes = [16, 6], strides = [1, 1]} : vector<16x102xf32> to vector<16x6xf32>
    %cst_84 = arith.constant dense<0.000000e+00> : vector<16xf32>
    %92 = vector.multi_reduction <add>, %91, %cst_84 [1] : vector<16x6xf32> to vector<16xf32>
    %93 = vector.shape_cast %92 : vector<16xf32> to vector<16x1xf32>
    %cst_85 = arith.constant 0.000000e+00 : f32
    %94 = vector.broadcast %cst_85 : f32 to vector<16x1xf32>
    %95 = arith.cmpf oeq, %93, %94 : vector<16x1xf32>
    %cst_86 = arith.constant 1.000000e+00 : f32
    %96 = vector.broadcast %cst_86 : f32 to vector<16x1xf32>
    %97 = arith.select %95, %96, %93 : vector<16x1xi1>, vector<16x1xf32>
    %cst_87 = arith.constant 1.000000e+00 : f32
    %98 = vector.broadcast %cst_87 : f32 to vector<16x1xf32>
    %99 = arith.divf %98, %97 : vector<16x1xf32>
    %100 = vector.extract_strided_slice %90 {offsets = [0, 0], sizes = [16, 8], strides = [1, 1]} : vector<16x102xf32> to vector<16x8xf32>
    %c0_88 = arith.constant 0 : index
    %c0_89 = arith.constant 0 : index
    %101 = vector.load %arg6[%c0_88, %c0_89] : memref<8x102xf32, #tpu.memory_space<vmem>>, vector<8x102xf32>
    %cst_90 = arith.constant dense<0.000000e+00> : vector<16x102xf32>
    %102 = tpu.matmul %100, %101, %cst_90 {dimension_numbers = #tpu.dot_dimension_numbers<[1], [0], [0], [1], [0, 0, 1, 1], [], []>} : vector<16x8xf32>, vector<8x102xf32>, vector<16x102xf32> -> vector<16x102xf32>
    %c0_91 = arith.constant 0 : index
    %c0_92 = arith.constant 0 : index
    %103 = vector.load %arg7[%c0_91, %c0_92] : memref<8x192xf32, #tpu.memory_space<vmem>>, vector<8x192xf32>
    %cst_93 = arith.constant dense<0.000000e+00> : vector<16x192xf32>
    %104 = tpu.matmul %100, %103, %cst_93 {dimension_numbers = #tpu.dot_dimension_numbers<[1], [0], [0], [1], [0, 0, 1, 1], [], []>} : vector<16x8xf32>, vector<8x192xf32>, vector<16x192xf32> -> vector<16x192xf32>
    %105 = arith.mulf %90, %102 : vector<16x102xf32>
    %c0_94 = arith.constant 0 : index
    %c0_95 = arith.constant 0 : index
    %106 = vector.load %arg8[%c0_94, %c0_95] : memref<102x144xf32, #tpu.memory_space<vmem>>, vector<102x144xf32>
    %cst_96 = arith.constant dense<0.000000e+00> : vector<16x144xf32>
    %107 = tpu.matmul %105, %106, %cst_96 {dimension_numbers = #tpu.dot_dimension_numbers<[1], [0], [0], [1], [0, 0, 1, 1], [], []>, precision = #tpu.contract_precision<fp32>} : vector<16x102xf32>, vector<102x144xf32>, vector<16x144xf32> -> vector<16x144xf32>
    %108 = arith.mulf %89, %104 : vector<16x192xf32>
    %c0_97 = arith.constant 0 : index
    %c0_98 = arith.constant 0 : index
    %109 = vector.load %arg9[%c0_97, %c0_98] : memref<192x144xf32, #tpu.memory_space<vmem>>, vector<192x144xf32>
    %cst_99 = arith.constant dense<0.000000e+00> : vector<16x144xf32>
    %110 = tpu.matmul %108, %109, %cst_99 {dimension_numbers = #tpu.dot_dimension_numbers<[1], [0], [0], [1], [0, 0, 1, 1], [], []>, precision = #tpu.contract_precision<fp32>} : vector<16x192xf32>, vector<192x144xf32>, vector<16x144xf32> -> vector<16x144xf32>
    %111 = arith.addf %107, %110 : vector<16x144xf32>
    %c0_100 = arith.constant 0 : index
    %c0_101 = arith.constant 0 : index
    %112 = vector.load %arg3[%c0_100, %c0_101] : memref<16x32xf32, #tpu.memory_space<vmem>>, vector<16x32xf32>
    %113 = vector.broadcast %99 : vector<16x1xf32> to vector<16x144xf32>
    %114 = arith.mulf %111, %113 : vector<16x144xf32>
    %115 = tpu.concatenate %112, %114 in 1 : vector<16x32xf32>, vector<16x144xf32> -> vector<16x176xf32>
    %c0_102 = arith.constant 0 : index
    %c0_103 = arith.constant 0 : index
    %116 = vector.load %arg10[%c0_102, %c0_103] : memref<16x176xf32, #tpu.memory_space<vmem>>, vector<16x176xf32>
    tpu.vector_store %arg10[%c0_102, %c0_103], %115 {strides = array<i32>} : memref<16x176xf32, #tpu.memory_space<vmem>>, vector<16x176xf32>,
    return
  }
  func.func @transform_0(%arg0: i32) -> (i32, i32, i32) {
    %c0_i32 = arith.constant 0 : i32
    %c0_i32_0 = arith.constant 0 : i32
    %c0_i32_1 = arith.constant 0 : i32
    return %c0_i32, %arg0, %c0_i32_0 : i32, i32, i32
  }
  func.func @transform_1(%arg0: i32) -> (i32, i32) {
    %c0_i32 = arith.constant 0 : i32
    %c0_i32_0 = arith.constant 0 : i32
    return %arg0, %c0_i32 : i32, i32
  }
  func.func @transform_2(%arg0: i32) -> (i32, i32) {
    %c0_i32 = arith.constant 0 : i32
    %c0_i32_0 = arith.constant 0 : i32
    return %arg0, %c0_i32 : i32, i32
  }
  func.func @transform_3(%arg0: i32) -> (i32, i32, i32) {
    %c0_i32 = arith.constant 0 : i32
    %c0_i32_0 = arith.constant 0 : i32
    %c0_i32_1 = arith.constant 0 : i32
    %c0_i32_2 = arith.constant 0 : i32
    return %c0_i32, %c0_i32_0, %c0_i32_1 : i32, i32, i32
  }
  func.func @transform_4(%arg0: i32) -> (i32, i32) {
    %c0_i32 = arith.constant 0 : i32
    %c0_i32_0 = arith.constant 0 : i32
    %c0_i32_1 = arith.constant 0 : i32
    return %c0_i32, %c0_i32_0 : i32, i32
  }
  func.func @transform_5(%arg0: i32) -> (i32, i32) {
    %c0_i32 = arith.constant 0 : i32
    %c0_i32_0 = arith.constant 0 : i32
    %c0_i32_1 = arith.constant 0 : i32
    return %c0_i32, %c0_i32_0 : i32, i32
  }
  func.func @transform_6(%arg0: i32) -> (i32, i32) {
    %c0_i32 = arith.constant 0 : i32
    %c0_i32_0 = arith.constant 0 : i32
    %c0_i32_1 = arith.constant 0 : i32
    return %c0_i32, %c0_i32_0 : i32, i32
  }
  func.func @transform_7(%arg0: i32) -> (i32, i32) {
    %c0_i32 = arith.constant 0 : i32
    %c0_i32_0 = arith.constant 0 : i32
    %c0_i32_1 = arith.constant 0 : i32
    return %c0_i32, %c0_i32_0 : i32, i32
  }
  func.func @transform_8(%arg0: i32) -> (i32, i32) {
    %c0_i32 = arith.constant 0 : i32
    %c0_i32_0 = arith.constant 0 : i32
    %c0_i32_1 = arith.constant 0 : i32
    return %c0_i32, %c0_i32_0 : i32, i32
  }
  func.func @transform_9(%arg0: i32) -> (i32, i32) {
    %c0_i32 = arith.constant 0 : i32
    %c0_i32_0 = arith.constant 0 : i32
    return %arg0, %c0_i32 : i32, i32
  }
}

</mosaic_0001>

<llo_original>
// kernel: tpu_custom_call.1
$region0: #{tpu_custom_call.1}
  #allocation0 [shape = 'u32[]', space=smem, size = 0x4, offset = 0x4, fixed_abs, tag = 'smem constant byte address 0x4 - core index']
  #allocation1 [shape = 'u32[144,128]{1,0:T(1,128)}', space=vmem, size = 0x12000, scoped, tag = 'internal scratch']
  %s0 = inlined_call_operand.vmem [shape: bf16[7,16,102], index: 0, kind: input, shape index: {}]
  %s1 = inlined_call_operand.vmem [shape: f32[16,102], index: 1, kind: input, shape index: {}]
  %s2 = inlined_call_operand.vmem [shape: f32[16,32], index: 2, kind: input, shape index: {}]
  %s3 = inlined_call_operand.vmem [shape: bf16[3,102,192], index: 3, kind: input, shape index: {}]
  %s4 = inlined_call_operand.vmem [shape: f32[1,192], index: 4, kind: input, shape index: {}]
  %s5 = inlined_call_operand.vmem [shape: f32[8,102], index: 5, kind: input, shape index: {}]
  %s6 = inlined_call_operand.vmem [shape: f32[8,192], index: 6, kind: input, shape index: {}]
  %s7 = inlined_call_operand.vmem [shape: f32[102,144], index: 7, kind: input, shape index: {}]
  %s8 = inlined_call_operand.vmem [shape: f32[192,144], index: 8, kind: input, shape index: {}]
  %s9 = inlined_call_operand.hbm [shape: f32[16,176], index: 9, kind: output, shape index: {}]
  %s10 = sld [smem:[#allocation0]]
  $region46: #{tpu_custom_call.1} parent=0
    _
  %s12 = ssub.s32 1, %s10
  %s13 = scalar_select 0, %s12, %s10
  $region1: #{tpu_custom_call.1} parent=0
    #allocation2 [shape = 'u8[16384]{0}', space=vmem, size = 0x4000, scoped, tag = 'output window, operand 0, single buffered']
    #allocation3 [shape = 's32[1]{0}', space=sflag, size = 0x4, scoped, tag = 'scoped memory for tpu_custom_call.1']
    %14 = vsyncpa [#allocation3], 0
    // Predicated region
    $region2: #{tpu_custom_call.1} parent=1 // pred_check
      _
    $region3: #{tpu_custom_call.1} parent=1 // pred_check_branch
      %16 = sbr.rel (0) target = $region5
    $region4: #{tpu_custom_call.1} parent=1 // pred_region
      _
    $region5: #{tpu_custom_call.1} parent=1 // pred_fallthru
      _
    // Predicated region
    $region6: #{tpu_custom_call.1} parent=1 // pred_check
      _
    $region7: #{tpu_custom_call.1} parent=1 // pred_check_branch
      %18 = sbr.rel (0) target = $region9
    $region8: #{tpu_custom_call.1} parent=1 // pred_region
      _
    $region9: #{tpu_custom_call.1} parent=1 // pred_fallthru
      _
    // Predicated region
    $region10: #{tpu_custom_call.1} parent=1 // pred_check
      _
    $region11: #{tpu_custom_call.1} parent=1 // pred_check_branch
      %20 = sbr.rel (0) target = $region13
    $region12: #{tpu_custom_call.1} parent=1 // pred_region
      _
    $region13: #{tpu_custom_call.1} parent=1 // pred_fallthru
      _
    // Predicated region
    $region14: #{tpu_custom_call.1} parent=1 // pred_check
      _
    $region15: #{tpu_custom_call.1} parent=1 // pred_check_branch
      %22 = sbr.rel (0) target = $region17
    $region16: #{tpu_custom_call.1} parent=1 // pred_region
      _
    $region17: #{tpu_custom_call.1} parent=1 // pred_fallthru
      _
    // Predicated region
    $region18: #{tpu_custom_call.1} parent=1 // pred_check
      _
    $region19: #{tpu_custom_call.1} parent=1 // pred_check_branch
      %24 = sbr.rel (0) target = $region21
    $region20: #{tpu_custom_call.1} parent=1 // pred_region
      _
    $region21: #{tpu_custom_call.1} parent=1 // pred_fallthru
      _
    // Predicated region
    $region22: #{tpu_custom_call.1} parent=1 // pred_check
      _
    $region23: #{tpu_custom_call.1} parent=1 // pred_check_branch
      %26 = sbr.rel (0) target = $region25
    $region24: #{tpu_custom_call.1} parent=1 // pred_region
      _
    $region25: #{tpu_custom_call.1} parent=1 // pred_fallthru
      _
    // Predicated region
    $region26: #{tpu_custom_call.1} parent=1 // pred_check
      _
    $region27: #{tpu_custom_call.1} parent=1 // pred_check_branch
      %28 = sbr.rel (0) target = $region29
    $region28: #{tpu_custom_call.1} parent=1 // pred_region
      _
    $region29: #{tpu_custom_call.1} parent=1 // pred_fallthru
      _
    // Predicated region
    $region30: #{tpu_custom_call.1} parent=1 // pred_check
      _
    $region31: #{tpu_custom_call.1} parent=1 // pred_check_branch
      %30 = sbr.rel (0) target = $region33
    $region32: #{tpu_custom_call.1} parent=1 // pred_region
      _
    $region33: #{tpu_custom_call.1} parent=1 // pred_fallthru
      _
    // Predicated region
    $region34: #{tpu_custom_call.1} parent=1 // pred_check
      _
    $region35: #{tpu_custom_call.1} parent=1 // pred_check_branch
      %32 = sbr.rel (0) target = $region37
    $region36: #{tpu_custom_call.1} parent=1 // pred_region
      _
    $region37: #{tpu_custom_call.1} parent=1 // pred_fallthru
      _
    %v34 = vld [vmem:[%s3] sm:$0xff]
    %v35 = vld [vmem:[%s3 + $0x8] sm:$0xff]
    %v36 = vld [vmem:[%s3 + $0x10] sm:$0xff]
    %v37 = vld [vmem:[%s3 + $0x18] sm:$0xff]
    %v38 = vld [vmem:[%s3 + $0x20] sm:$0xff]
    %v39 = vld [vmem:[%s3 + $0x28] sm:$0xff]
    %v40 = vld [vmem:[%s3 + $0x30] sm:$0xff]
    %v41 = vld [vmem:[%s3 + $0x38] sm:$0xff]
    %v42 = vld [vmem:[%s3 + $0x40] sm:$0xff]
    %v43 = vld [vmem:[%s3 + $0x48] sm:$0xff]
    %v44 = vld [vmem:[%s3 + $0x50] sm:$0xff]
    %v45 = vld [vmem:[%s3 + $0x58] sm:$0xff]
    %v46 = vld [vmem:[%s3 + $0x60] sm:$0x77]
    %s47 = scalar_lea.vmem %s3, 104
    %v48 = vld [vmem:[%s47] sm:$0xff]
    %v49 = vld [vmem:[%s47 + $0x8] sm:$0xff]
    %v50 = vld [vmem:[%s47 + $0x10] sm:$0xff]
    %v51 = vld [vmem:[%s47 + $0x18] sm:$0xff]
    %v52 = vld [vmem:[%s47 + $0x20] sm:$0xff]
    %v53 = vld [vmem:[%s47 + $0x28] sm:$0xff]
    %v54 = vld [vmem:[%s47 + $0x30] sm:$0xff]
    %v55 = vld [vmem:[%s47 + $0x38] sm:$0xff]
    %v56 = vld [vmem:[%s47 + $0x40] sm:$0xff]
    %v57 = vld [vmem:[%s47 + $0x48] sm:$0xff]
    %v58 = vld [vmem:[%s47 + $0x50] sm:$0xff]
    %v59 = vld [vmem:[%s47 + $0x58] sm:$0xff]
    %v60 = vld [vmem:[%s47 + $0x60] sm:$0x77]
    %s61 = scalar_lea.vmem %s3, 208
    %v62 = vld [vmem:[%s61] sm:$0xff]
    %v63 = vld [vmem:[%s61 + $0x8] sm:$0xff]
    %v64 = vld [vmem:[%s61 + $0x10] sm:$0xff]
    %v65 = vld [vmem:[%s61 + $0x18] sm:$0xff]
    %v66 = vld [vmem:[%s61 + $0x20] sm:$0xff]
    %v67 = vld [vmem:[%s61 + $0x28] sm:$0xff]
    %v68 = vld [vmem:[%s61 + $0x30] sm:$0xff]
    %v69 = vld [vmem:[%s61 + $0x38] sm:$0xff]
    %v70 = vld [vmem:[%s61 + $0x40] sm:$0xff]
    %v71 = vld [vmem:[%s61 + $0x48] sm:$0xff]
    %v72 = vld [vmem:[%s61 + $0x50] sm:$0xff]
    %v73 = vld [vmem:[%s61 + $0x58] sm:$0xff]
    %v74 = vld [vmem:[%s61 + $0x60] sm:$0x77]
    %v75 = vld [vmem:[%s0] sm:$0xf]
    %v76 = vld [vmem:[%s0 + $0x4] sm:$0xf]
    %s77 = scalar_lea.vmem %s0, 8
    %v78 = vld [vmem:[%s77] sm:$0xf]
    %v79 = vld [vmem:[%s77 + $0x4] sm:$0xf]
    %v82 = vunpack.c.l.b16 %v78
    %v83 = vunpack.c.l.b16 %v79
    %v84 = vpack.c.b16 %v83, %v82
    %v98 = vunpack.c.l.b16 %v62
    %v99 = vunpack.c.h.b16 %v62
    %v100 = vunpack.c.l.b16 %v63
    %v101 = vunpack.c.h.b16 %v63
    %v102 = vunpack.c.l.b16 %v64
    %v103 = vunpack.c.h.b16 %v64
    %v104 = vunpack.c.l.b16 %v65
    %v105 = vunpack.c.h.b16 %v65
    %v106 = vunpack.c.l.b16 %v66
    %v107 = vunpack.c.h.b16 %v66
    %v108 = vunpack.c.l.b16 %v67
    %v109 = vunpack.c.h.b16 %v67
    %v110 = vunpack.c.l.b16 %v68
    %v111 = vunpack.c.h.b16 %v68
    %v112 = vunpack.c.l.b16 %v69
    %v113 = vunpack.c.h.b16 %v69
    %v114 = vunpack.c.l.b16 %v70
    %v115 = vunpack.c.h.b16 %v70
    %v116 = vunpack.c.l.b16 %v71
    %v117 = vunpack.c.h.b16 %v71
    %v118 = vunpack.c.l.b16 %v72
    %v119 = vunpack.c.h.b16 %v72
    %v120 = vunpack.c.l.b16 %v73
    %v121 = vunpack.c.h.b16 %v73
    %v122 = vunpack.c.l.b16 %v74
    %v123 = vunpack.c.h.b16 %v74
    %v124 = vpack.c.b16 %v100, %v98
    %v125 = vpack.c.b16 %v101, %v99
    %v126 = vpack.c.b16 %v104, %v102
    %v127 = vpack.c.b16 %v105, %v103
    %v128 = vpack.c.b16 %v108, %v106
    %v129 = vpack.c.b16 %v109, %v107
    %v130 = vpack.c.b16 %v112, %v110
    %v131 = vpack.c.b16 %v113, %v111
    %v132 = vpack.c.b16 %v116, %v114
    %v133 = vpack.c.b16 %v117, %v115
    %v134 = vpack.c.b16 %v120, %v118
    %v135 = vpack.c.b16 %v121, %v119
    %v136 = vpack.c.b16 %v122, %v122
    %v137 = vpack.c.b16 %v123, %v123
    %vm150 = vcmask 834560
    %v152 = vsel %vm150, %v84, 0
    %vm154 = vcmask 1042432
    %v156 = vsel %vm154, %v136, 0
    %v159 = vsel %vm154, %v137, 0
    %161 = vmatprep.subr.bf16.mxu0 %v125
    %162 = vmatpush1.bf16.msra.mxu0 %v124
    %163 = vmatprep.subr.bf16.mxu0 %v127
    %164 = vmatpush1.bf16.msra.mxu0 %v126
    %165 = vmatprep.subr.bf16.mxu0 %v129
    %166 = vmatpush1.bf16.msra.mxu0 %v128
    %167 = vmatprep.subr.bf16.mxu0 %v131
    %168 = vmatpush1.bf16.msra.mxu0 %v130
    %169 = vmatprep.subr.bf16.mxu0 %v133
    %170 = vmatpush1.bf16.msra.mxu0 %v132
    %171 = vmatprep.subr.bf16.mxu0 %v135
    %172 = vmatpush1.bf16.msra.mxu0 %v134
    %173 = vmatprep.subr.bf16.mxu0 %v159
    %174 = vmatpush1.bf16.msra.mxu0 %v156
    %175 = vmatprep.subr.bf16.mxu0 0
    %176 = vmatpush1.bf16.msra.mxu0 0
    %177 = vmatprep.subr.bf16.mxu0 0
    %178 = vmatpush1.bf16.msra.mxu0 0
    %179 = vmatprep.subr.bf16.mxu0 0
    %180 = vmatpush1.bf16.msra.mxu0 0
    %181 = vmatprep.subr.bf16.mxu0 0
    %182 = vmatpush1.bf16.msra.mxu0 0
    %183 = vmatprep.subr.bf16.mxu0 0
    %184 = vmatpush1.bf16.msra.mxu0 0
    %185 = vmatprep.subr.bf16.mxu0 0
    %186 = vmatpush1.bf16.msra.mxu0 0
    %187 = vmatprep.subr.bf16.mxu0 0
    %188 = vmatpush1.bf16.msra.mxu0 0
    %189 = vmatprep.subr.bf16.mxu0 0
    %190 = vmatpush1.bf16.msra.mxu0 0
    %191 = vmatprep.subr.bf16.mxu0 0
    %192 = vmatpush1.bf16.msra.mxu0 0
    %193 = vmatprep.mubr.bf16.mxu0 0
    %194 = vmatmul.mubr.bf16.gmra.mrb[0].mxu0 %v152
    %v195 = vpop.f32.mrb[0].mxu0
    %v196 = vadd.f32 0.0, %v195
    %v197 = vpop.f32.mrb[0].mxu0
    %v198 = vadd.f32 0.0, %v197
    %v199 = vpop.f32.mrb[0].mxu0
    %v200 = vadd.f32 0.0, %v199
    %v201 = vpop.f32.mrb[0].mxu0
    %v202 = vadd.f32 0.0, %v201
    %203 = vdwg.mxu0
    %v206 = vunpack.c.l.b16 %v75
    %v207 = vunpack.c.l.b16 %v76
    %v208 = vpack.c.b16 %v207, %v206
    %v222 = vunpack.c.l.b16 %v48
    %v223 = vunpack.c.h.b16 %v48
    %v224 = vunpack.c.l.b16 %v49
    %v225 = vunpack.c.h.b16 %v49
    %v226 = vunpack.c.l.b16 %v50
    %v227 = vunpack.c.h.b16 %v50
    %v228 = vunpack.c.l.b16 %v51
    %v229 = vunpack.c.h.b16 %v51
    %v230 = vunpack.c.l.b16 %v52
    %v231 = vunpack.c.h.b16 %v52
    %v232 = vunpack.c.l.b16 %v53
    %v233 = vunpack.c.h.b16 %v53
    %v234 = vunpack.c.l.b16 %v54
    %v235 = vunpack.c.h.b16 %v54
    %v236 = vunpack.c.l.b16 %v55
    %v237 = vunpack.c.h.b16 %v55
    %v238 = vunpack.c.l.b16 %v56
    %v239 = vunpack.c.h.b16 %v56
    %v240 = vunpack.c.l.b16 %v57
    %v241 = vunpack.c.h.b16 %v57
    %v242 = vunpack.c.l.b16 %v58
    %v243 = vunpack.c.h.b16 %v58
    %v244 = vunpack.c.l.b16 %v59
    %v245 = vunpack.c.h.b16 %v59
    %v246 = vunpack.c.l.b16 %v60
    %v247 = vunpack.c.h.b16 %v60
    %v248 = vpack.c.b16 %v224, %v222
    %v249 = vpack.c.b16 %v225, %v223
    %v250 = vpack.c.b16 %v228, %v226
    %v251 = vpack.c.b16 %v229, %v227
    %v252 = vpack.c.b16 %v232, %v230
    %v253 = vpack.c.b16 %v233, %v231
    %v254 = vpack.c.b16 %v236, %v234
    %v255 = vpack.c.b16 %v237, %v235
    %v256 = vpack.c.b16 %v240, %v238
    %v257 = vpack.c.b16 %v241, %v239
    %v258 = vpack.c.b16 %v244, %v242
    %v259 = vpack.c.b16 %v245, %v243
    %v260 = vpack.c.b16 %v246, %v246
    %v261 = vpack.c.b16 %v247, %v247
    %v275 = vsel %vm150, %v208, 0
    %v278 = vsel %vm154, %v260, 0
    %v281 = vsel %vm154, %v261, 0
    %283 = vmatprep.subr.bf16.mxu0 %v249
    %284 = vmatpush1.bf16.msra.mxu0 %v248
    %285 = vmatprep.subr.bf16.mxu0 %v251
    %286 = vmatpush1.bf16.msra.mxu0 %v250
    %287 = vmatprep.subr.bf16.mxu0 %v253
    %288 = vmatpush1.bf16.msra.mxu0 %v252
    %289 = vmatprep.subr.bf16.mxu0 %v255
    %290 = vmatpush1.bf16.msra.mxu0 %v254
    %291 = vmatprep.subr.bf16.mxu0 %v257
    %292 = vmatpush1.bf16.msra.mxu0 %v256
    %293 = vmatprep.subr.bf16.mxu0 %v259
    %294 = vmatpush1.bf16.msra.mxu0 %v258
    %295 = vmatprep.subr.bf16.mxu0 %v281
    %296 = vmatpush1.bf16.msra.mxu0 %v278
    %297 = vmatprep.subr.bf16.mxu0 0
    %298 = vmatpush1.bf16.msra.mxu0 0
    %299 = vmatprep.subr.bf16.mxu0 0
    %300 = vmatpush1.bf16.msra.mxu0 0
    %301 = vmatprep.subr.bf16.mxu0 0
    %302 = vmatpush1.bf16.msra.mxu0 0
    %303 = vmatprep.subr.bf16.mxu0 0
    %304 = vmatpush1.bf16.msra.mxu0 0
    %305 = vmatprep.subr.bf16.mxu0 0
    %306 = vmatpush1.bf16.msra.mxu0 0
    %307 = vmatprep.subr.bf16.mxu0 0
    %308 = vmatpush1.bf16.msra.mxu0 0
    %309 = vmatprep.subr.bf16.mxu0 0
    %310 = vmatpush1.bf16.msra.mxu0 0
    %311 = vmatprep.subr.bf16.mxu0 0
    %312 = vmatpush1.bf16.msra.mxu0 0
    %313 = vmatprep.subr.bf16.mxu0 0
    %314 = vmatpush1.bf16.msra.mxu0 0
    %315 = vmatprep.mubr.bf16.mxu0 0
    %316 = vmatmul.mubr.bf16.gmra.mrb[0].mxu0 %v275
    %v317 = vpop.f32.mrb[0].mxu0
    %v318 = vadd.f32 %v196, %v317
    %v319 = vpop.f32.mrb[0].mxu0
    %v320 = vadd.f32 %v198, %v319
    %v321 = vpop.f32.mrb[0].mxu0
    %v322 = vadd.f32 %v200, %v321
    %v323 = vpop.f32.mrb[0].mxu0
    %v324 = vadd.f32 %v202, %v323
    %325 = vdwg.mxu0
    %v326 = vmax.f32 %v318, -3e+09
    %v327 = vmax.f32 %v320, -3e+09
    %v328 = vmax.f32 %v322, -3e+09
    %v329 = vmax.f32 %v324, -3e+09
    %v343 = vunpack.c.l.b16 %v34
    %v344 = vunpack.c.h.b16 %v34
    %v345 = vunpack.c.l.b16 %v35
    %v346 = vunpack.c.h.b16 %v35
    %v347 = vunpack.c.l.b16 %v36
    %v348 = vunpack.c.h.b16 %v36
    %v349 = vunpack.c.l.b16 %v37
    %v350 = vunpack.c.h.b16 %v37
    %v351 = vunpack.c.l.b16 %v38
    %v352 = vunpack.c.h.b16 %v38
    %v353 = vunpack.c.l.b16 %v39
    %v354 = vunpack.c.h.b16 %v39
    %v355 = vunpack.c.l.b16 %v40
    %v356 = vunpack.c.h.b16 %v40
    %v357 = vunpack.c.l.b16 %v41
    %v358 = vunpack.c.h.b16 %v41
    %v359 = vunpack.c.l.b16 %v42
    %v360 = vunpack.c.h.b16 %v42
    %v361 = vunpack.c.l.b16 %v43
    %v362 = vunpack.c.h.b16 %v43
    %v363 = vunpack.c.l.b16 %v44
    %v364 = vunpack.c.h.b16 %v44
    %v365 = vunpack.c.l.b16 %v45
    %v366 = vunpack.c.h.b16 %v45
    %v367 = vunpack.c.l.b16 %v46
    %v368 = vunpack.c.h.b16 %v46
    %v369 = vpack.c.b16 %v345, %v343
    %v370 = vpack.c.b16 %v346, %v344
    %v371 = vpack.c.b16 %v349, %v347
    %v372 = vpack.c.b16 %v350, %v348
    %v373 = vpack.c.b16 %v353, %v351
    %v374 = vpack.c.b16 %v354, %v352
    %v375 = vpack.c.b16 %v357, %v355
    %v376 = vpack.c.b16 %v358, %v356
    %v377 = vpack.c.b16 %v361, %v359
    %v378 = vpack.c.b16 %v362, %v360
    %v379 = vpack.c.b16 %v365, %v363
    %v380 = vpack.c.b16 %v366, %v364
    %v381 = vpack.c.b16 %v367, %v367
    %v382 = vpack.c.b16 %v368, %v368
    %v396 = vsel %vm154, %v381, 0
    %v399 = vsel %vm154, %v382, 0
    %401 = vmatprep.subr.bf16.mxu0 %v370
    %402 = vmatpush1.bf16.msra.mxu0 %v369
    %403 = vmatprep.subr.bf16.mxu0 %v372
    %404 = vmatpush1.bf16.msra.mxu0 %v371
    %405 = vmatprep.subr.bf16.mxu0 %v374
    %406 = vmatpush1.bf16.msra.mxu0 %v373
    %407 = vmatprep.subr.bf16.mxu0 %v376
    %408 = vmatpush1.bf16.msra.mxu0 %v375
    %409 = vmatprep.subr.bf16.mxu0 %v378
    %410 = vmatpush1.bf16.msra.mxu0 %v377
    %411 = vmatprep.subr.bf16.mxu0 %v380
    %412 = vmatpush1.bf16.msra.mxu0 %v379
    %413 = vmatprep.subr.bf16.mxu0 %v399
    %414 = vmatpush1.bf16.msra.mxu0 %v396
    %415 = vmatprep.subr.bf16.mxu0 0
    %416 = vmatpush1.bf16.msra.mxu0 0
    %417 = vmatprep.subr.bf16.mxu0 0
    %418 = vmatpush1.bf16.msra.mxu0 0
    %419 = vmatprep.subr.bf16.mxu0 0
    %420 = vmatpush1.bf16.msra.mxu0 0
    %421 = vmatprep.subr.bf16.mxu0 0
    %422 = vmatpush1.bf16.msra.mxu0 0
    %423 = vmatprep.subr.bf16.mxu0 0
    %424 = vmatpush1.bf16.msra.mxu0 0
    %425 = vmatprep.subr.bf16.mxu0 0
    %426 = vmatpush1.bf16.msra.mxu0 0
    %427 = vmatprep.subr.bf16.mxu0 0
    %428 = vmatpush1.bf16.msra.mxu0 0
    %429 = vmatprep.subr.bf16.mxu0 0
    %430 = vmatpush1.bf16.msra.mxu0 0
    %431 = vmatprep.subr.bf16.mxu0 0
    %432 = vmatpush1.bf16.msra.mxu0 0
    %433 = vmatprep.mubr.bf16.mxu0 0
    %434 = vmatmul.mubr.bf16.gmra.mrb[0].mxu0 %v275
    %v435 = vpop.f32.mrb[0].mxu0
    %v436 = vadd.f32 0.0, %v435
    %v437 = vpop.f32.mrb[0].mxu0
    %v438 = vadd.f32 0.0, %v437
    %v439 = vpop.f32.mrb[0].mxu0
    %v440 = vadd.f32 0.0, %v439
    %v441 = vpop.f32.mrb[0].mxu0
    %v442 = vadd.f32 0.0, %v441
    %443 = vdwg.mxu0
    %444 = vmatprep.subr.bf16.mxu0 %v249
    %445 = vmatpush1.bf16.msra.mxu0 %v248
    %446 = vmatprep.subr.bf16.mxu0 %v251
    %447 = vmatpush1.bf16.msra.mxu0 %v250
    %448 = vmatprep.subr.bf16.mxu0 %v253
    %449 = vmatpush1.bf16.msra.mxu0 %v252
    %450 = vmatprep.subr.bf16.mxu0 %v255
    %451 = vmatpush1.bf16.msra.mxu0 %v254
    %452 = vmatprep.subr.bf16.mxu0 %v257
    %453 = vmatpush1.bf16.msra.mxu0 %v256
    %454 = vmatprep.subr.bf16.mxu0 %v259
    %455 = vmatpush1.bf16.msra.mxu0 %v258
    %456 = vmatprep.subr.bf16.mxu0 %v281
    %457 = vmatpush1.bf16.msra.mxu0 %v278
    %458 = vmatprep.subr.bf16.mxu0 0
    %459 = vmatpush1.bf16.msra.mxu0 0
    %460 = vmatprep.subr.bf16.mxu0 0
    %461 = vmatpush1.bf16.msra.mxu0 0
    %462 = vmatprep.subr.bf16.mxu0 0
    %463 = vmatpush1.bf16.msra.mxu0 0
    %464 = vmatprep.subr.bf16.mxu0 0
    %465 = vmatpush1.bf16.msra.mxu0 0
    %466 = vmatprep.subr.bf16.mxu0 0
    %467 = vmatpush1.bf16.msra.mxu0 0
    %468 = vmatprep.subr.bf16.mxu0 0
    %469 = vmatpush1.bf16.msra.mxu0 0
    %470 = vmatprep.subr.bf16.mxu0 0
    %471 = vmatpush1.bf16.msra.mxu0 0
    %472 = vmatprep.subr.bf16.mxu0 0
    %473 = vmatpush1.bf16.msra.mxu0 0
    %474 = vmatprep.subr.bf16.mxu0 0
    %475 = vmatpush1.bf16.msra.mxu0 0
    %476 = vmatprep.mubr.bf16.mxu0 0
    %477 = vmatmul.mubr.bf16.gmra.mrb[0].mxu0 %v152
    %v478 = vpop.f32.mrb[0].mxu0
    %v479 = vadd.f32 %v436, %v478
    %v480 = vpop.f32.mrb[0].mxu0
    %v481 = vadd.f32 %v438, %v480
    %v482 = vpop.f32.mrb[0].mxu0
    %v483 = vadd.f32 %v440, %v482
    %v484 = vpop.f32.mrb[0].mxu0
    %v485 = vadd.f32 %v442, %v484
    %486 = vdwg.mxu0
    %s487 = scalar_lea.vmem %s0, 16
    %v488 = vld [vmem:[%s487] sm:$0xf]
    %v489 = vld [vmem:[%s487 + $0x4] sm:$0xf]
    %v492 = vunpack.c.l.b16 %v488
    %v493 = vunpack.c.l.b16 %v489
    %v494 = vpack.c.b16 %v493, %v492
    %v496 = vsel %vm150, %v494, 0
    %498 = vmatprep.subr.bf16.mxu0 %v125
    %499 = vmatpush1.bf16.msra.mxu0 %v124
    %500 = vmatprep.subr.bf16.mxu0 %v127
    %501 = vmatpush1.bf16.msra.mxu0 %v126
    %502 = vmatprep.subr.bf16.mxu0 %v129
    %503 = vmatpush1.bf16.msra.mxu0 %v128
    %504 = vmatprep.subr.bf16.mxu0 %v131
    %505 = vmatpush1.bf16.msra.mxu0 %v130
    %506 = vmatprep.subr.bf16.mxu0 %v133
    %507 = vmatpush1.bf16.msra.mxu0 %v132
    %508 = vmatprep.subr.bf16.mxu0 %v135
    %509 = vmatpush1.bf16.msra.mxu0 %v134
    %510 = vmatprep.subr.bf16.mxu0 %v159
    %511 = vmatpush1.bf16.msra.mxu0 %v156
    %512 = vmatprep.subr.bf16.mxu0 0
    %513 = vmatpush1.bf16.msra.mxu0 0
    %514 = vmatprep.subr.bf16.mxu0 0
    %515 = vmatpush1.bf16.msra.mxu0 0
    %516 = vmatprep.subr.bf16.mxu0 0
    %517 = vmatpush1.bf16.msra.mxu0 0
    %518 = vmatprep.subr.bf16.mxu0 0
    %519 = vmatpush1.bf16.msra.mxu0 0
    %520 = vmatprep.subr.bf16.mxu0 0
    %521 = vmatpush1.bf16.msra.mxu0 0
    %522 = vmatprep.subr.bf16.mxu0 0
    %523 = vmatpush1.bf16.msra.mxu0 0
    %524 = vmatprep.subr.bf16.mxu0 0
    %525 = vmatpush1.bf16.msra.mxu0 0
    %526 = vmatprep.subr.bf16.mxu0 0
    %527 = vmatpush1.bf16.msra.mxu0 0
    %528 = vmatprep.subr.bf16.mxu0 0
    %529 = vmatpush1.bf16.msra.mxu0 0
    %530 = vmatprep.mubr.bf16.mxu0 0
    %531 = vmatmul.mubr.bf16.gmra.mrb[0].mxu0 %v496
    %v532 = vpop.f32.mrb[0].mxu0
    %v533 = vadd.f32 0.0, %v532
    %v534 = vpop.f32.mrb[0].mxu0
    %v535 = vadd.f32 0.0, %v534
    %v536 = vpop.f32.mrb[0].mxu0
    %v537 = vadd.f32 0.0, %v536
    %v538 = vpop.f32.mrb[0].mxu0
    %v539 = vadd.f32 0.0, %v538
    %540 = vdwg.mxu0
    %v541 = vadd.f32 %v479, %v533
    %v542 = vadd.f32 %v481, %v535
    %v543 = vadd.f32 %v483, %v537
    %v544 = vadd.f32 %v485, %v539
    %v545 = vmax.f32 %v326, %v541
    %v546 = vmax.f32 %v327, %v542
    %v547 = vmax.f32 %v328, %v543
    %v548 = vmax.f32 %v329, %v544
    %549 = vmatprep.subr.bf16.mxu0 %v370
    %550 = vmatpush1.bf16.msra.mxu0 %v369
    %551 = vmatprep.subr.bf16.mxu0 %v372
    %552 = vmatpush1.bf16.msra.mxu0 %v371
    %553 = vmatprep.subr.bf16.mxu0 %v374
    %554 = vmatpush1.bf16.msra.mxu0 %v373
    %555 = vmatprep.subr.bf16.mxu0 %v376
    %556 = vmatpush1.bf16.msra.mxu0 %v375
    %557 = vmatprep.subr.bf16.mxu0 %v378
    %558 = vmatpush1.bf16.msra.mxu0 %v377
    %559 = vmatprep.subr.bf16.mxu0 %v380
    %560 = vmatpush1.bf16.msra.mxu0 %v379
    %561 = vmatprep.subr.bf16.mxu0 %v399
    %562 = vmatpush1.bf16.msra.mxu0 %v396
    %563 = vmatprep.subr.bf16.mxu0 0
    %564 = vmatpush1.bf16.msra.mxu0 0
    %565 = vmatprep.subr.bf16.mxu0 0
    %566 = vmatpush1.bf16.msra.mxu0 0
    %567 = vmatprep.subr.bf16.mxu0 0
    %568 = vmatpush1.bf16.msra.mxu0 0
    %569 = vmatprep.subr.bf16.mxu0 0
    %570 = vmatpush1.bf16.msra.mxu0 0
    %571 = vmatprep.subr.bf16.mxu0 0
    %572 = vmatpush1.bf16.msra.mxu0 0
    %573 = vmatprep.subr.bf16.mxu0 0
    %574 = vmatpush1.bf16.msra.mxu0 0
    %575 = vmatprep.subr.bf16.mxu0 0
    %576 = vmatpush1.bf16.msra.mxu0 0
    %577 = vmatprep.subr.bf16.mxu0 0
    %578 = vmatpush1.bf16.msra.mxu0 0
    %579 = vmatprep.subr.bf16.mxu0 0
    %580 = vmatpush1.bf16.msra.mxu0 0
    %581 = vmatprep.mubr.bf16.mxu0 0
    %582 = vmatmul.mubr.bf16.gmra.mrb[0].mxu0 %v152
    %v583 = vpop.f32.mrb[0].mxu0
    %v584 = vadd.f32 0.0, %v583
    %v585 = vpop.f32.mrb[0].mxu0
    %v586 = vadd.f32 0.0, %v585
    %v587 = vpop.f32.mrb[0].mxu0
    %v588 = vadd.f32 0.0, %v587
    %v589 = vpop.f32.mrb[0].mxu0
    %v590 = vadd.f32 0.0, %v589
    %591 = vdwg.mxu0
    %592 = vmatprep.subr.bf16.mxu0 %v249
    %593 = vmatpush1.bf16.msra.mxu0 %v248
    %594 = vmatprep.subr.bf16.mxu0 %v251
    %595 = vmatpush1.bf16.msra.mxu0 %v250
    %596 = vmatprep.subr.bf16.mxu0 %v253
    %597 = vmatpush1.bf16.msra.mxu0 %v252
    %598 = vmatprep.subr.bf16.mxu0 %v255
    %599 = vmatpush1.bf16.msra.mxu0 %v254
    %600 = vmatprep.subr.bf16.mxu0 %v257
    %601 = vmatpush1.bf16.msra.mxu0 %v256
    %602 = vmatprep.subr.bf16.mxu0 %v259
    %603 = vmatpush1.bf16.msra.mxu0 %v258
    %604 = vmatprep.subr.bf16.mxu0 %v281
    %605 = vmatpush1.bf16.msra.mxu0 %v278
    %606 = vmatprep.subr.bf16.mxu0 0
    %607 = vmatpush1.bf16.msra.mxu0 0
    %608 = vmatprep.subr.bf16.mxu0 0
    %609 = vmatpush1.bf16.msra.mxu0 0
    %610 = vmatprep.subr.bf16.mxu0 0
    %611 = vmatpush1.bf16.msra.mxu0 0
    %612 = vmatprep.subr.bf16.mxu0 0
    %613 = vmatpush1.bf16.msra.mxu0 0
    %614 = vmatprep.subr.bf16.mxu0 0
    %615 = vmatpush1.bf16.msra.mxu0 0
    %616 = vmatprep.subr.bf16.mxu0 0
    %617 = vmatpush1.bf16.msra.mxu0 0
    %618 = vmatprep.subr.bf16.mxu0 0
    %619 = vmatpush1.bf16.msra.mxu0 0
    %620 = vmatprep.subr.bf16.mxu0 0
    %621 = vmatpush1.bf16.msra.mxu0 0
    %622 = vmatprep.subr.bf16.mxu0 0
    %623 = vmatpush1.bf16.msra.mxu0 0
    %624 = vmatprep.mubr.bf16.mxu0 0
    %625 = vmatmul.mubr.bf16.gmra.mrb[0].mxu0 %v496
    %v626 = vpop.f32.mrb[0].mxu0
    %v627 = vadd.f32 %v584, %v626
    %v628 = vpop.f32.mrb[0].mxu0
    %v629 = vadd.f32 %v586, %v628
    %v630 = vpop.f32.mrb[0].mxu0
    %v631 = vadd.f32 %v588, %v630
    %v632 = vpop.f32.mrb[0].mxu0
    %v633 = vadd.f32 %v590, %v632
    %634 = vdwg.mxu0
    %s635 = scalar_lea.vmem %s0, 24
    %v636 = vld [vmem:[%s635] sm:$0xf]
    %v637 = vld [vmem:[%s635 + $0x4] sm:$0xf]
    %v640 = vunpack.c.l.b16 %v636
    %v641 = vunpack.c.l.b16 %v637
    %v642 = vpack.c.b16 %v641, %v640
    %v644 = vsel %vm150, %v642, 0
    %646 = vmatprep.subr.bf16.mxu0 %v125
    %647 = vmatpush1.bf16.msra.mxu0 %v124
    %648 = vmatprep.subr.bf16.mxu0 %v127
    %649 = vmatpush1.bf16.msra.mxu0 %v126
    %650 = vmatprep.subr.bf16.mxu0 %v129
    %651 = vmatpush1.bf16.msra.mxu0 %v128
    %652 = vmatprep.subr.bf16.mxu0 %v131
    %653 = vmatpush1.bf16.msra.mxu0 %v130
    %654 = vmatprep.subr.bf16.mxu0 %v133
    %655 = vmatpush1.bf16.msra.mxu0 %v132
    %656 = vmatprep.subr.bf16.mxu0 %v135
    %657 = vmatpush1.bf16.msra.mxu0 %v134
    %658 = vmatprep.subr.bf16.mxu0 %v159
    %659 = vmatpush1.bf16.msra.mxu0 %v156
    %660 = vmatprep.subr.bf16.mxu0 0
    %661 = vmatpush1.bf16.msra.mxu0 0
    %662 = vmatprep.subr.bf16.mxu0 0
    %663 = vmatpush1.bf16.msra.mxu0 0
    %664 = vmatprep.subr.bf16.mxu0 0
    %665 = vmatpush1.bf16.msra.mxu0 0
    %666 = vmatprep.subr.bf16.mxu0 0
    %667 = vmatpush1.bf16.msra.mxu0 0
    %668 = vmatprep.subr.bf16.mxu0 0
    %669 = vmatpush1.bf16.msra.mxu0 0
    %670 = vmatprep.subr.bf16.mxu0 0
    %671 = vmatpush1.bf16.msra.mxu0 0
    %672 = vmatprep.subr.bf16.mxu0 0
    %673 = vmatpush1.bf16.msra.mxu0 0
    %674 = vmatprep.subr.bf16.mxu0 0
    %675 = vmatpush1.bf16.msra.mxu0 0
    %676 = vmatprep.subr.bf16.mxu0 0
    %677 = vmatpush1.bf16.msra.mxu0 0
    %678 = vmatprep.mubr.bf16.mxu0 0
    %679 = vmatmul.mubr.bf16.gmra.mrb[0].mxu0 %v644
    %v680 = vpop.f32.mrb[0].mxu0
    %v681 = vadd.f32 0.0, %v680
    %v682 = vpop.f32.mrb[0].mxu0
    %v683 = vadd.f32 0.0, %v682
    %v684 = vpop.f32.mrb[0].mxu0
    %v685 = vadd.f32 0.0, %v684
    %v686 = vpop.f32.mrb[0].mxu0
    %v687 = vadd.f32 0.0, %v686
    %688 = vdwg.mxu0
    %v689 = vadd.f32 %v627, %v681
    %v690 = vadd.f32 %v629, %v683
    %v691 = vadd.f32 %v631, %v685
    %v692 = vadd.f32 %v633, %v687
    %v693 = vmax.f32 %v545, %v689
    %v694 = vmax.f32 %v546, %v690
    %v695 = vmax.f32 %v547, %v691
    %v696 = vmax.f32 %v548, %v692
    %697 = vmatprep.subr.bf16.mxu0 %v370
    %698 = vmatpush1.bf16.msra.mxu0 %v369
    %699 = vmatprep.subr.bf16.mxu0 %v372
    %700 = vmatpush1.bf16.msra.mxu0 %v371
    %701 = vmatprep.subr.bf16.mxu0 %v374
    %702 = vmatpush1.bf16.msra.mxu0 %v373
    %703 = vmatprep.subr.bf16.mxu0 %v376
    %704 = vmatpush1.bf16.msra.mxu0 %v375
    %705 = vmatprep.subr.bf16.mxu0 %v378
    %706 = vmatpush1.bf16.msra.mxu0 %v377
    %707 = vmatprep.subr.bf16.mxu0 %v380
    %708 = vmatpush1.bf16.msra.mxu0 %v379
    %709 = vmatprep.subr.bf16.mxu0 %v399
    %710 = vmatpush1.bf16.msra.mxu0 %v396
    %711 = vmatprep.subr.bf16.mxu0 0
    %712 = vmatpush1.bf16.msra.mxu0 0
    %713 = vmatprep.subr.bf16.mxu0 0
    %714 = vmatpush1.bf16.msra.mxu0 0
    %715 = vmatprep.subr.bf16.mxu0 0
    %716 = vmatpush1.bf16.msra.mxu0 0
    %717 = vmatprep.subr.bf16.mxu0 0
    %718 = vmatpush1.bf16.msra.mxu0 0
    %719 = vmatprep.subr.bf16.mxu0 0
    %720 = vmatpush1.bf16.msra.mxu0 0
    %721 = vmatprep.subr.bf16.mxu0 0
    %722 = vmatpush1.bf16.msra.mxu0 0
    %723 = vmatprep.subr.bf16.mxu0 0
    %724 = vmatpush1.bf16.msra.mxu0 0
    %725 = vmatprep.subr.bf16.mxu0 0
    %726 = vmatpush1.bf16.msra.mxu0 0
    %727 = vmatprep.subr.bf16.mxu0 0
    %728 = vmatpush1.bf16.msra.mxu0 0
    %729 = vmatprep.mubr.bf16.mxu0 0
    %730 = vmatmul.mubr.bf16.gmra.mrb[0].mxu0 %v496
    %v731 = vpop.f32.mrb[0].mxu0
    %v732 = vadd.f32 0.0, %v731
    %v733 = vpop.f32.mrb[0].mxu0
    %v734 = vadd.f32 0.0, %v733
    %v735 = vpop.f32.mrb[0].mxu0
    %v736 = vadd.f32 0.0, %v735
    %v737 = vpop.f32.mrb[0].mxu0
    %v738 = vadd.f32 0.0, %v737
    %739 = vdwg.mxu0
    %740 = vmatprep.subr.bf16.mxu0 %v249
    %741 = vmatpush1.bf16.msra.mxu0 %v248
    %742 = vmatprep.subr.bf16.mxu0 %v251
    %743 = vmatpush1.bf16.msra.mxu0 %v250
    %744 = vmatprep.subr.bf16.mxu0 %v253
    %745 = vmatpush1.bf16.msra.mxu0 %v252
    %746 = vmatprep.subr.bf16.mxu0 %v255
    %747 = vmatpush1.bf16.msra.mxu0 %v254
    %748 = vmatprep.subr.bf16.mxu0 %v257
    %749 = vmatpush1.bf16.msra.mxu0 %v256
    %750 = vmatprep.subr.bf16.mxu0 %v259
    %751 = vmatpush1.bf16.msra.mxu0 %v258
    %752 = vmatprep.subr.bf16.mxu0 %v281
    %753 = vmatpush1.bf16.msra.mxu0 %v278
    %754 = vmatprep.subr.bf16.mxu0 0
    %755 = vmatpush1.bf16.msra.mxu0 0
    %756 = vmatprep.subr.bf16.mxu0 0
    %757 = vmatpush1.bf16.msra.mxu0 0
    %758 = vmatprep.subr.bf16.mxu0 0
    %759 = vmatpush1.bf16.msra.mxu0 0
    %760 = vmatprep.subr.bf16.mxu0 0
    %761 = vmatpush1.bf16.msra.mxu0 0
    %762 = vmatprep.subr.bf16.mxu0 0
    %763 = vmatpush1.bf16.msra.mxu0 0
    %764 = vmatprep.subr.bf16.mxu0 0
    %765 = vmatpush1.bf16.msra.mxu0 0
    %766 = vmatprep.subr.bf16.mxu0 0
    %767 = vmatpush1.bf16.msra.mxu0 0
    %768 = vmatprep.subr.bf16.mxu0 0
    %769 = vmatpush1.bf16.msra.mxu0 0
    %770 = vmatprep.subr.bf16.mxu0 0
    %771 = vmatpush1.bf16.msra.mxu0 0
    %772 = vmatprep.mubr.bf16.mxu0 0
    %773 = vmatmul.mubr.bf16.gmra.mrb[0].mxu0 %v644
    %v774 = vpop.f32.mrb[0].mxu0
    %v775 = vadd.f32 %v732, %v774
    %v776 = vpop.f32.mrb[0].mxu0
    %v777 = vadd.f32 %v734, %v776
    %v778 = vpop.f32.mrb[0].mxu0
    %v779 = vadd.f32 %v736, %v778
    %v780 = vpop.f32.mrb[0].mxu0
    %v781 = vadd.f32 %v738, %v780
    %782 = vdwg.mxu0
    %s783 = scalar_lea.vmem %s0, 32
    %v784 = vld [vmem:[%s783] sm:$0xf]
    %v785 = vld [vmem:[%s783 + $0x4] sm:$0xf]
    %v788 = vunpack.c.l.b16 %v784
    %v789 = vunpack.c.l.b16 %v785
    %v790 = vpack.c.b16 %v789, %v788
    %v792 = vsel %vm150, %v790, 0
    %794 = vmatprep.subr.bf16.mxu0 %v125
    %795 = vmatpush1.bf16.msra.mxu0 %v124
    %796 = vmatprep.subr.bf16.mxu0 %v127
    %797 = vmatpush1.bf16.msra.mxu0 %v126
    %798 = vmatprep.subr.bf16.mxu0 %v129
    %799 = vmatpush1.bf16.msra.mxu0 %v128
    %800 = vmatprep.subr.bf16.mxu0 %v131
    %801 = vmatpush1.bf16.msra.mxu0 %v130
    %802 = vmatprep.subr.bf16.mxu0 %v133
    %803 = vmatpush1.bf16.msra.mxu0 %v132
    %804 = vmatprep.subr.bf16.mxu0 %v135
    %805 = vmatpush1.bf16.msra.mxu0 %v134
    %806 = vmatprep.subr.bf16.mxu0 %v159
    %807 = vmatpush1.bf16.msra.mxu0 %v156
    %808 = vmatprep.subr.bf16.mxu0 0
    %809 = vmatpush1.bf16.msra.mxu0 0
    %810 = vmatprep.subr.bf16.mxu0 0
    %811 = vmatpush1.bf16.msra.mxu0 0
    %812 = vmatprep.subr.bf16.mxu0 0
    %813 = vmatpush1.bf16.msra.mxu0 0
    %814 = vmatprep.subr.bf16.mxu0 0
    %815 = vmatpush1.bf16.msra.mxu0 0
    %816 = vmatprep.subr.bf16.mxu0 0
    %817 = vmatpush1.bf16.msra.mxu0 0
    %818 = vmatprep.subr.bf16.mxu0 0
    %819 = vmatpush1.bf16.msra.mxu0 0
    %820 = vmatprep.subr.bf16.mxu0 0
    %821 = vmatpush1.bf16.msra.mxu0 0
    %822 = vmatprep.subr.bf16.mxu0 0
    %823 = vmatpush1.bf16.msra.mxu0 0
    %824 = vmatprep.subr.bf16.mxu0 0
    %825 = vmatpush1.bf16.msra.mxu0 0
    %826 = vmatprep.mubr.bf16.mxu0 0
    %827 = vmatmul.mubr.bf16.gmra.mrb[0].mxu0 %v792
    %v828 = vpop.f32.mrb[0].mxu0
    %v829 = vadd.f32 0.0, %v828
    %v830 = vpop.f32.mrb[0].mxu0
    %v831 = vadd.f32 0.0, %v830
    %v832 = vpop.f32.mrb[0].mxu0
    %v833 = vadd.f32 0.0, %v832
    %v834 = vpop.f32.mrb[0].mxu0
    %v835 = vadd.f32 0.0, %v834
    %836 = vdwg.mxu0
    %v837 = vadd.f32 %v775, %v829
    %v838 = vadd.f32 %v777, %v831
    %v839 = vadd.f32 %v779, %v833
    %v840 = vadd.f32 %v781, %v835
    %v841 = vmax.f32 %v693, %v837
    %v842 = vmax.f32 %v694, %v838
    %v843 = vmax.f32 %v695, %v839
    %v844 = vmax.f32 %v696, %v840
    %845 = vmatprep.subr.bf16.mxu0 %v370
    %846 = vmatpush1.bf16.msra.mxu0 %v369
    %847 = vmatprep.subr.bf16.mxu0 %v372
    %848 = vmatpush1.bf16.msra.mxu0 %v371
    %849 = vmatprep.subr.bf16.mxu0 %v374
    %850 = vmatpush1.bf16.msra.mxu0 %v373
    %851 = vmatprep.subr.bf16.mxu0 %v376
    %852 = vmatpush1.bf16.msra.mxu0 %v375
    %853 = vmatprep.subr.bf16.mxu0 %v378
    %854 = vmatpush1.bf16.msra.mxu0 %v377
    %855 = vmatprep.subr.bf16.mxu0 %v380
    %856 = vmatpush1.bf16.msra.mxu0 %v379
    %857 = vmatprep.subr.bf16.mxu0 %v399
    %858 = vmatpush1.bf16.msra.mxu0 %v396
    %859 = vmatprep.subr.bf16.mxu0 0
    %860 = vmatpush1.bf16.msra.mxu0 0
    %861 = vmatprep.subr.bf16.mxu0 0
    %862 = vmatpush1.bf16.msra.mxu0 0
    %863 = vmatprep.subr.bf16.mxu0 0
    %864 = vmatpush1.bf16.msra.mxu0 0
    %865 = vmatprep.subr.bf16.mxu0 0
    %866 = vmatpush1.bf16.msra.mxu0 0
    %867 = vmatprep.subr.bf16.mxu0 0
    %868 = vmatpush1.bf16.msra.mxu0 0
    %869 = vmatprep.subr.bf16.mxu0 0
    %870 = vmatpush1.bf16.msra.mxu0 0
    %871 = vmatprep.subr.bf16.mxu0 0
    %872 = vmatpush1.bf16.msra.mxu0 0
    %873 = vmatprep.subr.bf16.mxu0 0
    %874 = vmatpush1.bf16.msra.mxu0 0
    %875 = vmatprep.subr.bf16.mxu0 0
    %876 = vmatpush1.bf16.msra.mxu0 0
    %877 = vmatprep.mubr.bf16.mxu0 0
    %878 = vmatmul.mubr.bf16.gmra.mrb[0].mxu0 %v644
    %v879 = vpop.f32.mrb[0].mxu0
    %v880 = vadd.f32 0.0, %v879
    %v881 = vpop.f32.mrb[0].mxu0
    %v882 = vadd.f32 0.0, %v881
    %v883 = vpop.f32.mrb[0].mxu0
    %v884 = vadd.f32 0.0, %v883
    %v885 = vpop.f32.mrb[0].mxu0
    %v886 = vadd.f32 0.0, %v885
    %887 = vdwg.mxu0
    %888 = vmatprep.subr.bf16.mxu0 %v249
    %889 = vmatpush1.bf16.msra.mxu0 %v248
    %890 = vmatprep.subr.bf16.mxu0 %v251
    %891 = vmatpush1.bf16.msra.mxu0 %v250
    %892 = vmatprep.subr.bf16.mxu0 %v253
    %893 = vmatpush1.bf16.msra.mxu0 %v252
    %894 = vmatprep.subr.bf16.mxu0 %v255
    %895 = vmatpush1.bf16.msra.mxu0 %v254
    %896 = vmatprep.subr.bf16.mxu0 %v257
    %897 = vmatpush1.bf16.msra.mxu0 %v256
    %898 = vmatprep.subr.bf16.mxu0 %v259
    %899 = vmatpush1.bf16.msra.mxu0 %v258
    %900 = vmatprep.subr.bf16.mxu0 %v281
    %901 = vmatpush1.bf16.msra.mxu0 %v278
    %902 = vmatprep.subr.bf16.mxu0 0
    %903 = vmatpush1.bf16.msra.mxu0 0
    %904 = vmatprep.subr.bf16.mxu0 0
    %905 = vmatpush1.bf16.msra.mxu0 0
    %906 = vmatprep.subr.bf16.mxu0 0
    %907 = vmatpush1.bf16.msra.mxu0 0
    %908 = vmatprep.subr.bf16.mxu0 0
    %909 = vmatpush1.bf16.msra.mxu0 0
    %910 = vmatprep.subr.bf16.mxu0 0
    %911 = vmatpush1.bf16.msra.mxu0 0
    %912 = vmatprep.subr.bf16.mxu0 0
    %913 = vmatpush1.bf16.msra.mxu0 0
    %914 = vmatprep.subr.bf16.mxu0 0
    %915 = vmatpush1.bf16.msra.mxu0 0
    %916 = vmatprep.subr.bf16.mxu0 0
    %917 = vmatpush1.bf16.msra.mxu0 0
    %918 = vmatprep.subr.bf16.mxu0 0
    %919 = vmatpush1.bf16.msra.mxu0 0
    %920 = vmatprep.mubr.bf16.mxu0 0
    %921 = vmatmul.mubr.bf16.gmra.mrb[0].mxu0 %v792
    %v922 = vpop.f32.mrb[0].mxu0
    %v923 = vadd.f32 %v880, %v922
    %v924 = vpop.f32.mrb[0].mxu0
    %v925 = vadd.f32 %v882, %v924
    %v926 = vpop.f32.mrb[0].mxu0
    %v927 = vadd.f32 %v884, %v926
    %v928 = vpop.f32.mrb[0].mxu0
    %v929 = vadd.f32 %v886, %v928
    %930 = vdwg.mxu0
    %s931 = scalar_lea.vmem %s0, 40
    %v932 = vld [vmem:[%s931] sm:$0xf]
    %v933 = vld [vmem:[%s931 + $0x4] sm:$0xf]
    %v936 = vunpack.c.l.b16 %v932
    %v937 = vunpack.c.l.b16 %v933
    %v938 = vpack.c.b16 %v937, %v936
    %v940 = vsel %vm150, %v938, 0
    %942 = vmatprep.subr.bf16.mxu0 %v125
    %943 = vmatpush1.bf16.msra.mxu0 %v124
    %944 = vmatprep.subr.bf16.mxu0 %v127
    %945 = vmatpush1.bf16.msra.mxu0 %v126
    %946 = vmatprep.subr.bf16.mxu0 %v129
    %947 = vmatpush1.bf16.msra.mxu0 %v128
    %948 = vmatprep.subr.bf16.mxu0 %v131
    %949 = vmatpush1.bf16.msra.mxu0 %v130
    %950 = vmatprep.subr.bf16.mxu0 %v133
    %951 = vmatpush1.bf16.msra.mxu0 %v132
    %952 = vmatprep.subr.bf16.mxu0 %v135
    %953 = vmatpush1.bf16.msra.mxu0 %v134
    %954 = vmatprep.subr.bf16.mxu0 %v159
    %955 = vmatpush1.bf16.msra.mxu0 %v156
    %956 = vmatprep.subr.bf16.mxu0 0
    %957 = vmatpush1.bf16.msra.mxu0 0
    %958 = vmatprep.subr.bf16.mxu0 0
    %959 = vmatpush1.bf16.msra.mxu0 0
    %960 = vmatprep.subr.bf16.mxu0 0
    %961 = vmatpush1.bf16.msra.mxu0 0
    %962 = vmatprep.subr.bf16.mxu0 0
    %963 = vmatpush1.bf16.msra.mxu0 0
    %964 = vmatprep.subr.bf16.mxu0 0
    %965 = vmatpush1.bf16.msra.mxu0 0
    %966 = vmatprep.subr.bf16.mxu0 0
    %967 = vmatpush1.bf16.msra.mxu0 0
    %968 = vmatprep.subr.bf16.mxu0 0
    %969 = vmatpush1.bf16.msra.mxu0 0
    %970 = vmatprep.subr.bf16.mxu0 0
    %971 = vmatpush1.bf16.msra.mxu0 0
    %972 = vmatprep.subr.bf16.mxu0 0
    %973 = vmatpush1.bf16.msra.mxu0 0
    %974 = vmatprep.mubr.bf16.mxu0 0
    %975 = vmatmul.mubr.bf16.gmra.mrb[0].mxu0 %v940
    %v976 = vpop.f32.mrb[0].mxu0
    %v977 = vadd.f32 0.0, %v976
    %v978 = vpop.f32.mrb[0].mxu0
    %v979 = vadd.f32 0.0, %v978
    %v980 = vpop.f32.mrb[0].mxu0
    %v981 = vadd.f32 0.0, %v980
    %v982 = vpop.f32.mrb[0].mxu0
    %v983 = vadd.f32 0.0, %v982
    %984 = vdwg.mxu0
    %v985 = vadd.f32 %v923, %v977
    %v986 = vadd.f32 %v925, %v979
    %v987 = vadd.f32 %v927, %v981
    %v988 = vadd.f32 %v929, %v983
    %v989 = vmax.f32 %v841, %v985
    %v990 = vmax.f32 %v842, %v986
    %v991 = vmax.f32 %v843, %v987
    %v992 = vmax.f32 %v844, %v988
    %993 = vmatprep.subr.bf16.mxu0 %v370
    %994 = vmatpush1.bf16.msra.mxu0 %v369
    %995 = vmatprep.subr.bf16.mxu0 %v372
    %996 = vmatpush1.bf16.msra.mxu0 %v371
    %997 = vmatprep.subr.bf16.mxu0 %v374
    %998 = vmatpush1.bf16.msra.mxu0 %v373
    %999 = vmatprep.subr.bf16.mxu0 %v376
    %1000 = vmatpush1.bf16.msra.mxu0 %v375
    %1001 = vmatprep.subr.bf16.mxu0 %v378
    %1002 = vmatpush1.bf16.msra.mxu0 %v377
    %1003 = vmatprep.subr.bf16.mxu0 %v380
    %1004 = vmatpush1.bf16.msra.mxu0 %v379
    %1005 = vmatprep.subr.bf16.mxu0 %v399
    %1006 = vmatpush1.bf16.msra.mxu0 %v396
    %1007 = vmatprep.subr.bf16.mxu0 0
    %1008 = vmatpush1.bf16.msra.mxu0 0
    %1009 = vmatprep.subr.bf16.mxu0 0
    %1010 = vmatpush1.bf16.msra.mxu0 0
    %1011 = vmatprep.subr.bf16.mxu0 0
    %1012 = vmatpush1.bf16.msra.mxu0 0
    %1013 = vmatprep.subr.bf16.mxu0 0
    %1014 = vmatpush1.bf16.msra.mxu0 0
    %1015 = vmatprep.subr.bf16.mxu0 0
    %1016 = vmatpush1.bf16.msra.mxu0 0
    %1017 = vmatprep.subr.bf16.mxu0 0
    %1018 = vmatpush1.bf16.msra.mxu0 0
    %1019 = vmatprep.subr.bf16.mxu0 0
    %1020 = vmatpush1.bf16.msra.mxu0 0
    %1021 = vmatprep.subr.bf16.mxu0 0
    %1022 = vmatpush1.bf16.msra.mxu0 0
    %1023 = vmatprep.subr.bf16.mxu0 0
    %1024 = vmatpush1.bf16.msra.mxu0 0
    %1025 = vmatprep.mubr.bf16.mxu0 0
    %1026 = vmatmul.mubr.bf16.gmra.mrb[0].mxu0 %v792
    %v1027 = vpop.f32.mrb[0].mxu0
    %v1028 = vadd.f32 0.0, %v1027
    %v1029 = vpop.f32.mrb[0].mxu0
    %v1030 = vadd.f32 0.0, %v1029
    %v1031 = vpop.f32.mrb[0].mxu0
    %v1032 = vadd.f32 0.0, %v1031
    %v1033 = vpop.f32.mrb[0].mxu0
    %v1034 = vadd.f32 0.0, %v1033
    %1035 = vdwg.mxu0
    %1036 = vmatprep.subr.bf16.mxu0 %v249
    %1037 = vmatpush1.bf16.msra.mxu0 %v248
    %1038 = vmatprep.subr.bf16.mxu0 %v251
    %1039 = vmatpush1.bf16.msra.mxu0 %v250
    %1040 = vmatprep.subr.bf16.mxu0 %v253
    %1041 = vmatpush1.bf16.msra.mxu0 %v252
    %1042 = vmatprep.subr.bf16.mxu0 %v255
    %1043 = vmatpush1.bf16.msra.mxu0 %v254
    %1044 = vmatprep.subr.bf16.mxu0 %v257
    %1045 = vmatpush1.bf16.msra.mxu0 %v256
    %1046 = vmatprep.subr.bf16.mxu0 %v259
    %1047 = vmatpush1.bf16.msra.mxu0 %v258
    %1048 = vmatprep.subr.bf16.mxu0 %v281
    %1049 = vmatpush1.bf16.msra.mxu0 %v278
    %1050 = vmatprep.subr.bf16.mxu0 0
    %1051 = vmatpush1.bf16.msra.mxu0 0
    %1052 = vmatprep.subr.bf16.mxu0 0
    %1053 = vmatpush1.bf16.msra.mxu0 0
    %1054 = vmatprep.subr.bf16.mxu0 0
    %1055 = vmatpush1.bf16.msra.mxu0 0
    %1056 = vmatprep.subr.bf16.mxu0 0
    %1057 = vmatpush1.bf16.msra.mxu0 0
    %1058 = vmatprep.subr.bf16.mxu0 0
    %1059 = vmatpush1.bf16.msra.mxu0 0
    %1060 = vmatprep.subr.bf16.mxu0 0
    %1061 = vmatpush1.bf16.msra.mxu0 0
    %1062 = vmatprep.subr.bf16.mxu0 0
    %1063 = vmatpush1.bf16.msra.mxu0 0
    %1064 = vmatprep.subr.bf16.mxu0 0
    %1065 = vmatpush1.bf16.msra.mxu0 0
    %1066 = vmatprep.subr.bf16.mxu0 0
    %1067 = vmatpush1.bf16.msra.mxu0 0
    %1068 = vmatprep.mubr.bf16.mxu0 0
    %1069 = vmatmul.mubr.bf16.gmra.mrb[0].mxu0 %v940
    %v1070 = vpop.f32.mrb[0].mxu0
    %v1071 = vadd.f32 %v1028, %v1070
    %v1072 = vpop.f32.mrb[0].mxu0
    %v1073 = vadd.f32 %v1030, %v1072
    %v1074 = vpop.f32.mrb[0].mxu0
    %v1075 = vadd.f32 %v1032, %v1074
    %v1076 = vpop.f32.mrb[0].mxu0
    %v1077 = vadd.f32 %v1034, %v1076
    %1078 = vdwg.mxu0
    %s1079 = scalar_lea.vmem %s0, 48
    %v1080 = vld [vmem:[%s1079] sm:$0xf]
    %v1081 = vld [vmem:[%s1079 + $0x4] sm:$0xf]
    %v1084 = vunpack.c.l.b16 %v1080
    %v1085 = vunpack.c.l.b16 %v1081
    %v1086 = vpack.c.b16 %v1085, %v1084
    %v1088 = vsel %vm150, %v1086, 0
    %1090 = vmatprep.subr.bf16.mxu0 %v125
    %1091 = vmatpush1.bf16.msra.mxu0 %v124
    %1092 = vmatprep.subr.bf16.mxu0 %v127
    %1093 = vmatpush1.bf16.msra.mxu0 %v126
    %1094 = vmatprep.subr.bf16.mxu0 %v129
    %1095 = vmatpush1.bf16.msra.mxu0 %v128
    %1096 = vmatprep.subr.bf16.mxu0 %v131
    %1097 = vmatpush1.bf16.msra.mxu0 %v130
    %1098 = vmatprep.subr.bf16.mxu0 %v133
    %1099 = vmatpush1.bf16.msra.mxu0 %v132
    %1100 = vmatprep.subr.bf16.mxu0 %v135
    %1101 = vmatpush1.bf16.msra.mxu0 %v134
    %1102 = vmatprep.subr.bf16.mxu0 %v159
    %1103 = vmatpush1.bf16.msra.mxu0 %v156
    %1104 = vmatprep.subr.bf16.mxu0 0
    %1105 = vmatpush1.bf16.msra.mxu0 0
    %1106 = vmatprep.subr.bf16.mxu0 0
    %1107 = vmatpush1.bf16.msra.mxu0 0
    %1108 = vmatprep.subr.bf16.mxu0 0
    %1109 = vmatpush1.bf16.msra.mxu0 0
    %1110 = vmatprep.subr.bf16.mxu0 0
    %1111 = vmatpush1.bf16.msra.mxu0 0
    %1112 = vmatprep.subr.bf16.mxu0 0
    %1113 = vmatpush1.bf16.msra.mxu0 0
    %1114 = vmatprep.subr.bf16.mxu0 0
    %1115 = vmatpush1.bf16.msra.mxu0 0
    %1116 = vmatprep.subr.bf16.mxu0 0
    %1117 = vmatpush1.bf16.msra.mxu0 0
    %1118 = vmatprep.subr.bf16.mxu0 0
    %1119 = vmatpush1.bf16.msra.mxu0 0
    %1120 = vmatprep.subr.bf16.mxu0 0
    %1121 = vmatpush1.bf16.msra.mxu0 0
    %1122 = vmatprep.mubr.bf16.mxu0 0
    %1123 = vmatmul.mubr.bf16.gmra.mrb[0].mxu0 %v1088
    %v1124 = vpop.f32.mrb[0].mxu0
    %v1125 = vadd.f32 0.0, %v1124
    %v1126 = vpop.f32.mrb[0].mxu0
    %v1127 = vadd.f32 0.0, %v1126
    %v1128 = vpop.f32.mrb[0].mxu0
    %v1129 = vadd.f32 0.0, %v1128
    %v1130 = vpop.f32.mrb[0].mxu0
    %v1131 = vadd.f32 0.0, %v1130
    %1132 = vdwg.mxu0
    %v1133 = vadd.f32 %v1071, %v1125
    %v1134 = vadd.f32 %v1073, %v1127
    %v1135 = vadd.f32 %v1075, %v1129
    %v1136 = vadd.f32 %v1077, %v1131
    %v1137 = vmax.f32 %v989, %v1133
    %v1138 = vmax.f32 %v990, %v1134
    %v1139 = vmax.f32 %v991, %v1135
    %v1140 = vmax.f32 %v992, %v1136
    %1141 = vmatprep.subr.bf16.mxu0 %v370
    %1142 = vmatpush1.bf16.msra.mxu0 %v369
    %1143 = vmatprep.subr.bf16.mxu0 %v372
    %1144 = vmatpush1.bf16.msra.mxu0 %v371
    %1145 = vmatprep.subr.bf16.mxu0 %v374
    %1146 = vmatpush1.bf16.msra.mxu0 %v373
    %1147 = vmatprep.subr.bf16.mxu0 %v376
    %1148 = vmatpush1.bf16.msra.mxu0 %v375
    %1149 = vmatprep.subr.bf16.mxu0 %v378
    %1150 = vmatpush1.bf16.msra.mxu0 %v377
    %1151 = vmatprep.subr.bf16.mxu0 %v380
    %1152 = vmatpush1.bf16.msra.mxu0 %v379
    %1153 = vmatprep.subr.bf16.mxu0 %v399
    %1154 = vmatpush1.bf16.msra.mxu0 %v396
    %1155 = vmatprep.subr.bf16.mxu0 0
    %1156 = vmatpush1.bf16.msra.mxu0 0
    %1157 = vmatprep.subr.bf16.mxu0 0
    %1158 = vmatpush1.bf16.msra.mxu0 0
    %1159 = vmatprep.subr.bf16.mxu0 0
    %1160 = vmatpush1.bf16.msra.mxu0 0
    %1161 = vmatprep.subr.bf16.mxu0 0
    %1162 = vmatpush1.bf16.msra.mxu0 0
    %1163 = vmatprep.subr.bf16.mxu0 0
    %1164 = vmatpush1.bf16.msra.mxu0 0
    %1165 = vmatprep.subr.bf16.mxu0 0
    %1166 = vmatpush1.bf16.msra.mxu0 0
    %1167 = vmatprep.subr.bf16.mxu0 0
    %1168 = vmatpush1.bf16.msra.mxu0 0
    %1169 = vmatprep.subr.bf16.mxu0 0
    %1170 = vmatpush1.bf16.msra.mxu0 0
    %1171 = vmatprep.subr.bf16.mxu0 0
    %1172 = vmatpush1.bf16.msra.mxu0 0
    %1173 = vmatprep.mubr.bf16.mxu0 0
    %1174 = vmatmul.mubr.bf16.gmra.mrb[0].mxu0 %v940
    %v1175 = vpop.f32.mrb[0].mxu0
    %v1176 = vadd.f32 0.0, %v1175
    %v1177 = vpop.f32.mrb[0].mxu0
    %v1178 = vadd.f32 0.0, %v1177
    %v1179 = vpop.f32.mrb[0].mxu0
    %v1180 = vadd.f32 0.0, %v1179
    %v1181 = vpop.f32.mrb[0].mxu0
    %v1182 = vadd.f32 0.0, %v1181
    %1183 = vdwg.mxu0
    %1184 = vmatprep.subr.bf16.mxu0 %v249
    %1185 = vmatpush1.bf16.msra.mxu0 %v248
    %1186 = vmatprep.subr.bf16.mxu0 %v251
    %1187 = vmatpush1.bf16.msra.mxu0 %v250
    %1188 = vmatprep.subr.bf16.mxu0 %v253
    %1189 = vmatpush1.bf16.msra.mxu0 %v252
    %1190 = vmatprep.subr.bf16.mxu0 %v255
    %1191 = vmatpush1.bf16.msra.mxu0 %v254
    %1192 = vmatprep.subr.bf16.mxu0 %v257
    %1193 = vmatpush1.bf16.msra.mxu0 %v256
    %1194 = vmatprep.subr.bf16.mxu0 %v259
    %1195 = vmatpush1.bf16.msra.mxu0 %v258
    %1196 = vmatprep.subr.bf16.mxu0 %v281
    %1197 = vmatpush1.bf16.msra.mxu0 %v278
    %1198 = vmatprep.subr.bf16.mxu0 0
    %1199 = vmatpush1.bf16.msra.mxu0 0
    %1200 = vmatprep.subr.bf16.mxu0 0
    %1201 = vmatpush1.bf16.msra.mxu0 0
    %1202 = vmatprep.subr.bf16.mxu0 0
    %1203 = vmatpush1.bf16.msra.mxu0 0
    %1204 = vmatprep.subr.bf16.mxu0 0
    %1205 = vmatpush1.bf16.msra.mxu0 0
    %1206 = vmatprep.subr.bf16.mxu0 0
    %1207 = vmatpush1.bf16.msra.mxu0 0
    %1208 = vmatprep.subr.bf16.mxu0 0
    %1209 = vmatpush1.bf16.msra.mxu0 0
    %1210 = vmatprep.subr.bf16.mxu0 0
    %1211 = vmatpush1.bf16.msra.mxu0 0
    %1212 = vmatprep.subr.bf16.mxu0 0
    %1213 = vmatpush1.bf16.msra.mxu0 0
    %1214 = vmatprep.subr.bf16.mxu0 0
    %1215 = vmatpush1.bf16.msra.mxu0 0
    %1216 = vmatprep.mubr.bf16.mxu0 0
    %1217 = vmatmul.mubr.bf16.gmra.mrb[0].mxu0 %v1088
    %v1218 = vpop.f32.mrb[0].mxu0
    %v1219 = vadd.f32 %v1176, %v1218
    %v1220 = vpop.f32.mrb[0].mxu0
    %v1221 = vadd.f32 %v1178, %v1220
    %v1222 = vpop.f32.mrb[0].mxu0
    %v1223 = vadd.f32 %v1180, %v1222
    %v1224 = vpop.f32.mrb[0].mxu0
    %v1225 = vadd.f32 %v1182, %v1224
    %1226 = vdwg.mxu0
    %v1227 = vmax.f32 %v1137, %v1219
    %v1228 = vmax.f32 %v1138, %v1221
    %v1229 = vmax.f32 %v1139, %v1223
    %v1230 = vmax.f32 %v1140, %v1225
    %vm1231 = vcmp.gt.f32.partialorder %v1227, -1e+08
    %vm1232 = vcmp.gt.f32.partialorder %v1228, -1e+08
    %vm1233 = vcmp.gt.f32.partialorder %v1229, -1e+08
    %vm1234 = vcmp.gt.f32.partialorder %v1230, -1e+08
    %v1235 = vld [vmem:[%s4] sm:$0x3]
    %v1237 = vlaneseq
    %v1238 = vshrl.u32 %v1237, 7
    %v1239 = vsub.s32 0, %v1238
    %v1240 = vrot.slane %v1235, %v1239
    %v1241 = vlaneseq
    %v1242 = vshrl.u32 %v1241, 7
    %v1243 = vsub.s32 1, %v1242
    %v1244 = vrot.slane %v1235, %v1243
    %v1247 = vadd.f32 %v1227, %v1240
    %v1248 = vadd.f32 %v1228, %v1244
    %v1249 = vadd.f32 %v1229, %v1240
    %v1250 = vadd.f32 %v1230, %v1244
    %v1251 = vsel %vm1231, %v1247, 0.0
    %v1252 = vsel %vm1232, %v1248, 0.0
    %v1253 = vsel %vm1233, %v1249, 0.0
    %v1254 = vsel %vm1234, %v1250, 0.0
    %v1255 = vld [vmem:[%s1] sm:$0xff]
    %v1256 = vld [vmem:[%s1 + $0x8] sm:$0xff]
    %vm1257 = vcmask 48128
    %v1258 = vsel %vm1257, %v1255, 0.0
    %1259 = vadd.xlane.f32.xlu0 %v1258
    %v1260 = vpop.xlane.xlu0 %1259
    %v1261 = vsel %vm1257, %v1256, 0.0
    %1262 = vadd.xlane.f32.xlu0 %v1261
    %v1263 = vpop.xlane.xlu0 %1262
    %vm1264 = vcmp.eq.f32.partialorder %v1260, 0.0
    %vm1265 = vcmp.eq.f32.partialorder %v1263, 0.0
    %v1266 = vsel %vm1264, 1.0, %v1260
    %v1267 = vsel %vm1265, 1.0, %v1263
    %v1268 = vrcp.pop %v1266
    %v1269 = vmul.f32 1.0, %v1268
    %v1270 = vrcp.pop %v1267
    %v1271 = vmul.f32 1.0, %v1270
    %v1272 = vld [vmem:[%s5] sm:$0xff]
    %vm1273 = vcmask 64512
    %v1275 = vsel %vm1273, %v1255, 0
    %v1278 = vsel %vm1273, %v1256, 0
    %1280 = vmatprep.subr.mxu0 0.0
    %1281 = vmatpush1.msra.mxu0 %v1272
    %1282 = vmatprep.subr.mxu0 0.0
    %1283 = vmatpush1.msra.mxu0 0.0
    %1284 = vmatprep.subr.mxu0 0.0
    %1285 = vmatpush1.msra.mxu0 0.0
    %1286 = vmatprep.subr.mxu0 0.0
    %1287 = vmatpush1.msra.mxu0 0.0
    %1288 = vmatprep.subr.mxu0 0.0
    %1289 = vmatpush1.msra.mxu0 0.0
    %1290 = vmatprep.subr.mxu0 0.0
    %1291 = vmatpush1.msra.mxu0 0.0
    %1292 = vmatprep.subr.mxu0 0.0
    %1293 = vmatpush1.msra.mxu0 0.0
    %1294 = vmatprep.subr.mxu0 0.0
    %1295 = vmatpush1.msra.mxu0 0.0
    %1296 = vmatprep.subr.mxu0 0.0
    %1297 = vmatpush1.msra.mxu0 0.0
    %1298 = vmatprep.subr.mxu0 0.0
    %1299 = vmatpush1.msra.mxu0 0.0
    %1300 = vmatprep.subr.mxu0 0.0
    %1301 = vmatpush1.msra.mxu0 0.0
    %1302 = vmatprep.subr.mxu0 0.0
    %1303 = vmatpush1.msra.mxu0 0.0
    %1304 = vmatprep.subr.mxu0 0.0
    %1305 = vmatpush1.msra.mxu0 0.0
    %1306 = vmatprep.subr.mxu0 0.0
    %1307 = vmatpush1.msra.mxu0 0.0
    %1308 = vmatprep.subr.mxu0 0.0
    %1309 = vmatpush1.msra.mxu0 0.0
    %1310 = vmatprep.subr.mxu0 0.0
    %1311 = vmatpush1.msra.mxu0 0.0
    %1312 = vmatprep.subr.mxu0 0.0
    %1313 = vmatpush1.msra.mxu0 0.0
    %1314 = vmatprep.subr.mxu0 0.0
    %1315 = vmatpush1.msra.mxu0 0.0
    %1316 = vmatprep.subr.mxu0 0.0
    %1317 = vmatpush1.msra.mxu0 0.0
    %1318 = vmatprep.subr.mxu0 0.0
    %1319 = vmatpush1.msra.mxu0 0.0
    %1320 = vmatprep.subr.mxu0 0.0
    %1321 = vmatpush1.msra.mxu0 0.0
    %1322 = vmatprep.subr.mxu0 0.0
    %1323 = vmatpush1.msra.mxu0 0.0
    %1324 = vmatprep.subr.mxu0 0.0
    %1325 = vmatpush1.msra.mxu0 0.0
    %1326 = vmatprep.subr.mxu0 0.0
    %1327 = vmatpush1.msra.mxu0 0.0
    %1328 = vmatprep.subr.mxu0 0.0
    %1329 = vmatpush1.msra.mxu0 0.0
    %1330 = vmatprep.subr.mxu0 0.0
    %1331 = vmatpush1.msra.mxu0 0.0
    %1332 = vmatprep.subr.mxu0 0.0
    %1333 = vmatpush1.msra.mxu0 0.0
    %1334 = vmatprep.subr.mxu0 0.0
    %1335 = vmatpush1.msra.mxu0 0.0
    %1336 = vmatprep.subr.mxu0 0.0
    %1337 = vmatpush1.msra.mxu0 0.0
    %1338 = vmatprep.subr.mxu0 0.0
    %1339 = vmatpush1.msra.mxu0 0.0
    %1340 = vmatprep.subr.mxu0 0.0
    %1341 = vmatpush1.msra.mxu0 0.0
    %1342 = vmatprep.subr.mxu0 0.0
    %1343 = vmatpush1.msra.mxu0 0.0
    %1344 = vmatprep.mubr.f32.mxu0 0.0
    %1345 = vmatmul.mubr.f32.gmra.mrb[0].mxu0 %v1275
    %v1346 = vpop.f32.mrb[0].mxu0
    %v1347 = vadd.f32 0.0, %v1346
    %v1348 = vpop.f32.mrb[0].mxu0
    %1349 = vmatprep.mubr.f32.mxu0 0.0
    %1350 = vmatmul.mubr.f32.gmra.mrb[0].mxu0 %v1278
    %v1351 = vpop.f32.mrb[0].mxu0
    %v1352 = vadd.f32 0.0, %v1351
    %v1353 = vpop.f32.mrb[0].mxu0
    %1354 = vdwg.mxu0
    %v1355 = vld [vmem:[%s6] sm:$0xff]
    %v1356 = vld [vmem:[%s6 + $0x8] sm:$0xff]
    %1357 = vmatprep.subr.mxu0 %v1356
    %1358 = vmatpush1.msra.mxu0 %v1355
    %1359 = vmatprep.subr.mxu0 0.0
    %1360 = vmatpush1.msra.mxu0 0.0
    %1361 = vmatprep.subr.mxu0 0.0
    %1362 = vmatpush1.msra.mxu0 0.0
    %1363 = vmatprep.subr.mxu0 0.0
    %1364 = vmatpush1.msra.mxu0 0.0
    %1365 = vmatprep.subr.mxu0 0.0
    %1366 = vmatpush1.msra.mxu0 0.0
    %1367 = vmatprep.subr.mxu0 0.0
    %1368 = vmatpush1.msra.mxu0 0.0
    %1369 = vmatprep.subr.mxu0 0.0
    %1370 = vmatpush1.msra.mxu0 0.0
    %1371 = vmatprep.subr.mxu0 0.0
    %1372 = vmatpush1.msra.mxu0 0.0
    %1373 = vmatprep.subr.mxu0 0.0
    %1374 = vmatpush1.msra.mxu0 0.0
    %1375 = vmatprep.subr.mxu0 0.0
    %1376 = vmatpush1.msra.mxu0 0.0
    %1377 = vmatprep.subr.mxu0 0.0
    %1378 = vmatpush1.msra.mxu0 0.0
    %1379 = vmatprep.subr.mxu0 0.0
    %1380 = vmatpush1.msra.mxu0 0.0
    %1381 = vmatprep.subr.mxu0 0.0
    %1382 = vmatpush1.msra.mxu0 0.0
    %1383 = vmatprep.subr.mxu0 0.0
    %1384 = vmatpush1.msra.mxu0 0.0
    %1385 = vmatprep.subr.mxu0 0.0
    %1386 = vmatpush1.msra.mxu0 0.0
    %1387 = vmatprep.subr.mxu0 0.0
    %1388 = vmatpush1.msra.mxu0 0.0
    %1389 = vmatprep.subr.mxu0 0.0
    %1390 = vmatpush1.msra.mxu0 0.0
    %1391 = vmatprep.subr.mxu0 0.0
    %1392 = vmatpush1.msra.mxu0 0.0
    %1393 = vmatprep.subr.mxu0 0.0
    %1394 = vmatpush1.msra.mxu0 0.0
    %1395 = vmatprep.subr.mxu0 0.0
    %1396 = vmatpush1.msra.mxu0 0.0
    %1397 = vmatprep.subr.mxu0 0.0
    %1398 = vmatpush1.msra.mxu0 0.0
    %1399 = vmatprep.subr.mxu0 0.0
    %1400 = vmatpush1.msra.mxu0 0.0
    %1401 = vmatprep.subr.mxu0 0.0
    %1402 = vmatpush1.msra.mxu0 0.0
    %1403 = vmatprep.subr.mxu0 0.0
    %1404 = vmatpush1.msra.mxu0 0.0
    %1405 = vmatprep.subr.mxu0 0.0
    %1406 = vmatpush1.msra.mxu0 0.0
    %1407 = vmatprep.subr.mxu0 0.0
    %1408 = vmatpush1.msra.mxu0 0.0
    %1409 = vmatprep.subr.mxu0 0.0
    %1410 = vmatpush1.msra.mxu0 0.0
    %1411 = vmatprep.subr.mxu0 0.0
    %1412 = vmatpush1.msra.mxu0 0.0
    %1413 = vmatprep.subr.mxu0 0.0
    %1414 = vmatpush1.msra.mxu0 0.0
    %1415 = vmatprep.subr.mxu0 0.0
    %1416 = vmatpush1.msra.mxu0 0.0
    %1417 = vmatprep.subr.mxu0 0.0
    %1418 = vmatpush1.msra.mxu0 0.0
    %1419 = vmatprep.subr.mxu0 0.0
    %1420 = vmatpush1.msra.mxu0 0.0
    %1421 = vmatprep.mubr.f32.mxu0 0.0
    %1422 = vmatmul.mubr.f32.gmra.mrb[0].mxu0 %v1275
    %v1423 = vpop.f32.mrb[0].mxu0
    %v1424 = vadd.f32 0.0, %v1423
    %v1425 = vpop.f32.mrb[0].mxu0
    %v1426 = vadd.f32 0.0, %v1425
    %1427 = vmatprep.mubr.f32.mxu0 0.0
    %1428 = vmatmul.mubr.f32.gmra.mrb[0].mxu0 %v1278
    %v1429 = vpop.f32.mrb[0].mxu0
    %v1430 = vadd.f32 0.0, %v1429
    %v1431 = vpop.f32.mrb[0].mxu0
    %v1432 = vadd.f32 0.0, %v1431
    %1433 = vdwg.mxu0
    %v1434 = vmul.f32 %v1255, %v1347
    %v1435 = vmul.f32 %v1256, %v1352
    %v1436 = vld [vmem:[%s7] sm:$0xff]
    %v1437 = vld [vmem:[%s7 + $0x8] sm:$0xff]
    %v1438 = vld [vmem:[%s7 + $0x10] sm:$0xff]
    %v1439 = vld [vmem:[%s7 + $0x18] sm:$0xff]
    %v1440 = vld [vmem:[%s7 + $0x20] sm:$0xff]
    %v1441 = vld [vmem:[%s7 + $0x28] sm:$0xff]
    %v1442 = vld [vmem:[%s7 + $0x30] sm:$0xff]
    %v1443 = vld [vmem:[%s7 + $0x38] sm:$0xff]
    %v1444 = vld [vmem:[%s7 + $0x40] sm:$0xff]
    %v1445 = vld [vmem:[%s7 + $0x48] sm:$0xff]
    %v1446 = vld [vmem:[%s7 + $0x50] sm:$0xff]
    %v1447 = vld [vmem:[%s7 + $0x58] sm:$0xff]
    %v1448 = vld [vmem:[%s7 + $0x60] sm:$0xff]
    %v1449 = vld [vmem:[%s7 + $0x68] sm:$0xff]
    %v1450 = vld [vmem:[%s7 + $0x70] sm:$0xff]
    %v1451 = vld [vmem:[%s7 + $0x78] sm:$0xff]
    %v1452 = vld [vmem:[%s7 + $0x80] sm:$0xff]
    %v1453 = vld [vmem:[%s7 + $0x88] sm:$0xff]
    %v1454 = vld [vmem:[%s7 + $0x90] sm:$0xff]
    %v1455 = vld [vmem:[%s7 + $0x98] sm:$0xff]
    %v1456 = vld [vmem:[%s7 + $0xa0] sm:$0xff]
    %v1457 = vld [vmem:[%s7 + $0xa8] sm:$0xff]
    %v1458 = vld [vmem:[%s7 + $0xb0] sm:$0xff]
    %v1459 = vld [vmem:[%s7 + $0xb8] sm:$0xff]
    %v1460 = vld [vmem:[%s7 + $0xc0] sm:$0x3f]
    %v1461 = vld [vmem:[%s7 + $0xc8] sm:$0x3f]
    %v1462 = vmul.f32 %v1251, %v1424
    %v1463 = vmul.f32 %v1252, %v1426
    %v1464 = vmul.f32 %v1253, %v1430
    %v1465 = vmul.f32 %v1254, %v1432
    %v1466 = vld [vmem:[%s8] sm:$0xff]
    %v1467 = vld [vmem:[%s8 + $0x8] sm:$0xff]
    %v1468 = vld [vmem:[%s8 + $0x10] sm:$0xff]
    %v1469 = vld [vmem:[%s8 + $0x18] sm:$0xff]
    %v1470 = vld [vmem:[%s8 + $0x20] sm:$0xff]
    %v1471 = vld [vmem:[%s8 + $0x28] sm:$0xff]
    %v1472 = vld [vmem:[%s8 + $0x30] sm:$0xff]
    %v1473 = vld [vmem:[%s8 + $0x38] sm:$0xff]
    %v1474 = vld [vmem:[%s8 + $0x40] sm:$0xff]
    %v1475 = vld [vmem:[%s8 + $0x48] sm:$0xff]
    %v1476 = vld [vmem:[%s8 + $0x50] sm:$0xff]
    %v1477 = vld [vmem:[%s8 + $0x58] sm:$0xff]
    %v1478 = vld [vmem:[%s8 + $0x60] sm:$0xff]
    %v1479 = vld [vmem:[%s8 + $0x68] sm:$0xff]
    %v1480 = vld [vmem:[%s8 + $0x70] sm:$0xff]
    %v1481 = vld [vmem:[%s8 + $0x78] sm:$0xff]
    %v1482 = vld [vmem:[%s8 + $0x80] sm:$0xff]
    %v1483 = vld [vmem:[%s8 + $0x88] sm:$0xff]
    %v1484 = vld [vmem:[%s8 + $0x90] sm:$0xff]
    %v1485 = vld [vmem:[%s8 + $0x98] sm:$0xff]
    %v1486 = vld [vmem:[%s8 + $0xa0] sm:$0xff]
    %v1487 = vld [vmem:[%s8 + $0xa8] sm:$0xff]
    %v1488 = vld [vmem:[%s8 + $0xb0] sm:$0xff]
    %v1489 = vld [vmem:[%s8 + $0xb8] sm:$0xff]
    %v1490 = vld [vmem:[%s8 + $0xc0] sm:$0xff]
    %v1491 = vld [vmem:[%s8 + $0xc8] sm:$0xff]
    %v1492 = vld [vmem:[%s8 + $0xd0] sm:$0xff]
    %v1493 = vld [vmem:[%s8 + $0xd8] sm:$0xff]
    %v1494 = vld [vmem:[%s8 + $0xe0] sm:$0xff]
    %v1495 = vld [vmem:[%s8 + $0xe8] sm:$0xff]
    %v1496 = vld [vmem:[%s8 + $0xf0] sm:$0xff]
    %v1497 = vld [vmem:[%s8 + $0xf8] sm:$0xff]
    %v1498 = vld [vmem:[%s8 + $0x100] sm:$0xff]
    %v1499 = vld [vmem:[%s8 + $0x108] sm:$0xff]
    %v1500 = vld [vmem:[%s8 + $0x110] sm:$0xff]
    %v1501 = vld [vmem:[%s8 + $0x118] sm:$0xff]
    %v1502 = vld [vmem:[%s8 + $0x120] sm:$0xff]
    %v1503 = vld [vmem:[%s8 + $0x128] sm:$0xff]
    %v1504 = vld [vmem:[%s8 + $0x130] sm:$0xff]
    %v1505 = vld [vmem:[%s8 + $0x138] sm:$0xff]
    %v1506 = vld [vmem:[%s8 + $0x140] sm:$0xff]
    %v1507 = vld [vmem:[%s8 + $0x148] sm:$0xff]
    %v1508 = vld [vmem:[%s8 + $0x150] sm:$0xff]
    %v1509 = vld [vmem:[%s8 + $0x158] sm:$0xff]
    %v1510 = vld [vmem:[%s8 + $0x160] sm:$0xff]
    %v1511 = vld [vmem:[%s8 + $0x168] sm:$0xff]
    %v1512 = vld [vmem:[%s8 + $0x170] sm:$0xff]
    %v1513 = vld [vmem:[%s8 + $0x178] sm:$0xff]
    %vm1514 = vcmask 523264
    %v1516 = vsel %vm1514, %v1463, 0
    %v1519 = vsel %vm1514, %v1465, 0
    %v1521 = vand.u32 %v1467, 4294901760
    %1522 = vmatprep.subr.mxu0 %v1521
    %v1523 = vand.u32 %v1466, 4294901760
    %1524 = vmatpush1.msra.mxu0 %v1523
    %v1525 = vand.u32 %v1469, 4294901760
    %1526 = vmatprep.subr.mxu0 %v1525
    %v1527 = vand.u32 %v1468, 4294901760
    %1528 = vmatpush1.msra.mxu0 %v1527
    %v1529 = vand.u32 %v1471, 4294901760
    %1530 = vmatprep.subr.mxu0 %v1529
    %v1531 = vand.u32 %v1470, 4294901760
    %1532 = vmatpush1.msra.mxu0 %v1531
    %v1533 = vand.u32 %v1473, 4294901760
    %1534 = vmatprep.subr.mxu0 %v1533
    %v1535 = vand.u32 %v1472, 4294901760
    %1536 = vmatpush1.msra.mxu0 %v1535
    %v1537 = vand.u32 %v1475, 4294901760
    %1538 = vmatprep.subr.mxu0 %v1537
    %v1539 = vand.u32 %v1474, 4294901760
    %1540 = vmatpush1.msra.mxu0 %v1539
    %v1541 = vand.u32 %v1477, 4294901760
    %1542 = vmatprep.subr.mxu0 %v1541
    %v1543 = vand.u32 %v1476, 4294901760
    %1544 = vmatpush1.msra.mxu0 %v1543
    %v1545 = vand.u32 %v1479, 4294901760
    %1546 = vmatprep.subr.mxu0 %v1545
    %v1547 = vand.u32 %v1478, 4294901760
    %1548 = vmatpush1.msra.mxu0 %v1547
    %v1549 = vand.u32 %v1481, 4294901760
    %1550 = vmatprep.subr.mxu0 %v1549
    %v1551 = vand.u32 %v1480, 4294901760
    %1552 = vmatpush1.msra.mxu0 %v1551
    %v1553 = vand.u32 %v1483, 4294901760
    %1554 = vmatprep.subr.mxu0 %v1553
    %v1555 = vand.u32 %v1482, 4294901760
    %1556 = vmatpush1.msra.mxu0 %v1555
    %v1557 = vand.u32 %v1485, 4294901760
    %1558 = vmatprep.subr.mxu0 %v1557
    %v1559 = vand.u32 %v1484, 4294901760
    %1560 = vmatpush1.msra.mxu0 %v1559
    %v1561 = vand.u32 %v1487, 4294901760
    %1562 = vmatprep.subr.mxu0 %v1561
    %v1563 = vand.u32 %v1486, 4294901760
    %1564 = vmatpush1.msra.mxu0 %v1563
    %v1565 = vand.u32 %v1489, 4294901760
    %1566 = vmatprep.subr.mxu0 %v1565
    %v1567 = vand.u32 %v1488, 4294901760
    %1568 = vmatpush1.msra.mxu0 %v1567
    %v1569 = vand.u32 %v1491, 4294901760
    %1570 = vmatprep.subr.mxu0 %v1569
    %v1571 = vand.u32 %v1490, 4294901760
    %1572 = vmatpush1.msra.mxu0 %v1571
    %v1573 = vand.u32 %v1493, 4294901760
    %1574 = vmatprep.subr.mxu0 %v1573
    %v1575 = vand.u32 %v1492, 4294901760
    %1576 = vmatpush1.msra.mxu0 %v1575
    %v1577 = vand.u32 %v1495, 4294901760
    %1578 = vmatprep.subr.mxu0 %v1577
    %v1579 = vand.u32 %v1494, 4294901760
    %1580 = vmatpush1.msra.mxu0 %v1579
    %v1581 = vand.u32 %v1497, 4294901760
    %1582 = vmatprep.subr.mxu0 %v1581
    %v1583 = vand.u32 %v1496, 4294901760
    %1584 = vmatpush1.msra.mxu0 %v1583
    %v1585 = vand.u32 %v1499, 4294901760
    %1586 = vmatprep.subr.mxu0 %v1585
    %v1587 = vand.u32 %v1498, 4294901760
    %1588 = vmatpush1.msra.mxu0 %v1587
    %v1589 = vand.u32 %v1501, 4294901760
    %1590 = vmatprep.subr.mxu0 %v1589
    %v1591 = vand.u32 %v1500, 4294901760
    %1592 = vmatpush1.msra.mxu0 %v1591
    %v1593 = vand.u32 %v1503, 4294901760
    %1594 = vmatprep.subr.mxu0 %v1593
    %v1595 = vand.u32 %v1502, 4294901760
    %1596 = vmatpush1.msra.mxu0 %v1595
    %v1597 = vand.u32 %v1505, 4294901760
    %1598 = vmatprep.subr.mxu0 %v1597
    %v1599 = vand.u32 %v1504, 4294901760
    %1600 = vmatpush1.msra.mxu0 %v1599
    %v1601 = vand.u32 %v1507, 4294901760
    %1602 = vmatprep.subr.mxu0 %v1601
    %v1603 = vand.u32 %v1506, 4294901760
    %1604 = vmatpush1.msra.mxu0 %v1603
    %v1605 = vand.u32 %v1509, 4294901760
    %1606 = vmatprep.subr.mxu0 %v1605
    %v1607 = vand.u32 %v1508, 4294901760
    %1608 = vmatpush1.msra.mxu0 %v1607
    %v1609 = vand.u32 %v1511, 4294901760
    %1610 = vmatprep.subr.mxu0 %v1609
    %v1611 = vand.u32 %v1510, 4294901760
    %1612 = vmatpush1.msra.mxu0 %v1611
    %v1613 = vand.u32 %v1513, 4294901760
    %1614 = vmatprep.subr.mxu0 %v1613
    %v1615 = vand.u32 %v1512, 4294901760
    %1616 = vmatpush1.msra.mxu0 %v1615
    %1617 = vmatprep.subr.mxu0 0.0
    %1618 = vmatpush1.msra.mxu0 0.0
    %1619 = vmatprep.subr.mxu0 0.0
    %1620 = vmatpush1.msra.mxu0 0.0
    %1621 = vmatprep.subr.mxu0 0.0
    %1622 = vmatpush1.msra.mxu0 0.0
    %1623 = vmatprep.subr.mxu0 0.0
    %1624 = vmatpush1.msra.mxu0 0.0
    %1625 = vmatprep.subr.mxu0 0.0
    %1626 = vmatpush1.msra.mxu0 0.0
    %1627 = vmatprep.subr.mxu0 0.0
    %1628 = vmatpush1.msra.mxu0 0.0
    %1629 = vmatprep.subr.mxu0 0.0
    %1630 = vmatpush1.msra.mxu0 0.0
    %1631 = vmatprep.subr.mxu0 0.0
    %1632 = vmatpush1.msra.mxu0 0.0
    %v1633 = vand.u32 %v1516, 4294901760
    %v1634 = vsub.f32 %v1516, %v1633
    %v1635 = vand.u32 %v1634, 4294901760
    %v1636 = vsub.f32 %v1634, %v1635
    %v1637 = vand.u32 %v1636, 4294901760
    %1638 = vmatprep.mubr.f32.mxu0 %v1637
    %v1639 = vand.u32 %v1462, 4294901760
    %v1640 = vsub.f32 %v1462, %v1639
    %v1641 = vand.u32 %v1640, 4294901760
    %v1642 = vsub.f32 %v1640, %v1641
    %v1643 = vand.u32 %v1642, 4294901760
    %1644 = vmatmul.mubr.f32.gmra.mrb[0].mxu0 %v1643
    %v1645 = vpop.f32.mrb[0].mxu0
    %v1646 = vadd.f32 0.0, %v1645
    %v1647 = vpop.f32.mrb[0].mxu0
    %v1648 = vadd.f32 0.0, %v1647
    %v1649 = vand.u32 %v1519, 4294901760
    %v1650 = vsub.f32 %v1519, %v1649
    %v1651 = vand.u32 %v1650, 4294901760
    %v1652 = vsub.f32 %v1650, %v1651
    %v1653 = vand.u32 %v1652, 4294901760
    %1654 = vmatprep.mubr.f32.mxu0 %v1653
    %v1655 = vand.u32 %v1464, 4294901760
    %v1656 = vsub.f32 %v1464, %v1655
    %v1657 = vand.u32 %v1656, 4294901760
    %v1658 = vsub.f32 %v1656, %v1657
    %v1659 = vand.u32 %v1658, 4294901760
    %1660 = vmatmul.mubr.f32.gmra.mrb[0].mxu0 %v1659
    %v1661 = vpop.f32.mrb[0].mxu0
    %v1662 = vadd.f32 0.0, %v1661
    %v1663 = vpop.f32.mrb[0].mxu0
    %v1664 = vadd.f32 0.0, %v1663
    %1665 = vdwg.mxu0
    %v1666 = vand.u32 %v1467, 4294901760
    %v1667 = vsub.f32 %v1467, %v1666
    %v1668 = vand.u32 %v1667, 4294901760
    %v1669 = vsub.f32 %v1667, %v1668
    %v1670 = vand.u32 %v1669, 4294901760
    %1671 = vmatprep.subr.mxu0 %v1670
    %v1672 = vand.u32 %v1466, 4294901760
    %v1673 = vsub.f32 %v1466, %v1672
    %v1674 = vand.u32 %v1673, 4294901760
    %v1675 = vsub.f32 %v1673, %v1674
    %v1676 = vand.u32 %v1675, 4294901760
    %1677 = vmatpush1.msra.mxu0 %v1676
    %v1678 = vand.u32 %v1469, 4294901760
    %v1679 = vsub.f32 %v1469, %v1678
    %v1680 = vand.u32 %v1679, 4294901760
    %v1681 = vsub.f32 %v1679, %v1680
    %v1682 = vand.u32 %v1681, 4294901760
    %1683 = vmatprep.subr.mxu0 %v1682
    %v1684 = vand.u32 %v1468, 4294901760
    %v1685 = vsub.f32 %v1468, %v1684
    %v1686 = vand.u32 %v1685, 4294901760
    %v1687 = vsub.f32 %v1685, %v1686
    %v1688 = vand.u32 %v1687, 4294901760
    %1689 = vmatpush1.msra.mxu0 %v1688
    %v1690 = vand.u32 %v1471, 4294901760
    %v1691 = vsub.f32 %v1471, %v1690
    %v1692 = vand.u32 %v1691, 4294901760
    %v1693 = vsub.f32 %v1691, %v1692
    %v1694 = vand.u32 %v1693, 4294901760
    %1695 = vmatprep.subr.mxu0 %v1694
    %v1696 = vand.u32 %v1470, 4294901760
    %v1697 = vsub.f32 %v1470, %v1696
    %v1698 = vand.u32 %v1697, 4294901760
    %v1699 = vsub.f32 %v1697, %v1698
    %v1700 = vand.u32 %v1699, 4294901760
    %1701 = vmatpush1.msra.mxu0 %v1700
    %v1702 = vand.u32 %v1473, 4294901760
    %v1703 = vsub.f32 %v1473, %v1702
    %v1704 = vand.u32 %v1703, 4294901760
    %v1705 = vsub.f32 %v1703, %v1704
    %v1706 = vand.u32 %v1705, 4294901760
    %1707 = vmatprep.subr.mxu0 %v1706
    %v1708 = vand.u32 %v1472, 4294901760
    %v1709 = vsub.f32 %v1472, %v1708
    %v1710 = vand.u32 %v1709, 4294901760
    %v1711 = vsub.f32 %v1709, %v1710
    %v1712 = vand.u32 %v1711, 4294901760
    %1713 = vmatpush1.msra.mxu0 %v1712
    %v1714 = vand.u32 %v1475, 4294901760
    %v1715 = vsub.f32 %v1475, %v1714
    %v1716 = vand.u32 %v1715, 4294901760
    %v1717 = vsub.f32 %v1715, %v1716
    %v1718 = vand.u32 %v1717, 4294901760
    %1719 = vmatprep.subr.mxu0 %v1718
    %v1720 = vand.u32 %v1474, 4294901760
    %v1721 = vsub.f32 %v1474, %v1720
    %v1722 = vand.u32 %v1721, 4294901760
    %v1723 = vsub.f32 %v1721, %v1722
    %v1724 = vand.u32 %v1723, 4294901760
    %1725 = vmatpush1.msra.mxu0 %v1724
    %v1726 = vand.u32 %v1477, 4294901760
    %v1727 = vsub.f32 %v1477, %v1726
    %v1728 = vand.u32 %v1727, 4294901760
    %v1729 = vsub.f32 %v1727, %v1728
    %v1730 = vand.u32 %v1729, 4294901760
    %1731 = vmatprep.subr.mxu0 %v1730
    %v1732 = vand.u32 %v1476, 4294901760
    %v1733 = vsub.f32 %v1476, %v1732
    %v1734 = vand.u32 %v1733, 4294901760
    %v1735 = vsub.f32 %v1733, %v1734
    %v1736 = vand.u32 %v1735, 4294901760
    %1737 = vmatpush1.msra.mxu0 %v1736
    %v1738 = vand.u32 %v1479, 4294901760
    %v1739 = vsub.f32 %v1479, %v1738
    %v1740 = vand.u32 %v1739, 4294901760
    %v1741 = vsub.f32 %v1739, %v1740
    %v1742 = vand.u32 %v1741, 4294901760
    %1743 = vmatprep.subr.mxu0 %v1742
    %v1744 = vand.u32 %v1478, 4294901760
    %v1745 = vsub.f32 %v1478, %v1744
    %v1746 = vand.u32 %v1745, 4294901760
    %v1747 = vsub.f32 %v1745, %v1746
    %v1748 = vand.u32 %v1747, 4294901760
    %1749 = vmatpush1.msra.mxu0 %v1748
    %v1750 = vand.u32 %v1481, 4294901760
    %v1751 = vsub.f32 %v1481, %v1750
    %v1752 = vand.u32 %v1751, 4294901760
    %v1753 = vsub.f32 %v1751, %v1752
    %v1754 = vand.u32 %v1753, 4294901760
    %1755 = vmatprep.subr.mxu0 %v1754
    %v1756 = vand.u32 %v1480, 4294901760
    %v1757 = vsub.f32 %v1480, %v1756
    %v1758 = vand.u32 %v1757, 4294901760
    %v1759 = vsub.f32 %v1757, %v1758
    %v1760 = vand.u32 %v1759, 4294901760
    %1761 = vmatpush1.msra.mxu0 %v1760
    %v1762 = vand.u32 %v1483, 4294901760
    %v1763 = vsub.f32 %v1483, %v1762
    %v1764 = vand.u32 %v1763, 4294901760
    %v1765 = vsub.f32 %v1763, %v1764
    %v1766 = vand.u32 %v1765, 4294901760
    %1767 = vmatprep.subr.mxu0 %v1766
    %v1768 = vand.u32 %v1482, 4294901760
    %v1769 = vsub.f32 %v1482, %v1768
    %v1770 = vand.u32 %v1769, 4294901760
    %v1771 = vsub.f32 %v1769, %v1770
    %v1772 = vand.u32 %v1771, 4294901760
    %1773 = vmatpush1.msra.mxu0 %v1772
    %v1774 = vand.u32 %v1485, 4294901760
    %v1775 = vsub.f32 %v1485, %v1774
    %v1776 = vand.u32 %v1775, 4294901760
    %v1777 = vsub.f32 %v1775, %v1776
    %v1778 = vand.u32 %v1777, 4294901760
    %1779 = vmatprep.subr.mxu0 %v1778
    %v1780 = vand.u32 %v1484, 4294901760
    %v1781 = vsub.f32 %v1484, %v1780
    %v1782 = vand.u32 %v1781, 4294901760
    %v1783 = vsub.f32 %v1781, %v1782
    %v1784 = vand.u32 %v1783, 4294901760
    %1785 = vmatpush1.msra.mxu0 %v1784
    %v1786 = vand.u32 %v1487, 4294901760
    %v1787 = vsub.f32 %v1487, %v1786
    %v1788 = vand.u32 %v1787, 4294901760
    %v1789 = vsub.f32 %v1787, %v1788
    %v1790 = vand.u32 %v1789, 4294901760
    %1791 = vmatprep.subr.mxu0 %v1790
    %v1792 = vand.u32 %v1486, 4294901760
    %v1793 = vsub.f32 %v1486, %v1792
    %v1794 = vand.u32 %v1793, 4294901760
    %v1795 = vsub.f32 %v1793, %v1794
    %v1796 = vand.u32 %v1795, 4294901760
    %1797 = vmatpush1.msra.mxu0 %v1796
    %v1798 = vand.u32 %v1489, 4294901760
    %v1799 = vsub.f32 %v1489, %v1798
    %v1800 = vand.u32 %v1799, 4294901760
    %v1801 = vsub.f32 %v1799, %v1800
    %v1802 = vand.u32 %v1801, 4294901760
    %1803 = vmatprep.subr.mxu0 %v1802
    %v1804 = vand.u32 %v1488, 4294901760
    %v1805 = vsub.f32 %v1488, %v1804
    %v1806 = vand.u32 %v1805, 4294901760
    %v1807 = vsub.f32 %v1805, %v1806
    %v1808 = vand.u32 %v1807, 4294901760
    %1809 = vmatpush1.msra.mxu0 %v1808
    %v1810 = vand.u32 %v1491, 4294901760
    %v1811 = vsub.f32 %v1491, %v1810
    %v1812 = vand.u32 %v1811, 4294901760
    %v1813 = vsub.f32 %v1811, %v1812
    %v1814 = vand.u32 %v1813, 4294901760
    %1815 = vmatprep.subr.mxu0 %v1814
    %v1816 = vand.u32 %v1490, 4294901760
    %v1817 = vsub.f32 %v1490, %v1816
    %v1818 = vand.u32 %v1817, 4294901760
    %v1819 = vsub.f32 %v1817, %v1818
    %v1820 = vand.u32 %v1819, 4294901760
    %1821 = vmatpush1.msra.mxu0 %v1820
    %v1822 = vand.u32 %v1493, 4294901760
    %v1823 = vsub.f32 %v1493, %v1822
    %v1824 = vand.u32 %v1823, 4294901760
    %v1825 = vsub.f32 %v1823, %v1824
    %v1826 = vand.u32 %v1825, 4294901760
    %1827 = vmatprep.subr.mxu0 %v1826
    %v1828 = vand.u32 %v1492, 4294901760
    %v1829 = vsub.f32 %v1492, %v1828
    %v1830 = vand.u32 %v1829, 4294901760
    %v1831 = vsub.f32 %v1829, %v1830
    %v1832 = vand.u32 %v1831, 4294901760
    %1833 = vmatpush1.msra.mxu0 %v1832
    %v1834 = vand.u32 %v1495, 4294901760
    %v1835 = vsub.f32 %v1495, %v1834
    %v1836 = vand.u32 %v1835, 4294901760
    %v1837 = vsub.f32 %v1835, %v1836
    %v1838 = vand.u32 %v1837, 4294901760
    %1839 = vmatprep.subr.mxu0 %v1838
    %v1840 = vand.u32 %v1494, 4294901760
    %v1841 = vsub.f32 %v1494, %v1840
    %v1842 = vand.u32 %v1841, 4294901760
    %v1843 = vsub.f32 %v1841, %v1842
    %v1844 = vand.u32 %v1843, 4294901760
    %1845 = vmatpush1.msra.mxu0 %v1844
    %v1846 = vand.u32 %v1497, 4294901760
    %v1847 = vsub.f32 %v1497, %v1846
    %v1848 = vand.u32 %v1847, 4294901760
    %v1849 = vsub.f32 %v1847, %v1848
    %v1850 = vand.u32 %v1849, 4294901760
    %1851 = vmatprep.subr.mxu0 %v1850
    %v1852 = vand.u32 %v1496, 4294901760
    %v1853 = vsub.f32 %v1496, %v1852
    %v1854 = vand.u32 %v1853, 4294901760
    %v1855 = vsub.f32 %v1853, %v1854
    %v1856 = vand.u32 %v1855, 4294901760
    %1857 = vmatpush1.msra.mxu0 %v1856
    %v1858 = vand.u32 %v1499, 4294901760
    %v1859 = vsub.f32 %v1499, %v1858
    %v1860 = vand.u32 %v1859, 4294901760
    %v1861 = vsub.f32 %v1859, %v1860
    %v1862 = vand.u32 %v1861, 4294901760
    %1863 = vmatprep.subr.mxu0 %v1862
    %v1864 = vand.u32 %v1498, 4294901760
    %v1865 = vsub.f32 %v1498, %v1864
    %v1866 = vand.u32 %v1865, 4294901760
    %v1867 = vsub.f32 %v1865, %v1866
    %v1868 = vand.u32 %v1867, 4294901760
    %1869 = vmatpush1.msra.mxu0 %v1868
    %v1870 = vand.u32 %v1501, 4294901760
    %v1871 = vsub.f32 %v1501, %v1870
    %v1872 = vand.u32 %v1871, 4294901760
    %v1873 = vsub.f32 %v1871, %v1872
    %v1874 = vand.u32 %v1873, 4294901760
    %1875 = vmatprep.subr.mxu0 %v1874
    %v1876 = vand.u32 %v1500, 4294901760
    %v1877 = vsub.f32 %v1500, %v1876
    %v1878 = vand.u32 %v1877, 4294901760
    %v1879 = vsub.f32 %v1877, %v1878
    %v1880 = vand.u32 %v1879, 4294901760
    %1881 = vmatpush1.msra.mxu0 %v1880
    %v1882 = vand.u32 %v1503, 4294901760
    %v1883 = vsub.f32 %v1503, %v1882
    %v1884 = vand.u32 %v1883, 4294901760
    %v1885 = vsub.f32 %v1883, %v1884
    %v1886 = vand.u32 %v1885, 4294901760
    %1887 = vmatprep.subr.mxu0 %v1886
    %v1888 = vand.u32 %v1502, 4294901760
    %v1889 = vsub.f32 %v1502, %v1888
    %v1890 = vand.u32 %v1889, 4294901760
    %v1891 = vsub.f32 %v1889, %v1890
    %v1892 = vand.u32 %v1891, 4294901760
    %1893 = vmatpush1.msra.mxu0 %v1892
    %v1894 = vand.u32 %v1505, 4294901760
    %v1895 = vsub.f32 %v1505, %v1894
    %v1896 = vand.u32 %v1895, 4294901760
    %v1897 = vsub.f32 %v1895, %v1896
    %v1898 = vand.u32 %v1897, 4294901760
    %1899 = vmatprep.subr.mxu0 %v1898
    %v1900 = vand.u32 %v1504, 4294901760
    %v1901 = vsub.f32 %v1504, %v1900
    %v1902 = vand.u32 %v1901, 4294901760
    %v1903 = vsub.f32 %v1901, %v1902
    %v1904 = vand.u32 %v1903, 4294901760
    %1905 = vmatpush1.msra.mxu0 %v1904
    %v1906 = vand.u32 %v1507, 4294901760
    %v1907 = vsub.f32 %v1507, %v1906
    %v1908 = vand.u32 %v1907, 4294901760
    %v1909 = vsub.f32 %v1907, %v1908
    %v1910 = vand.u32 %v1909, 4294901760
    %1911 = vmatprep.subr.mxu0 %v1910
    %v1912 = vand.u32 %v1506, 4294901760
    %v1913 = vsub.f32 %v1506, %v1912
    %v1914 = vand.u32 %v1913, 4294901760
    %v1915 = vsub.f32 %v1913, %v1914
    %v1916 = vand.u32 %v1915, 4294901760
    %1917 = vmatpush1.msra.mxu0 %v1916
    %v1918 = vand.u32 %v1509, 4294901760
    %v1919 = vsub.f32 %v1509, %v1918
    %v1920 = vand.u32 %v1919, 4294901760
    %v1921 = vsub.f32 %v1919, %v1920
    %v1922 = vand.u32 %v1921, 4294901760
    %1923 = vmatprep.subr.mxu0 %v1922
    %v1924 = vand.u32 %v1508, 4294901760
    %v1925 = vsub.f32 %v1508, %v1924
    %v1926 = vand.u32 %v1925, 4294901760
    %v1927 = vsub.f32 %v1925, %v1926
    %v1928 = vand.u32 %v1927, 4294901760
    %1929 = vmatpush1.msra.mxu0 %v1928
    %v1930 = vand.u32 %v1511, 4294901760
    %v1931 = vsub.f32 %v1511, %v1930
    %v1932 = vand.u32 %v1931, 4294901760
    %v1933 = vsub.f32 %v1931, %v1932
    %v1934 = vand.u32 %v1933, 4294901760
    %1935 = vmatprep.subr.mxu0 %v1934
    %v1936 = vand.u32 %v1510, 4294901760
    %v1937 = vsub.f32 %v1510, %v1936
    %v1938 = vand.u32 %v1937, 4294901760
    %v1939 = vsub.f32 %v1937, %v1938
    %v1940 = vand.u32 %v1939, 4294901760
    %1941 = vmatpush1.msra.mxu0 %v1940
    %v1942 = vand.u32 %v1513, 4294901760
    %v1943 = vsub.f32 %v1513, %v1942
    %v1944 = vand.u32 %v1943, 4294901760
    %v1945 = vsub.f32 %v1943, %v1944
    %v1946 = vand.u32 %v1945, 4294901760
    %1947 = vmatprep.subr.mxu0 %v1946
    %v1948 = vand.u32 %v1512, 4294901760
    %v1949 = vsub.f32 %v1512, %v1948
    %v1950 = vand.u32 %v1949, 4294901760
    %v1951 = vsub.f32 %v1949, %v1950
    %v1952 = vand.u32 %v1951, 4294901760
    %1953 = vmatpush1.msra.mxu0 %v1952
    %1954 = vmatprep.subr.mxu0 0.0
    %1955 = vmatpush1.msra.mxu0 0.0
    %1956 = vmatprep.subr.mxu0 0.0
    %1957 = vmatpush1.msra.mxu0 0.0
    %1958 = vmatprep.subr.mxu0 0.0
    %1959 = vmatpush1.msra.mxu0 0.0
    %1960 = vmatprep.subr.mxu0 0.0
    %1961 = vmatpush1.msra.mxu0 0.0
    %1962 = vmatprep.subr.mxu0 0.0
    %1963 = vmatpush1.msra.mxu0 0.0
    %1964 = vmatprep.subr.mxu0 0.0
    %1965 = vmatpush1.msra.mxu0 0.0
    %1966 = vmatprep.subr.mxu0 0.0
    %1967 = vmatpush1.msra.mxu0 0.0
    %1968 = vmatprep.subr.mxu0 0.0
    %1969 = vmatpush1.msra.mxu0 0.0
    %v1970 = vand.u32 %v1516, 4294901760
    %1971 = vmatprep.mubr.f32.mxu0 %v1970
    %v1972 = vand.u32 %v1462, 4294901760
    %1973 = vmatmul.mubr.f32.gmra.mrb[0].mxu0 %v1972
    %v1974 = vpop.f32.mrb[0].mxu0
    %v1975 = vadd.f32 %v1646, %v1974
    %v1976 = vpop.f32.mrb[0].mxu0
    %v1977 = vadd.f32 %v1648, %v1976
    %v1978 = vand.u32 %v1519, 4294901760
    %1979 = vmatprep.mubr.f32.mxu0 %v1978
    %v1980 = vand.u32 %v1464, 4294901760
    %1981 = vmatmul.mubr.f32.gmra.mrb[0].mxu0 %v1980
    %v1982 = vpop.f32.mrb[0].mxu0
    %v1983 = vadd.f32 %v1662, %v1982
    %v1984 = vpop.f32.mrb[0].mxu0
    %v1985 = vadd.f32 %v1664, %v1984
    %1986 = vdwg.mxu0
    %v1987 = vand.u32 %v1467, 4294901760
    %v1988 = vsub.f32 %v1467, %v1987
    %1989 = vmatprep.subr.mxu0 %v1988
    %v1990 = vand.u32 %v1466, 4294901760
    %v1991 = vsub.f32 %v1466, %v1990
    %1992 = vmatpush1.msra.mxu0 %v1991
    %v1993 = vand.u32 %v1469, 4294901760
    %v1994 = vsub.f32 %v1469, %v1993
    %1995 = vmatprep.subr.mxu0 %v1994
    %v1996 = vand.u32 %v1468, 4294901760
    %v1997 = vsub.f32 %v1468, %v1996
    %1998 = vmatpush1.msra.mxu0 %v1997
    %v1999 = vand.u32 %v1471, 4294901760
    %v2000 = vsub.f32 %v1471, %v1999
    %2001 = vmatprep.subr.mxu0 %v2000
    %v2002 = vand.u32 %v1470, 4294901760
    %v2003 = vsub.f32 %v1470, %v2002
    %2004 = vmatpush1.msra.mxu0 %v2003
    %v2005 = vand.u32 %v1473, 4294901760
    %v2006 = vsub.f32 %v1473, %v2005
    %2007 = vmatprep.subr.mxu0 %v2006
    %v2008 = vand.u32 %v1472, 4294901760
    %v2009 = vsub.f32 %v1472, %v2008
    %2010 = vmatpush1.msra.mxu0 %v2009
    %v2011 = vand.u32 %v1475, 4294901760
    %v2012 = vsub.f32 %v1475, %v2011
    %2013 = vmatprep.subr.mxu0 %v2012
    %v2014 = vand.u32 %v1474, 4294901760
    %v2015 = vsub.f32 %v1474, %v2014
    %2016 = vmatpush1.msra.mxu0 %v2015
    %v2017 = vand.u32 %v1477, 4294901760
    %v2018 = vsub.f32 %v1477, %v2017
    %2019 = vmatprep.subr.mxu0 %v2018
    %v2020 = vand.u32 %v1476, 4294901760
    %v2021 = vsub.f32 %v1476, %v2020
    %2022 = vmatpush1.msra.mxu0 %v2021
    %v2023 = vand.u32 %v1479, 4294901760
    %v2024 = vsub.f32 %v1479, %v2023
    %2025 = vmatprep.subr.mxu0 %v2024
    %v2026 = vand.u32 %v1478, 4294901760
    %v2027 = vsub.f32 %v1478, %v2026
    %2028 = vmatpush1.msra.mxu0 %v2027
    %v2029 = vand.u32 %v1481, 4294901760
    %v2030 = vsub.f32 %v1481, %v2029
    %2031 = vmatprep.subr.mxu0 %v2030
    %v2032 = vand.u32 %v1480, 4294901760
    %v2033 = vsub.f32 %v1480, %v2032
    %2034 = vmatpush1.msra.mxu0 %v2033
    %v2035 = vand.u32 %v1483, 4294901760
    %v2036 = vsub.f32 %v1483, %v2035
    %2037 = vmatprep.subr.mxu0 %v2036
    %v2038 = vand.u32 %v1482, 4294901760
    %v2039 = vsub.f32 %v1482, %v2038
    %2040 = vmatpush1.msra.mxu0 %v2039
    %v2041 = vand.u32 %v1485, 4294901760
    %v2042 = vsub.f32 %v1485, %v2041
    %2043 = vmatprep.subr.mxu0 %v2042
    %v2044 = vand.u32 %v1484, 4294901760
    %v2045 = vsub.f32 %v1484, %v2044
    %2046 = vmatpush1.msra.mxu0 %v2045
    %v2047 = vand.u32 %v1487, 4294901760
    %v2048 = vsub.f32 %v1487, %v2047
    %2049 = vmatprep.subr.mxu0 %v2048
    %v2050 = vand.u32 %v1486, 4294901760
    %v2051 = vsub.f32 %v1486, %v2050
    %2052 = vmatpush1.msra.mxu0 %v2051
    %v2053 = vand.u32 %v1489, 4294901760
    %v2054 = vsub.f32 %v1489, %v2053
    %2055 = vmatprep.subr.mxu0 %v2054
    %v2056 = vand.u32 %v1488, 4294901760
    %v2057 = vsub.f32 %v1488, %v2056
    %2058 = vmatpush1.msra.mxu0 %v2057
    %v2059 = vand.u32 %v1491, 4294901760
    %v2060 = vsub.f32 %v1491, %v2059
    %2061 = vmatprep.subr.mxu0 %v2060
    %v2062 = vand.u32 %v1490, 4294901760
    %v2063 = vsub.f32 %v1490, %v2062
    %2064 = vmatpush1.msra.mxu0 %v2063
    %v2065 = vand.u32 %v1493, 4294901760
    %v2066 = vsub.f32 %v1493, %v2065
    %2067 = vmatprep.subr.mxu0 %v2066
    %v2068 = vand.u32 %v1492, 4294901760
    %v2069 = vsub.f32 %v1492, %v2068
    %2070 = vmatpush1.msra.mxu0 %v2069
    %v2071 = vand.u32 %v1495, 4294901760
    %v2072 = vsub.f32 %v1495, %v2071
    %2073 = vmatprep.subr.mxu0 %v2072
    %v2074 = vand.u32 %v1494, 4294901760
    %v2075 = vsub.f32 %v1494, %v2074
    %2076 = vmatpush1.msra.mxu0 %v2075
    %v2077 = vand.u32 %v1497, 4294901760
    %v2078 = vsub.f32 %v1497, %v2077
    %2079 = vmatprep.subr.mxu0 %v2078
    %v2080 = vand.u32 %v1496, 4294901760
    %v2081 = vsub.f32 %v1496, %v2080
    %2082 = vmatpush1.msra.mxu0 %v2081
    %v2083 = vand.u32 %v1499, 4294901760
    %v2084 = vsub.f32 %v1499, %v2083
    %2085 = vmatprep.subr.mxu0 %v2084
    %v2086 = vand.u32 %v1498, 4294901760
    %v2087 = vsub.f32 %v1498, %v2086
    %2088 = vmatpush1.msra.mxu0 %v2087
    %v2089 = vand.u32 %v1501, 4294901760
    %v2090 = vsub.f32 %v1501, %v2089
    %2091 = vmatprep.subr.mxu0 %v2090
    %v2092 = vand.u32 %v1500, 4294901760
    %v2093 = vsub.f32 %v1500, %v2092
    %2094 = vmatpush1.msra.mxu0 %v2093
    %v2095 = vand.u32 %v1503, 4294901760
    %v2096 = vsub.f32 %v1503, %v2095
    %2097 = vmatprep.subr.mxu0 %v2096
    %v2098 = vand.u32 %v1502, 4294901760
    %v2099 = vsub.f32 %v1502, %v2098
    %2100 = vmatpush1.msra.mxu0 %v2099
    %v2101 = vand.u32 %v1505, 4294901760
    %v2102 = vsub.f32 %v1505, %v2101
    %2103 = vmatprep.subr.mxu0 %v2102
    %v2104 = vand.u32 %v1504, 4294901760
    %v2105 = vsub.f32 %v1504, %v2104
    %2106 = vmatpush1.msra.mxu0 %v2105
    %v2107 = vand.u32 %v1507, 4294901760
    %v2108 = vsub.f32 %v1507, %v2107
    %2109 = vmatprep.subr.mxu0 %v2108
    %v2110 = vand.u32 %v1506, 4294901760
    %v2111 = vsub.f32 %v1506, %v2110
    %2112 = vmatpush1.msra.mxu0 %v2111
    %v2113 = vand.u32 %v1509, 4294901760
    %v2114 = vsub.f32 %v1509, %v2113
    %2115 = vmatprep.subr.mxu0 %v2114
    %v2116 = vand.u32 %v1508, 4294901760
    %v2117 = vsub.f32 %v1508, %v2116
    %2118 = vmatpush1.msra.mxu0 %v2117
    %v2119 = vand.u32 %v1511, 4294901760
    %v2120 = vsub.f32 %v1511, %v2119
    %2121 = vmatprep.subr.mxu0 %v2120
    %v2122 = vand.u32 %v1510, 4294901760
    %v2123 = vsub.f32 %v1510, %v2122
    %2124 = vmatpush1.msra.mxu0 %v2123
    %v2125 = vand.u32 %v1513, 4294901760
    %v2126 = vsub.f32 %v1513, %v2125
    %2127 = vmatprep.subr.mxu0 %v2126
    %v2128 = vand.u32 %v1512, 4294901760
    %v2129 = vsub.f32 %v1512, %v2128
    %2130 = vmatpush1.msra.mxu0 %v2129
    %2131 = vmatprep.subr.mxu0 0.0
    %2132 = vmatpush1.msra.mxu0 0.0
    %2133 = vmatprep.subr.mxu0 0.0
    %2134 = vmatpush1.msra.mxu0 0.0
    %2135 = vmatprep.subr.mxu0 0.0
    %2136 = vmatpush1.msra.mxu0 0.0
    %2137 = vmatprep.subr.mxu0 0.0
    %2138 = vmatpush1.msra.mxu0 0.0
    %2139 = vmatprep.subr.mxu0 0.0
    %2140 = vmatpush1.msra.mxu0 0.0
    %2141 = vmatprep.subr.mxu0 0.0
    %2142 = vmatpush1.msra.mxu0 0.0
    %2143 = vmatprep.subr.mxu0 0.0
    %2144 = vmatpush1.msra.mxu0 0.0
    %2145 = vmatprep.subr.mxu0 0.0
    %2146 = vmatpush1.msra.mxu0 0.0
    %v2147 = vand.u32 %v1516, 4294901760
    %v2148 = vsub.f32 %v1516, %v2147
    %2149 = vmatprep.mubr.f32.mxu0 %v2148
    %v2150 = vand.u32 %v1462, 4294901760
    %v2151 = vsub.f32 %v1462, %v2150
    %2152 = vmatmul.mubr.f32.gmra.mrb[0].mxu0 %v2151
    %v2153 = vpop.f32.mrb[0].mxu0
    %v2154 = vadd.f32 %v1975, %v2153
    %v2155 = vpop.f32.mrb[0].mxu0
    %v2156 = vadd.f32 %v1977, %v2155
    %v2157 = vand.u32 %v1519, 4294901760
    %v2158 = vsub.f32 %v1519, %v2157
    %2159 = vmatprep.mubr.f32.mxu0 %v2158
    %v2160 = vand.u32 %v1464, 4294901760
    %v2161 = vsub.f32 %v1464, %v2160
    %2162 = vmatmul.mubr.f32.gmra.mrb[0].mxu0 %v2161
    %v2163 = vpop.f32.mrb[0].mxu0
    %v2164 = vadd.f32 %v1983, %v2163
    %v2165 = vpop.f32.mrb[0].mxu0
    %v2166 = vadd.f32 %v1985, %v2165
    %2167 = vdwg.mxu0
    %v2168 = vand.u32 %v1467, 4294901760
    %2169 = vmatprep.subr.mxu0 %v2168
    %v2170 = vand.u32 %v1466, 4294901760
    %2171 = vmatpush1.msra.mxu0 %v2170
    %v2172 = vand.u32 %v1469, 4294901760
    %2173 = vmatprep.subr.mxu0 %v2172
    %v2174 = vand.u32 %v1468, 4294901760
    %2175 = vmatpush1.msra.mxu0 %v2174
    %v2176 = vand.u32 %v1471, 4294901760
    %2177 = vmatprep.subr.mxu0 %v2176
    %v2178 = vand.u32 %v1470, 4294901760
    %2179 = vmatpush1.msra.mxu0 %v2178
    %v2180 = vand.u32 %v1473, 4294901760
    %2181 = vmatprep.subr.mxu0 %v2180
    %v2182 = vand.u32 %v1472, 4294901760
    %2183 = vmatpush1.msra.mxu0 %v2182
    %v2184 = vand.u32 %v1475, 4294901760
    %2185 = vmatprep.subr.mxu0 %v2184
    %v2186 = vand.u32 %v1474, 4294901760
    %2187 = vmatpush1.msra.mxu0 %v2186
    %v2188 = vand.u32 %v1477, 4294901760
    %2189 = vmatprep.subr.mxu0 %v2188
    %v2190 = vand.u32 %v1476, 4294901760
    %2191 = vmatpush1.msra.mxu0 %v2190
    %v2192 = vand.u32 %v1479, 4294901760
    %2193 = vmatprep.subr.mxu0 %v2192
    %v2194 = vand.u32 %v1478, 4294901760
    %2195 = vmatpush1.msra.mxu0 %v2194
    %v2196 = vand.u32 %v1481, 4294901760
    %2197 = vmatprep.subr.mxu0 %v2196
    %v2198 = vand.u32 %v1480, 4294901760
    %2199 = vmatpush1.msra.mxu0 %v2198
    %v2200 = vand.u32 %v1483, 4294901760
    %2201 = vmatprep.subr.mxu0 %v2200
    %v2202 = vand.u32 %v1482, 4294901760
    %2203 = vmatpush1.msra.mxu0 %v2202
    %v2204 = vand.u32 %v1485, 4294901760
    %2205 = vmatprep.subr.mxu0 %v2204
    %v2206 = vand.u32 %v1484, 4294901760
    %2207 = vmatpush1.msra.mxu0 %v2206
    %v2208 = vand.u32 %v1487, 4294901760
    %2209 = vmatprep.subr.mxu0 %v2208
    %v2210 = vand.u32 %v1486, 4294901760
    %2211 = vmatpush1.msra.mxu0 %v2210
    %v2212 = vand.u32 %v1489, 4294901760
    %2213 = vmatprep.subr.mxu0 %v2212
    %v2214 = vand.u32 %v1488, 4294901760
    %2215 = vmatpush1.msra.mxu0 %v2214
    %v2216 = vand.u32 %v1491, 4294901760
    %2217 = vmatprep.subr.mxu0 %v2216
    %v2218 = vand.u32 %v1490, 4294901760
    %2219 = vmatpush1.msra.mxu0 %v2218
    %v2220 = vand.u32 %v1493, 4294901760
    %2221 = vmatprep.subr.mxu0 %v2220
    %v2222 = vand.u32 %v1492, 4294901760
    %2223 = vmatpush1.msra.mxu0 %v2222
    %v2224 = vand.u32 %v1495, 4294901760
    %2225 = vmatprep.subr.mxu0 %v2224
    %v2226 = vand.u32 %v1494, 4294901760
    %2227 = vmatpush1.msra.mxu0 %v2226
    %v2228 = vand.u32 %v1497, 4294901760
    %2229 = vmatprep.subr.mxu0 %v2228
    %v2230 = vand.u32 %v1496, 4294901760
    %2231 = vmatpush1.msra.mxu0 %v2230
    %v2232 = vand.u32 %v1499, 4294901760
    %2233 = vmatprep.subr.mxu0 %v2232
    %v2234 = vand.u32 %v1498, 4294901760
    %2235 = vmatpush1.msra.mxu0 %v2234
    %v2236 = vand.u32 %v1501, 4294901760
    %2237 = vmatprep.subr.mxu0 %v2236
    %v2238 = vand.u32 %v1500, 4294901760
    %2239 = vmatpush1.msra.mxu0 %v2238
    %v2240 = vand.u32 %v1503, 4294901760
    %2241 = vmatprep.subr.mxu0 %v2240
    %v2242 = vand.u32 %v1502, 4294901760
    %2243 = vmatpush1.msra.mxu0 %v2242
    %v2244 = vand.u32 %v1505, 4294901760
    %2245 = vmatprep.subr.mxu0 %v2244
    %v2246 = vand.u32 %v1504, 4294901760
    %2247 = vmatpush1.msra.mxu0 %v2246
    %v2248 = vand.u32 %v1507, 4294901760
    %2249 = vmatprep.subr.mxu0 %v2248
    %v2250 = vand.u32 %v1506, 4294901760
    %2251 = vmatpush1.msra.mxu0 %v2250
    %v2252 = vand.u32 %v1509, 4294901760
    %2253 = vmatprep.subr.mxu0 %v2252
    %v2254 = vand.u32 %v1508, 4294901760
    %2255 = vmatpush1.msra.mxu0 %v2254
    %v2256 = vand.u32 %v1511, 4294901760
    %2257 = vmatprep.subr.mxu0 %v2256
    %v2258 = vand.u32 %v1510, 4294901760
    %2259 = vmatpush1.msra.mxu0 %v2258
    %v2260 = vand.u32 %v1513, 4294901760
    %2261 = vmatprep.subr.mxu0 %v2260
    %v2262 = vand.u32 %v1512, 4294901760
    %2263 = vmatpush1.msra.mxu0 %v2262
    %2264 = vmatprep.subr.mxu0 0.0
    %2265 = vmatpush1.msra.mxu0 0.0
    %2266 = vmatprep.subr.mxu0 0.0
    %2267 = vmatpush1.msra.mxu0 0.0
    %2268 = vmatprep.subr.mxu0 0.0
    %2269 = vmatpush1.msra.mxu0 0.0
    %2270 = vmatprep.subr.mxu0 0.0
    %2271 = vmatpush1.msra.mxu0 0.0
    %2272 = vmatprep.subr.mxu0 0.0
    %2273 = vmatpush1.msra.mxu0 0.0
    %2274 = vmatprep.subr.mxu0 0.0
    %2275 = vmatpush1.msra.mxu0 0.0
    %2276 = vmatprep.subr.mxu0 0.0
    %2277 = vmatpush1.msra.mxu0 0.0
    %2278 = vmatprep.subr.mxu0 0.0
    %2279 = vmatpush1.msra.mxu0 0.0
    %v2280 = vand.u32 %v1516, 4294901760
    %v2281 = vsub.f32 %v1516, %v2280
    %v2282 = vand.u32 %v2281, 4294901760
    %2283 = vmatprep.mubr.f32.mxu0 %v2282
    %v2284 = vand.u32 %v1462, 4294901760
    %v2285 = vsub.f32 %v1462, %v2284
    %v2286 = vand.u32 %v2285, 4294901760
    %2287 = vmatmul.mubr.f32.gmra.mrb[0].mxu0 %v2286
    %v2288 = vpop.f32.mrb[0].mxu0
    %v2289 = vadd.f32 %v2154, %v2288
    %v2290 = vpop.f32.mrb[0].mxu0
    %v2291 = vadd.f32 %v2156, %v2290
    %v2292 = vand.u32 %v1519, 4294901760
    %v2293 = vsub.f32 %v1519, %v2292
    %v2294 = vand.u32 %v2293, 4294901760
    %2295 = vmatprep.mubr.f32.mxu0 %v2294
    %v2296 = vand.u32 %v1464, 4294901760
    %v2297 = vsub.f32 %v1464, %v2296
    %v2298 = vand.u32 %v2297, 4294901760
    %2299 = vmatmul.mubr.f32.gmra.mrb[0].mxu0 %v2298
    %v2300 = vpop.f32.mrb[0].mxu0
    %v2301 = vadd.f32 %v2164, %v2300
    %v2302 = vpop.f32.mrb[0].mxu0
    %v2303 = vadd.f32 %v2166, %v2302
    %2304 = vdwg.mxu0
    %v2305 = vand.u32 %v1467, 4294901760
    %v2306 = vsub.f32 %v1467, %v2305
    %v2307 = vand.u32 %v2306, 4294901760
    %2308 = vmatprep.subr.mxu0 %v2307
    %v2309 = vand.u32 %v1466, 4294901760
    %v2310 = vsub.f32 %v1466, %v2309
    %v2311 = vand.u32 %v2310, 4294901760
    %2312 = vmatpush1.msra.mxu0 %v2311
    %v2313 = vand.u32 %v1469, 4294901760
    %v2314 = vsub.f32 %v1469, %v2313
    %v2315 = vand.u32 %v2314, 4294901760
    %2316 = vmatprep.subr.mxu0 %v2315
    %v2317 = vand.u32 %v1468, 4294901760
    %v2318 = vsub.f32 %v1468, %v2317
    %v2319 = vand.u32 %v2318, 4294901760
    %2320 = vmatpush1.msra.mxu0 %v2319
    %v2321 = vand.u32 %v1471, 4294901760
    %v2322 = vsub.f32 %v1471, %v2321
    %v2323 = vand.u32 %v2322, 4294901760
    %2324 = vmatprep.subr.mxu0 %v2323
    %v2325 = vand.u32 %v1470, 4294901760
    %v2326 = vsub.f32 %v1470, %v2325
    %v2327 = vand.u32 %v2326, 4294901760
    %2328 = vmatpush1.msra.mxu0 %v2327
    %v2329 = vand.u32 %v1473, 4294901760
    %v2330 = vsub.f32 %v1473, %v2329
    %v2331 = vand.u32 %v2330, 4294901760
    %2332 = vmatprep.subr.mxu0 %v2331
    %v2333 = vand.u32 %v1472, 4294901760
    %v2334 = vsub.f32 %v1472, %v2333
    %v2335 = vand.u32 %v2334, 4294901760
    %2336 = vmatpush1.msra.mxu0 %v2335
    %v2337 = vand.u32 %v1475, 4294901760
    %v2338 = vsub.f32 %v1475, %v2337
    %v2339 = vand.u32 %v2338, 4294901760
    %2340 = vmatprep.subr.mxu0 %v2339
    %v2341 = vand.u32 %v1474, 4294901760
    %v2342 = vsub.f32 %v1474, %v2341
    %v2343 = vand.u32 %v2342, 4294901760
    %2344 = vmatpush1.msra.mxu0 %v2343
    %v2345 = vand.u32 %v1477, 4294901760
    %v2346 = vsub.f32 %v1477, %v2345
    %v2347 = vand.u32 %v2346, 4294901760
    %2348 = vmatprep.subr.mxu0 %v2347
    %v2349 = vand.u32 %v1476, 4294901760
    %v2350 = vsub.f32 %v1476, %v2349
    %v2351 = vand.u32 %v2350, 4294901760
    %2352 = vmatpush1.msra.mxu0 %v2351
    %v2353 = vand.u32 %v1479, 4294901760
    %v2354 = vsub.f32 %v1479, %v2353
    %v2355 = vand.u32 %v2354, 4294901760
    %2356 = vmatprep.subr.mxu0 %v2355
    %v2357 = vand.u32 %v1478, 4294901760
    %v2358 = vsub.f32 %v1478, %v2357
    %v2359 = vand.u32 %v2358, 4294901760
    %2360 = vmatpush1.msra.mxu0 %v2359
    %v2361 = vand.u32 %v1481, 4294901760
    %v2362 = vsub.f32 %v1481, %v2361
    %v2363 = vand.u32 %v2362, 4294901760
    %2364 = vmatprep.subr.mxu0 %v2363
    %v2365 = vand.u32 %v1480, 4294901760
    %v2366 = vsub.f32 %v1480, %v2365
    %v2367 = vand.u32 %v2366, 4294901760
    %2368 = vmatpush1.msra.mxu0 %v2367
    %v2369 = vand.u32 %v1483, 4294901760
    %v2370 = vsub.f32 %v1483, %v2369
    %v2371 = vand.u32 %v2370, 4294901760
    %2372 = vmatprep.subr.mxu0 %v2371
    %v2373 = vand.u32 %v1482, 4294901760
    %v2374 = vsub.f32 %v1482, %v2373
    %v2375 = vand.u32 %v2374, 4294901760
    %2376 = vmatpush1.msra.mxu0 %v2375
    %v2377 = vand.u32 %v1485, 4294901760
    %v2378 = vsub.f32 %v1485, %v2377
    %v2379 = vand.u32 %v2378, 4294901760
    %2380 = vmatprep.subr.mxu0 %v2379
    %v2381 = vand.u32 %v1484, 4294901760
    %v2382 = vsub.f32 %v1484, %v2381
    %v2383 = vand.u32 %v2382, 4294901760
    %2384 = vmatpush1.msra.mxu0 %v2383
    %v2385 = vand.u32 %v1487, 4294901760
    %v2386 = vsub.f32 %v1487, %v2385
    %v2387 = vand.u32 %v2386, 4294901760
    %2388 = vmatprep.subr.mxu0 %v2387
    %v2389 = vand.u32 %v1486, 4294901760
    %v2390 = vsub.f32 %v1486, %v2389
    %v2391 = vand.u32 %v2390, 4294901760
    %2392 = vmatpush1.msra.mxu0 %v2391
    %v2393 = vand.u32 %v1489, 4294901760
    %v2394 = vsub.f32 %v1489, %v2393
    %v2395 = vand.u32 %v2394, 4294901760
    %2396 = vmatprep.subr.mxu0 %v2395
    %v2397 = vand.u32 %v1488, 4294901760
    %v2398 = vsub.f32 %v1488, %v2397
    %v2399 = vand.u32 %v2398, 4294901760
    %2400 = vmatpush1.msra.mxu0 %v2399
    %v2401 = vand.u32 %v1491, 4294901760
    %v2402 = vsub.f32 %v1491, %v2401
    %v2403 = vand.u32 %v2402, 4294901760
    %2404 = vmatprep.subr.mxu0 %v2403
    %v2405 = vand.u32 %v1490, 4294901760
    %v2406 = vsub.f32 %v1490, %v2405
    %v2407 = vand.u32 %v2406, 4294901760
    %2408 = vmatpush1.msra.mxu0 %v2407
    %v2409 = vand.u32 %v1493, 4294901760
    %v2410 = vsub.f32 %v1493, %v2409
    %v2411 = vand.u32 %v2410, 4294901760
    %2412 = vmatprep.subr.mxu0 %v2411
    %v2413 = vand.u32 %v1492, 4294901760
    %v2414 = vsub.f32 %v1492, %v2413
    %v2415 = vand.u32 %v2414, 4294901760
    %2416 = vmatpush1.msra.mxu0 %v2415
    %v2417 = vand.u32 %v1495, 4294901760
    %v2418 = vsub.f32 %v1495, %v2417
    %v2419 = vand.u32 %v2418, 4294901760
    %2420 = vmatprep.subr.mxu0 %v2419
    %v2421 = vand.u32 %v1494, 4294901760
    %v2422 = vsub.f32 %v1494, %v2421
    %v2423 = vand.u32 %v2422, 4294901760
    %2424 = vmatpush1.msra.mxu0 %v2423
    %v2425 = vand.u32 %v1497, 4294901760
    %v2426 = vsub.f32 %v1497, %v2425
    %v2427 = vand.u32 %v2426, 4294901760
    %2428 = vmatprep.subr.mxu0 %v2427
    %v2429 = vand.u32 %v1496, 4294901760
    %v2430 = vsub.f32 %v1496, %v2429
    %v2431 = vand.u32 %v2430, 4294901760
    %2432 = vmatpush1.msra.mxu0 %v2431
    %v2433 = vand.u32 %v1499, 4294901760
    %v2434 = vsub.f32 %v1499, %v2433
    %v2435 = vand.u32 %v2434, 4294901760
    %2436 = vmatprep.subr.mxu0 %v2435
    %v2437 = vand.u32 %v1498, 4294901760
    %v2438 = vsub.f32 %v1498, %v2437
    %v2439 = vand.u32 %v2438, 4294901760
    %2440 = vmatpush1.msra.mxu0 %v2439
    %v2441 = vand.u32 %v1501, 4294901760
    %v2442 = vsub.f32 %v1501, %v2441
    %v2443 = vand.u32 %v2442, 4294901760
    %2444 = vmatprep.subr.mxu0 %v2443
    %v2445 = vand.u32 %v1500, 4294901760
    %v2446 = vsub.f32 %v1500, %v2445
    %v2447 = vand.u32 %v2446, 4294901760
    %2448 = vmatpush1.msra.mxu0 %v2447
    %v2449 = vand.u32 %v1503, 4294901760
    %v2450 = vsub.f32 %v1503, %v2449
    %v2451 = vand.u32 %v2450, 4294901760
    %2452 = vmatprep.subr.mxu0 %v2451
    %v2453 = vand.u32 %v1502, 4294901760
    %v2454 = vsub.f32 %v1502, %v2453
    %v2455 = vand.u32 %v2454, 4294901760
    %2456 = vmatpush1.msra.mxu0 %v2455
    %v2457 = vand.u32 %v1505, 4294901760
    %v2458 = vsub.f32 %v1505, %v2457
    %v2459 = vand.u32 %v2458, 4294901760
    %2460 = vmatprep.subr.mxu0 %v2459
    %v2461 = vand.u32 %v1504, 4294901760
    %v2462 = vsub.f32 %v1504, %v2461
    %v2463 = vand.u32 %v2462, 4294901760
    %2464 = vmatpush1.msra.mxu0 %v2463
    %v2465 = vand.u32 %v1507, 4294901760
    %v2466 = vsub.f32 %v1507, %v2465
    %v2467 = vand.u32 %v2466, 4294901760
    %2468 = vmatprep.subr.mxu0 %v2467
    %v2469 = vand.u32 %v1506, 4294901760
    %v2470 = vsub.f32 %v1506, %v2469
    %v2471 = vand.u32 %v2470, 4294901760
    %2472 = vmatpush1.msra.mxu0 %v2471
    %v2473 = vand.u32 %v1509, 4294901760
    %v2474 = vsub.f32 %v1509, %v2473
    %v2475 = vand.u32 %v2474, 4294901760
    %2476 = vmatprep.subr.mxu0 %v2475
    %v2477 = vand.u32 %v1508, 4294901760
    %v2478 = vsub.f32 %v1508, %v2477
    %v2479 = vand.u32 %v2478, 4294901760
    %2480 = vmatpush1.msra.mxu0 %v2479
    %v2481 = vand.u32 %v1511, 4294901760
    %v2482 = vsub.f32 %v1511, %v2481
    %v2483 = vand.u32 %v2482, 4294901760
    %2484 = vmatprep.subr.mxu0 %v2483
    %v2485 = vand.u32 %v1510, 4294901760
    %v2486 = vsub.f32 %v1510, %v2485
    %v2487 = vand.u32 %v2486, 4294901760
    %2488 = vmatpush1.msra.mxu0 %v2487
    %v2489 = vand.u32 %v1513, 4294901760
    %v2490 = vsub.f32 %v1513, %v2489
    %v2491 = vand.u32 %v2490, 4294901760
    %2492 = vmatprep.subr.mxu0 %v2491
    %v2493 = vand.u32 %v1512, 4294901760
    %v2494 = vsub.f32 %v1512, %v2493
    %v2495 = vand.u32 %v2494, 4294901760
    %2496 = vmatpush1.msra.mxu0 %v2495
    %2497 = vmatprep.subr.mxu0 0.0
    %2498 = vmatpush1.msra.mxu0 0.0
    %2499 = vmatprep.subr.mxu0 0.0
    %2500 = vmatpush1.msra.mxu0 0.0
    %2501 = vmatprep.subr.mxu0 0.0
    %2502 = vmatpush1.msra.mxu0 0.0
    %2503 = vmatprep.subr.mxu0 0.0
    %2504 = vmatpush1.msra.mxu0 0.0
    %2505 = vmatprep.subr.mxu0 0.0
    %2506 = vmatpush1.msra.mxu0 0.0
    %2507 = vmatprep.subr.mxu0 0.0
    %2508 = vmatpush1.msra.mxu0 0.0
    %2509 = vmatprep.subr.mxu0 0.0
    %2510 = vmatpush1.msra.mxu0 0.0
    %2511 = vmatprep.subr.mxu0 0.0
    %2512 = vmatpush1.msra.mxu0 0.0
    %v2513 = vand.u32 %v1516, 4294901760
    %2514 = vmatprep.mubr.f32.mxu0 %v2513
    %v2515 = vand.u32 %v1462, 4294901760
    %2516 = vmatmul.mubr.f32.gmra.mrb[0].mxu0 %v2515
    %v2517 = vpop.f32.mrb[0].mxu0
    %v2518 = vadd.f32 %v2289, %v2517
    %v2519 = vpop.f32.mrb[0].mxu0
    %v2520 = vadd.f32 %v2291, %v2519
    %v2521 = vand.u32 %v1519, 4294901760
    %2522 = vmatprep.mubr.f32.mxu0 %v2521
    %v2523 = vand.u32 %v1464, 4294901760
    %2524 = vmatmul.mubr.f32.gmra.mrb[0].mxu0 %v2523
    %v2525 = vpop.f32.mrb[0].mxu0
    %v2526 = vadd.f32 %v2301, %v2525
    %v2527 = vpop.f32.mrb[0].mxu0
    %v2528 = vadd.f32 %v2303, %v2527
    %2529 = vdwg.mxu0
    %v2530 = vand.u32 %v1467, 4294901760
    %2531 = vmatprep.subr.mxu0 %v2530
    %v2532 = vand.u32 %v1466, 4294901760
    %2533 = vmatpush1.msra.mxu0 %v2532
    %v2534 = vand.u32 %v1469, 4294901760
    %2535 = vmatprep.subr.mxu0 %v2534
    %v2536 = vand.u32 %v1468, 4294901760
    %2537 = vmatpush1.msra.mxu0 %v2536
    %v2538 = vand.u32 %v1471, 4294901760
    %2539 = vmatprep.subr.mxu0 %v2538
    %v2540 = vand.u32 %v1470, 4294901760
    %2541 = vmatpush1.msra.mxu0 %v2540
    %v2542 = vand.u32 %v1473, 4294901760
    %2543 = vmatprep.subr.mxu0 %v2542
    %v2544 = vand.u32 %v1472, 4294901760
    %2545 = vmatpush1.msra.mxu0 %v2544
    %v2546 = vand.u32 %v1475, 4294901760
    %2547 = vmatprep.subr.mxu0 %v2546
    %v2548 = vand.u32 %v1474, 4294901760
    %2549 = vmatpush1.msra.mxu0 %v2548
    %v2550 = vand.u32 %v1477, 4294901760
    %2551 = vmatprep.subr.mxu0 %v2550
    %v2552 = vand.u32 %v1476, 4294901760
    %2553 = vmatpush1.msra.mxu0 %v2552
    %v2554 = vand.u32 %v1479, 4294901760
    %2555 = vmatprep.subr.mxu0 %v2554
    %v2556 = vand.u32 %v1478, 4294901760
    %2557 = vmatpush1.msra.mxu0 %v2556
    %v2558 = vand.u32 %v1481, 4294901760
    %2559 = vmatprep.subr.mxu0 %v2558
    %v2560 = vand.u32 %v1480, 4294901760
    %2561 = vmatpush1.msra.mxu0 %v2560
    %v2562 = vand.u32 %v1483, 4294901760
    %2563 = vmatprep.subr.mxu0 %v2562
    %v2564 = vand.u32 %v1482, 4294901760
    %2565 = vmatpush1.msra.mxu0 %v2564
    %v2566 = vand.u32 %v1485, 4294901760
    %2567 = vmatprep.subr.mxu0 %v2566
    %v2568 = vand.u32 %v1484, 4294901760
    %2569 = vmatpush1.msra.mxu0 %v2568
    %v2570 = vand.u32 %v1487, 4294901760
    %2571 = vmatprep.subr.mxu0 %v2570
    %v2572 = vand.u32 %v1486, 4294901760
    %2573 = vmatpush1.msra.mxu0 %v2572
    %v2574 = vand.u32 %v1489, 4294901760
    %2575 = vmatprep.subr.mxu0 %v2574
    %v2576 = vand.u32 %v1488, 4294901760
    %2577 = vmatpush1.msra.mxu0 %v2576
    %v2578 = vand.u32 %v1491, 4294901760
    %2579 = vmatprep.subr.mxu0 %v2578
    %v2580 = vand.u32 %v1490, 4294901760
    %2581 = vmatpush1.msra.mxu0 %v2580
    %v2582 = vand.u32 %v1493, 4294901760
    %2583 = vmatprep.subr.mxu0 %v2582
    %v2584 = vand.u32 %v1492, 4294901760
    %2585 = vmatpush1.msra.mxu0 %v2584
    %v2586 = vand.u32 %v1495, 4294901760
    %2587 = vmatprep.subr.mxu0 %v2586
    %v2588 = vand.u32 %v1494, 4294901760
    %2589 = vmatpush1.msra.mxu0 %v2588
    %v2590 = vand.u32 %v1497, 4294901760
    %2591 = vmatprep.subr.mxu0 %v2590
    %v2592 = vand.u32 %v1496, 4294901760
    %2593 = vmatpush1.msra.mxu0 %v2592
    %v2594 = vand.u32 %v1499, 4294901760
    %2595 = vmatprep.subr.mxu0 %v2594
    %v2596 = vand.u32 %v1498, 4294901760
    %2597 = vmatpush1.msra.mxu0 %v2596
    %v2598 = vand.u32 %v1501, 4294901760
    %2599 = vmatprep.subr.mxu0 %v2598
    %v2600 = vand.u32 %v1500, 4294901760
    %2601 = vmatpush1.msra.mxu0 %v2600
    %v2602 = vand.u32 %v1503, 4294901760
    %2603 = vmatprep.subr.mxu0 %v2602
    %v2604 = vand.u32 %v1502, 4294901760
    %2605 = vmatpush1.msra.mxu0 %v2604
    %v2606 = vand.u32 %v1505, 4294901760
    %2607 = vmatprep.subr.mxu0 %v2606
    %v2608 = vand.u32 %v1504, 4294901760
    %2609 = vmatpush1.msra.mxu0 %v2608
    %v2610 = vand.u32 %v1507, 4294901760
    %2611 = vmatprep.subr.mxu0 %v2610
    %v2612 = vand.u32 %v1506, 4294901760
    %2613 = vmatpush1.msra.mxu0 %v2612
    %v2614 = vand.u32 %v1509, 4294901760
    %2615 = vmatprep.subr.mxu0 %v2614
    %v2616 = vand.u32 %v1508, 4294901760
    %2617 = vmatpush1.msra.mxu0 %v2616
    %v2618 = vand.u32 %v1511, 4294901760
    %2619 = vmatprep.subr.mxu0 %v2618
    %v2620 = vand.u32 %v1510, 4294901760
    %2621 = vmatpush1.msra.mxu0 %v2620
    %v2622 = vand.u32 %v1513, 4294901760
    %2623 = vmatprep.subr.mxu0 %v2622
    %v2624 = vand.u32 %v1512, 4294901760
    %2625 = vmatpush1.msra.mxu0 %v2624
    %2626 = vmatprep.subr.mxu0 0.0
    %2627 = vmatpush1.msra.mxu0 0.0
    %2628 = vmatprep.subr.mxu0 0.0
    %2629 = vmatpush1.msra.mxu0 0.0
    %2630 = vmatprep.subr.mxu0 0.0
    %2631 = vmatpush1.msra.mxu0 0.0
    %2632 = vmatprep.subr.mxu0 0.0
    %2633 = vmatpush1.msra.mxu0 0.0
    %2634 = vmatprep.subr.mxu0 0.0
    %2635 = vmatpush1.msra.mxu0 0.0
    %2636 = vmatprep.subr.mxu0 0.0
    %2637 = vmatpush1.msra.mxu0 0.0
    %2638 = vmatprep.subr.mxu0 0.0
    %2639 = vmatpush1.msra.mxu0 0.0
    %2640 = vmatprep.subr.mxu0 0.0
    %2641 = vmatpush1.msra.mxu0 0.0
    %v2642 = vand.u32 %v1516, 4294901760
    %2643 = vmatprep.mubr.f32.mxu0 %v2642
    %v2644 = vand.u32 %v1462, 4294901760
    %2645 = vmatmul.mubr.f32.gmra.mrb[0].mxu0 %v2644
    %v2646 = vpop.f32.mrb[0].mxu0
    %v2647 = vadd.f32 %v2518, %v2646
    %v2648 = vpop.f32.mrb[0].mxu0
    %v2649 = vadd.f32 %v2520, %v2648
    %v2650 = vand.u32 %v1519, 4294901760
    %2651 = vmatprep.mubr.f32.mxu0 %v2650
    %v2652 = vand.u32 %v1464, 4294901760
    %2653 = vmatmul.mubr.f32.gmra.mrb[0].mxu0 %v2652
    %v2654 = vpop.f32.mrb[0].mxu0
    %v2655 = vadd.f32 %v2526, %v2654
    %v2656 = vpop.f32.mrb[0].mxu0
    %v2657 = vadd.f32 %v2528, %v2656
    %2658 = vdwg.mxu0
    %v2660 = vsel %vm150, %v1434, 0
    %v2663 = vsel %vm150, %v1435, 0
    %vm2665 = vcmask 1045504
    %v2667 = vsel %vm2665, %v1460, 0
    %v2670 = vsel %vm2665, %v1461, 0
    %v2672 = vand.u32 %v1437, 4294901760
    %2673 = vmatprep.subr.mxu0 %v2672
    %v2674 = vand.u32 %v1436, 4294901760
    %2675 = vmatpush1.msra.mxu0 %v2674
    %v2676 = vand.u32 %v1439, 4294901760
    %2677 = vmatprep.subr.mxu0 %v2676
    %v2678 = vand.u32 %v1438, 4294901760
    %2679 = vmatpush1.msra.mxu0 %v2678
    %v2680 = vand.u32 %v1441, 4294901760
    %2681 = vmatprep.subr.mxu0 %v2680
    %v2682 = vand.u32 %v1440, 4294901760
    %2683 = vmatpush1.msra.mxu0 %v2682
    %v2684 = vand.u32 %v1443, 4294901760
    %2685 = vmatprep.subr.mxu0 %v2684
    %v2686 = vand.u32 %v1442, 4294901760
    %2687 = vmatpush1.msra.mxu0 %v2686
    %v2688 = vand.u32 %v1445, 4294901760
    %2689 = vmatprep.subr.mxu0 %v2688
    %v2690 = vand.u32 %v1444, 4294901760
    %2691 = vmatpush1.msra.mxu0 %v2690
    %v2692 = vand.u32 %v1447, 4294901760
    %2693 = vmatprep.subr.mxu0 %v2692
    %v2694 = vand.u32 %v1446, 4294901760
    %2695 = vmatpush1.msra.mxu0 %v2694
    %v2696 = vand.u32 %v1449, 4294901760
    %2697 = vmatprep.subr.mxu0 %v2696
    %v2698 = vand.u32 %v1448, 4294901760
    %2699 = vmatpush1.msra.mxu0 %v2698
    %v2700 = vand.u32 %v1451, 4294901760
    %2701 = vmatprep.subr.mxu0 %v2700
    %v2702 = vand.u32 %v1450, 4294901760
    %2703 = vmatpush1.msra.mxu0 %v2702
    %v2704 = vand.u32 %v1453, 4294901760
    %2705 = vmatprep.subr.mxu0 %v2704
    %v2706 = vand.u32 %v1452, 4294901760
    %2707 = vmatpush1.msra.mxu0 %v2706
    %v2708 = vand.u32 %v1455, 4294901760
    %2709 = vmatprep.subr.mxu0 %v2708
    %v2710 = vand.u32 %v1454, 4294901760
    %2711 = vmatpush1.msra.mxu0 %v2710
    %v2712 = vand.u32 %v1457, 4294901760
    %2713 = vmatprep.subr.mxu0 %v2712
    %v2714 = vand.u32 %v1456, 4294901760
    %2715 = vmatpush1.msra.mxu0 %v2714
    %v2716 = vand.u32 %v1459, 4294901760
    %2717 = vmatprep.subr.mxu0 %v2716
    %v2718 = vand.u32 %v1458, 4294901760
    %2719 = vmatpush1.msra.mxu0 %v2718
    %v2720 = vand.u32 %v2670, 4294901760
    %2721 = vmatprep.subr.mxu0 %v2720
    %v2722 = vand.u32 %v2667, 4294901760
    %2723 = vmatpush1.msra.mxu0 %v2722
    %2724 = vmatprep.subr.mxu0 0.0
    %2725 = vmatpush1.msra.mxu0 0.0
    %2726 = vmatprep.subr.mxu0 0.0
    %2727 = vmatpush1.msra.mxu0 0.0
    %2728 = vmatprep.subr.mxu0 0.0
    %2729 = vmatpush1.msra.mxu0 0.0
    %2730 = vmatprep.subr.mxu0 0.0
    %2731 = vmatpush1.msra.mxu0 0.0
    %2732 = vmatprep.subr.mxu0 0.0
    %2733 = vmatpush1.msra.mxu0 0.0
    %2734 = vmatprep.subr.mxu0 0.0
    %2735 = vmatpush1.msra.mxu0 0.0
    %2736 = vmatprep.subr.mxu0 0.0
    %2737 = vmatpush1.msra.mxu0 0.0
    %2738 = vmatprep.subr.mxu0 0.0
    %2739 = vmatpush1.msra.mxu0 0.0
    %2740 = vmatprep.subr.mxu0 0.0
    %2741 = vmatpush1.msra.mxu0 0.0
    %2742 = vmatprep.subr.mxu0 0.0
    %2743 = vmatpush1.msra.mxu0 0.0
    %2744 = vmatprep.subr.mxu0 0.0
    %2745 = vmatpush1.msra.mxu0 0.0
    %2746 = vmatprep.subr.mxu0 0.0
    %2747 = vmatpush1.msra.mxu0 0.0
    %2748 = vmatprep.subr.mxu0 0.0
    %2749 = vmatpush1.msra.mxu0 0.0
    %2750 = vmatprep.subr.mxu0 0.0
    %2751 = vmatpush1.msra.mxu0 0.0
    %2752 = vmatprep.subr.mxu0 0.0
    %2753 = vmatpush1.msra.mxu0 0.0
    %2754 = vmatprep.subr.mxu0 0.0
    %2755 = vmatpush1.msra.mxu0 0.0
    %2756 = vmatprep.subr.mxu0 0.0
    %2757 = vmatpush1.msra.mxu0 0.0
    %2758 = vmatprep.subr.mxu0 0.0
    %2759 = vmatpush1.msra.mxu0 0.0
    %2760 = vmatprep.subr.mxu0 0.0
    %2761 = vmatpush1.msra.mxu0 0.0
    %2762 = vmatprep.mubr.f32.mxu0 0.0
    %v2763 = vand.u32 %v2660, 4294901760
    %v2764 = vsub.f32 %v2660, %v2763
    %v2765 = vand.u32 %v2764, 4294901760
    %v2766 = vsub.f32 %v2764, %v2765
    %v2767 = vand.u32 %v2766, 4294901760
    %2768 = vmatmul.mubr.f32.gmra.mrb[0].mxu0 %v2767
    %v2769 = vpop.f32.mrb[0].mxu0
    %v2770 = vadd.f32 %v2647, %v2769
    %v2771 = vpop.f32.mrb[0].mxu0
    %v2772 = vadd.f32 %v2649, %v2771
    %2773 = vmatprep.mubr.f32.mxu0 0.0
    %v2774 = vand.u32 %v2663, 4294901760
    %v2775 = vsub.f32 %v2663, %v2774
    %v2776 = vand.u32 %v2775, 4294901760
    %v2777 = vsub.f32 %v2775, %v2776
    %v2778 = vand.u32 %v2777, 4294901760
    %2779 = vmatmul.mubr.f32.gmra.mrb[0].mxu0 %v2778
    %v2780 = vpop.f32.mrb[0].mxu0
    %v2781 = vadd.f32 %v2655, %v2780
    %v2782 = vpop.f32.mrb[0].mxu0
    %v2783 = vadd.f32 %v2657, %v2782
    %2784 = vdwg.mxu0
    %v2785 = vand.u32 %v1437, 4294901760
    %v2786 = vsub.f32 %v1437, %v2785
    %v2787 = vand.u32 %v2786, 4294901760
    %v2788 = vsub.f32 %v2786, %v2787
    %v2789 = vand.u32 %v2788, 4294901760
    %2790 = vmatprep.subr.mxu0 %v2789
    %v2791 = vand.u32 %v1436, 4294901760
    %v2792 = vsub.f32 %v1436, %v2791
    %v2793 = vand.u32 %v2792, 4294901760
    %v2794 = vsub.f32 %v2792, %v2793
    %v2795 = vand.u32 %v2794, 4294901760
    %2796 = vmatpush1.msra.mxu0 %v2795
    %v2797 = vand.u32 %v1439, 4294901760
    %v2798 = vsub.f32 %v1439, %v2797
    %v2799 = vand.u32 %v2798, 4294901760
    %v2800 = vsub.f32 %v2798, %v2799
    %v2801 = vand.u32 %v2800, 4294901760
    %2802 = vmatprep.subr.mxu0 %v2801
    %v2803 = vand.u32 %v1438, 4294901760
    %v2804 = vsub.f32 %v1438, %v2803
    %v2805 = vand.u32 %v2804, 4294901760
    %v2806 = vsub.f32 %v2804, %v2805
    %v2807 = vand.u32 %v2806, 4294901760
    %2808 = vmatpush1.msra.mxu0 %v2807
    %v2809 = vand.u32 %v1441, 4294901760
    %v2810 = vsub.f32 %v1441, %v2809
    %v2811 = vand.u32 %v2810, 4294901760
    %v2812 = vsub.f32 %v2810, %v2811
    %v2813 = vand.u32 %v2812, 4294901760
    %2814 = vmatprep.subr.mxu0 %v2813
    %v2815 = vand.u32 %v1440, 4294901760
    %v2816 = vsub.f32 %v1440, %v2815
    %v2817 = vand.u32 %v2816, 4294901760
    %v2818 = vsub.f32 %v2816, %v2817
    %v2819 = vand.u32 %v2818, 4294901760
    %2820 = vmatpush1.msra.mxu0 %v2819
    %v2821 = vand.u32 %v1443, 4294901760
    %v2822 = vsub.f32 %v1443, %v2821
    %v2823 = vand.u32 %v2822, 4294901760
    %v2824 = vsub.f32 %v2822, %v2823
    %v2825 = vand.u32 %v2824, 4294901760
    %2826 = vmatprep.subr.mxu0 %v2825
    %v2827 = vand.u32 %v1442, 4294901760
    %v2828 = vsub.f32 %v1442, %v2827
    %v2829 = vand.u32 %v2828, 4294901760
    %v2830 = vsub.f32 %v2828, %v2829
    %v2831 = vand.u32 %v2830, 4294901760
    %2832 = vmatpush1.msra.mxu0 %v2831
    %v2833 = vand.u32 %v1445, 4294901760
    %v2834 = vsub.f32 %v1445, %v2833
    %v2835 = vand.u32 %v2834, 4294901760
    %v2836 = vsub.f32 %v2834, %v2835
    %v2837 = vand.u32 %v2836, 4294901760
    %2838 = vmatprep.subr.mxu0 %v2837
    %v2839 = vand.u32 %v1444, 4294901760
    %v2840 = vsub.f32 %v1444, %v2839
    %v2841 = vand.u32 %v2840, 4294901760
    %v2842 = vsub.f32 %v2840, %v2841
    %v2843 = vand.u32 %v2842, 4294901760
    %2844 = vmatpush1.msra.mxu0 %v2843
    %v2845 = vand.u32 %v1447, 4294901760
    %v2846 = vsub.f32 %v1447, %v2845
    %v2847 = vand.u32 %v2846, 4294901760
    %v2848 = vsub.f32 %v2846, %v2847
    %v2849 = vand.u32 %v2848, 4294901760
    %2850 = vmatprep.subr.mxu0 %v2849
    %v2851 = vand.u32 %v1446, 4294901760
    %v2852 = vsub.f32 %v1446, %v2851
    %v2853 = vand.u32 %v2852, 4294901760
    %v2854 = vsub.f32 %v2852, %v2853
    %v2855 = vand.u32 %v2854, 4294901760
    %2856 = vmatpush1.msra.mxu0 %v2855
    %v2857 = vand.u32 %v1449, 4294901760
    %v2858 = vsub.f32 %v1449, %v2857
    %v2859 = vand.u32 %v2858, 4294901760
    %v2860 = vsub.f32 %v2858, %v2859
    %v2861 = vand.u32 %v2860, 4294901760
    %2862 = vmatprep.subr.mxu0 %v2861
    %v2863 = vand.u32 %v1448, 4294901760
    %v2864 = vsub.f32 %v1448, %v2863
    %v2865 = vand.u32 %v2864, 4294901760
    %v2866 = vsub.f32 %v2864, %v2865
    %v2867 = vand.u32 %v2866, 4294901760
    %2868 = vmatpush1.msra.mxu0 %v2867
    %v2869 = vand.u32 %v1451, 4294901760
    %v2870 = vsub.f32 %v1451, %v2869
    %v2871 = vand.u32 %v2870, 4294901760
    %v2872 = vsub.f32 %v2870, %v2871
    %v2873 = vand.u32 %v2872, 4294901760
    %2874 = vmatprep.subr.mxu0 %v2873
    %v2875 = vand.u32 %v1450, 4294901760
    %v2876 = vsub.f32 %v1450, %v2875
    %v2877 = vand.u32 %v2876, 4294901760
    %v2878 = vsub.f32 %v2876, %v2877
    %v2879 = vand.u32 %v2878, 4294901760
    %2880 = vmatpush1.msra.mxu0 %v2879
    %v2881 = vand.u32 %v1453, 4294901760
    %v2882 = vsub.f32 %v1453, %v2881
    %v2883 = vand.u32 %v2882, 4294901760
    %v2884 = vsub.f32 %v2882, %v2883
    %v2885 = vand.u32 %v2884, 4294901760
    %2886 = vmatprep.subr.mxu0 %v2885
    %v2887 = vand.u32 %v1452, 4294901760
    %v2888 = vsub.f32 %v1452, %v2887
    %v2889 = vand.u32 %v2888, 4294901760
    %v2890 = vsub.f32 %v2888, %v2889
    %v2891 = vand.u32 %v2890, 4294901760
    %2892 = vmatpush1.msra.mxu0 %v2891
    %v2893 = vand.u32 %v1455, 4294901760
    %v2894 = vsub.f32 %v1455, %v2893
    %v2895 = vand.u32 %v2894, 4294901760
    %v2896 = vsub.f32 %v2894, %v2895
    %v2897 = vand.u32 %v2896, 4294901760
    %2898 = vmatprep.subr.mxu0 %v2897
    %v2899 = vand.u32 %v1454, 4294901760
    %v2900 = vsub.f32 %v1454, %v2899
    %v2901 = vand.u32 %v2900, 4294901760
    %v2902 = vsub.f32 %v2900, %v2901
    %v2903 = vand.u32 %v2902, 4294901760
    %2904 = vmatpush1.msra.mxu0 %v2903
    %v2905 = vand.u32 %v1457, 4294901760
    %v2906 = vsub.f32 %v1457, %v2905
    %v2907 = vand.u32 %v2906, 4294901760
    %v2908 = vsub.f32 %v2906, %v2907
    %v2909 = vand.u32 %v2908, 4294901760
    %2910 = vmatprep.subr.mxu0 %v2909
    %v2911 = vand.u32 %v1456, 4294901760
    %v2912 = vsub.f32 %v1456, %v2911
    %v2913 = vand.u32 %v2912, 4294901760
    %v2914 = vsub.f32 %v2912, %v2913
    %v2915 = vand.u32 %v2914, 4294901760
    %2916 = vmatpush1.msra.mxu0 %v2915
    %v2917 = vand.u32 %v1459, 4294901760
    %v2918 = vsub.f32 %v1459, %v2917
    %v2919 = vand.u32 %v2918, 4294901760
    %v2920 = vsub.f32 %v2918, %v2919
    %v2921 = vand.u32 %v2920, 4294901760
    %2922 = vmatprep.subr.mxu0 %v2921
    %v2923 = vand.u32 %v1458, 4294901760
    %v2924 = vsub.f32 %v1458, %v2923
    %v2925 = vand.u32 %v2924, 4294901760
    %v2926 = vsub.f32 %v2924, %v2925
    %v2927 = vand.u32 %v2926, 4294901760
    %2928 = vmatpush1.msra.mxu0 %v2927
    %v2929 = vand.u32 %v2670, 4294901760
    %v2930 = vsub.f32 %v2670, %v2929
    %v2931 = vand.u32 %v2930, 4294901760
    %v2932 = vsub.f32 %v2930, %v2931
    %v2933 = vand.u32 %v2932, 4294901760
    %2934 = vmatprep.subr.mxu0 %v2933
    %v2935 = vand.u32 %v2667, 4294901760
    %v2936 = vsub.f32 %v2667, %v2935
    %v2937 = vand.u32 %v2936, 4294901760
    %v2938 = vsub.f32 %v2936, %v2937
    %v2939 = vand.u32 %v2938, 4294901760
    %2940 = vmatpush1.msra.mxu0 %v2939
    %2941 = vmatprep.subr.mxu0 0.0
    %2942 = vmatpush1.msra.mxu0 0.0
    %2943 = vmatprep.subr.mxu0 0.0
    %2944 = vmatpush1.msra.mxu0 0.0
    %2945 = vmatprep.subr.mxu0 0.0
    %2946 = vmatpush1.msra.mxu0 0.0
    %2947 = vmatprep.subr.mxu0 0.0
    %2948 = vmatpush1.msra.mxu0 0.0
    %2949 = vmatprep.subr.mxu0 0.0
    %2950 = vmatpush1.msra.mxu0 0.0
    %2951 = vmatprep.subr.mxu0 0.0
    %2952 = vmatpush1.msra.mxu0 0.0
    %2953 = vmatprep.subr.mxu0 0.0
    %2954 = vmatpush1.msra.mxu0 0.0
    %2955 = vmatprep.subr.mxu0 0.0
    %2956 = vmatpush1.msra.mxu0 0.0
    %2957 = vmatprep.subr.mxu0 0.0
    %2958 = vmatpush1.msra.mxu0 0.0
    %2959 = vmatprep.subr.mxu0 0.0
    %2960 = vmatpush1.msra.mxu0 0.0
    %2961 = vmatprep.subr.mxu0 0.0
    %2962 = vmatpush1.msra.mxu0 0.0
    %2963 = vmatprep.subr.mxu0 0.0
    %2964 = vmatpush1.msra.mxu0 0.0
    %2965 = vmatprep.subr.mxu0 0.0
    %2966 = vmatpush1.msra.mxu0 0.0
    %2967 = vmatprep.subr.mxu0 0.0
    %2968 = vmatpush1.msra.mxu0 0.0
    %2969 = vmatprep.subr.mxu0 0.0
    %2970 = vmatpush1.msra.mxu0 0.0
    %2971 = vmatprep.subr.mxu0 0.0
    %2972 = vmatpush1.msra.mxu0 0.0
    %2973 = vmatprep.subr.mxu0 0.0
    %2974 = vmatpush1.msra.mxu0 0.0
    %2975 = vmatprep.subr.mxu0 0.0
    %2976 = vmatpush1.msra.mxu0 0.0
    %2977 = vmatprep.subr.mxu0 0.0
    %2978 = vmatpush1.msra.mxu0 0.0
    %2979 = vmatprep.mubr.f32.mxu0 0.0
    %v2980 = vand.u32 %v2660, 4294901760
    %2981 = vmatmul.mubr.f32.gmra.mrb[0].mxu0 %v2980
    %v2982 = vpop.f32.mrb[0].mxu0
    %v2983 = vadd.f32 %v2770, %v2982
    %v2984 = vpop.f32.mrb[0].mxu0
    %v2985 = vadd.f32 %v2772, %v2984
    %2986 = vmatprep.mubr.f32.mxu0 0.0
    %v2987 = vand.u32 %v2663, 4294901760
    %2988 = vmatmul.mubr.f32.gmra.mrb[0].mxu0 %v2987
    %v2989 = vpop.f32.mrb[0].mxu0
    %v2990 = vadd.f32 %v2781, %v2989
    %v2991 = vpop.f32.mrb[0].mxu0
    %v2992 = vadd.f32 %v2783, %v2991
    %2993 = vdwg.mxu0
    %v2994 = vand.u32 %v1437, 4294901760
    %v2995 = vsub.f32 %v1437, %v2994
    %2996 = vmatprep.subr.mxu0 %v2995
    %v2997 = vand.u32 %v1436, 4294901760
    %v2998 = vsub.f32 %v1436, %v2997
    %2999 = vmatpush1.msra.mxu0 %v2998
    %v3000 = vand.u32 %v1439, 4294901760
    %v3001 = vsub.f32 %v1439, %v3000
    %3002 = vmatprep.subr.mxu0 %v3001
    %v3003 = vand.u32 %v1438, 4294901760
    %v3004 = vsub.f32 %v1438, %v3003
    %3005 = vmatpush1.msra.mxu0 %v3004
    %v3006 = vand.u32 %v1441, 4294901760
    %v3007 = vsub.f32 %v1441, %v3006
    %3008 = vmatprep.subr.mxu0 %v3007
    %v3009 = vand.u32 %v1440, 4294901760
    %v3010 = vsub.f32 %v1440, %v3009
    %3011 = vmatpush1.msra.mxu0 %v3010
    %v3012 = vand.u32 %v1443, 4294901760
    %v3013 = vsub.f32 %v1443, %v3012
    %3014 = vmatprep.subr.mxu0 %v3013
    %v3015 = vand.u32 %v1442, 4294901760
    %v3016 = vsub.f32 %v1442, %v3015
    %3017 = vmatpush1.msra.mxu0 %v3016
    %v3018 = vand.u32 %v1445, 4294901760
    %v3019 = vsub.f32 %v1445, %v3018
    %3020 = vmatprep.subr.mxu0 %v3019
    %v3021 = vand.u32 %v1444, 4294901760
    %v3022 = vsub.f32 %v1444, %v3021
    %3023 = vmatpush1.msra.mxu0 %v3022
    %v3024 = vand.u32 %v1447, 4294901760
    %v3025 = vsub.f32 %v1447, %v3024
    %3026 = vmatprep.subr.mxu0 %v3025
    %v3027 = vand.u32 %v1446, 4294901760
    %v3028 = vsub.f32 %v1446, %v3027
    %3029 = vmatpush1.msra.mxu0 %v3028
    %v3030 = vand.u32 %v1449, 4294901760
    %v3031 = vsub.f32 %v1449, %v3030
    %3032 = vmatprep.subr.mxu0 %v3031
    %v3033 = vand.u32 %v1448, 4294901760
    %v3034 = vsub.f32 %v1448, %v3033
    %3035 = vmatpush1.msra.mxu0 %v3034
    %v3036 = vand.u32 %v1451, 4294901760
    %v3037 = vsub.f32 %v1451, %v3036
    %3038 = vmatprep.subr.mxu0 %v3037
    %v3039 = vand.u32 %v1450, 4294901760
    %v3040 = vsub.f32 %v1450, %v3039
    %3041 = vmatpush1.msra.mxu0 %v3040
    %v3042 = vand.u32 %v1453, 4294901760
    %v3043 = vsub.f32 %v1453, %v3042
    %3044 = vmatprep.subr.mxu0 %v3043
    %v3045 = vand.u32 %v1452, 4294901760
    %v3046 = vsub.f32 %v1452, %v3045
    %3047 = vmatpush1.msra.mxu0 %v3046
    %v3048 = vand.u32 %v1455, 4294901760
    %v3049 = vsub.f32 %v1455, %v3048
    %3050 = vmatprep.subr.mxu0 %v3049
    %v3051 = vand.u32 %v1454, 4294901760
    %v3052 = vsub.f32 %v1454, %v3051
    %3053 = vmatpush1.msra.mxu0 %v3052
    %v3054 = vand.u32 %v1457, 4294901760
    %v3055 = vsub.f32 %v1457, %v3054
    %3056 = vmatprep.subr.mxu0 %v3055
    %v3057 = vand.u32 %v1456, 4294901760
    %v3058 = vsub.f32 %v1456, %v3057
    %3059 = vmatpush1.msra.mxu0 %v3058
    %v3060 = vand.u32 %v1459, 4294901760
    %v3061 = vsub.f32 %v1459, %v3060
    %3062 = vmatprep.subr.mxu0 %v3061
    %v3063 = vand.u32 %v1458, 4294901760
    %v3064 = vsub.f32 %v1458, %v3063
    %3065 = vmatpush1.msra.mxu0 %v3064
    %v3066 = vand.u32 %v2670, 4294901760
    %v3067 = vsub.f32 %v2670, %v3066
    %3068 = vmatprep.subr.mxu0 %v3067
    %v3069 = vand.u32 %v2667, 4294901760
    %v3070 = vsub.f32 %v2667, %v3069
    %3071 = vmatpush1.msra.mxu0 %v3070
    %3072 = vmatprep.subr.mxu0 0.0
    %3073 = vmatpush1.msra.mxu0 0.0
    %3074 = vmatprep.subr.mxu0 0.0
    %3075 = vmatpush1.msra.mxu0 0.0
    %3076 = vmatprep.subr.mxu0 0.0
    %3077 = vmatpush1.msra.mxu0 0.0
    %3078 = vmatprep.subr.mxu0 0.0
    %3079 = vmatpush1.msra.mxu0 0.0
    %3080 = vmatprep.subr.mxu0 0.0
    %3081 = vmatpush1.msra.mxu0 0.0
    %3082 = vmatprep.subr.mxu0 0.0
    %3083 = vmatpush1.msra.mxu0 0.0
    %3084 = vmatprep.subr.mxu0 0.0
    %3085 = vmatpush1.msra.mxu0 0.0
    %3086 = vmatprep.subr.mxu0 0.0
    %3087 = vmatpush1.msra.mxu0 0.0
    %3088 = vmatprep.subr.mxu0 0.0
    %3089 = vmatpush1.msra.mxu0 0.0
    %3090 = vmatprep.subr.mxu0 0.0
    %3091 = vmatpush1.msra.mxu0 0.0
    %3092 = vmatprep.subr.mxu0 0.0
    %3093 = vmatpush1.msra.mxu0 0.0
    %3094 = vmatprep.subr.mxu0 0.0
    %3095 = vmatpush1.msra.mxu0 0.0
    %3096 = vmatprep.subr.mxu0 0.0
    %3097 = vmatpush1.msra.mxu0 0.0
    %3098 = vmatprep.subr.mxu0 0.0
    %3099 = vmatpush1.msra.mxu0 0.0
    %3100 = vmatprep.subr.mxu0 0.0
    %3101 = vmatpush1.msra.mxu0 0.0
    %3102 = vmatprep.subr.mxu0 0.0
    %3103 = vmatpush1.msra.mxu0 0.0
    %3104 = vmatprep.subr.mxu0 0.0
    %3105 = vmatpush1.msra.mxu0 0.0
    %3106 = vmatprep.subr.mxu0 0.0
    %3107 = vmatpush1.msra.mxu0 0.0
    %3108 = vmatprep.subr.mxu0 0.0
    %3109 = vmatpush1.msra.mxu0 0.0
    %3110 = vmatprep.mubr.f32.mxu0 0.0
    %v3111 = vand.u32 %v2660, 4294901760
    %v3112 = vsub.f32 %v2660, %v3111
    %3113 = vmatmul.mubr.f32.gmra.mrb[0].mxu0 %v3112
    %v3114 = vpop.f32.mrb[0].mxu0
    %v3115 = vadd.f32 %v2983, %v3114
    %v3116 = vpop.f32.mrb[0].mxu0
    %v3117 = vadd.f32 %v2985, %v3116
    %3118 = vmatprep.mubr.f32.mxu0 0.0
    %v3119 = vand.u32 %v2663, 4294901760
    %v3120 = vsub.f32 %v2663, %v3119
    %3121 = vmatmul.mubr.f32.gmra.mrb[0].mxu0 %v3120
    %v3122 = vpop.f32.mrb[0].mxu0
    %v3123 = vadd.f32 %v2990, %v3122
    %v3124 = vpop.f32.mrb[0].mxu0
    %v3125 = vadd.f32 %v2992, %v3124
    %3126 = vdwg.mxu0
    %v3127 = vand.u32 %v1437, 4294901760
    %3128 = vmatprep.subr.mxu0 %v3127
    %v3129 = vand.u32 %v1436, 4294901760
    %3130 = vmatpush1.msra.mxu0 %v3129
    %v3131 = vand.u32 %v1439, 4294901760
    %3132 = vmatprep.subr.mxu0 %v3131
    %v3133 = vand.u32 %v1438, 4294901760
    %3134 = vmatpush1.msra.mxu0 %v3133
    %v3135 = vand.u32 %v1441, 4294901760
    %3136 = vmatprep.subr.mxu0 %v3135
    %v3137 = vand.u32 %v1440, 4294901760
    %3138 = vmatpush1.msra.mxu0 %v3137
    %v3139 = vand.u32 %v1443, 4294901760
    %3140 = vmatprep.subr.mxu0 %v3139
    %v3141 = vand.u32 %v1442, 4294901760
    %3142 = vmatpush1.msra.mxu0 %v3141
    %v3143 = vand.u32 %v1445, 4294901760
    %3144 = vmatprep.subr.mxu0 %v3143
    %v3145 = vand.u32 %v1444, 4294901760
    %3146 = vmatpush1.msra.mxu0 %v3145
    %v3147 = vand.u32 %v1447, 4294901760
    %3148 = vmatprep.subr.mxu0 %v3147
    %v3149 = vand.u32 %v1446, 4294901760
    %3150 = vmatpush1.msra.mxu0 %v3149
    %v3151 = vand.u32 %v1449, 4294901760
    %3152 = vmatprep.subr.mxu0 %v3151
    %v3153 = vand.u32 %v1448, 4294901760
    %3154 = vmatpush1.msra.mxu0 %v3153
    %v3155 = vand.u32 %v1451, 4294901760
    %3156 = vmatprep.subr.mxu0 %v3155
    %v3157 = vand.u32 %v1450, 4294901760
    %3158 = vmatpush1.msra.mxu0 %v3157
    %v3159 = vand.u32 %v1453, 4294901760
    %3160 = vmatprep.subr.mxu0 %v3159
    %v3161 = vand.u32 %v1452, 4294901760
    %3162 = vmatpush1.msra.mxu0 %v3161
    %v3163 = vand.u32 %v1455, 4294901760
    %3164 = vmatprep.subr.mxu0 %v3163
    %v3165 = vand.u32 %v1454, 4294901760
    %3166 = vmatpush1.msra.mxu0 %v3165
    %v3167 = vand.u32 %v1457, 4294901760
    %3168 = vmatprep.subr.mxu0 %v3167
    %v3169 = vand.u32 %v1456, 4294901760
    %3170 = vmatpush1.msra.mxu0 %v3169
    %v3171 = vand.u32 %v1459, 4294901760
    %3172 = vmatprep.subr.mxu0 %v3171
    %v3173 = vand.u32 %v1458, 4294901760
    %3174 = vmatpush1.msra.mxu0 %v3173
    %v3175 = vand.u32 %v2670, 4294901760
    %3176 = vmatprep.subr.mxu0 %v3175
    %v3177 = vand.u32 %v2667, 4294901760
    %3178 = vmatpush1.msra.mxu0 %v3177
    %3179 = vmatprep.subr.mxu0 0.0
    %3180 = vmatpush1.msra.mxu0 0.0
    %3181 = vmatprep.subr.mxu0 0.0
    %3182 = vmatpush1.msra.mxu0 0.0
    %3183 = vmatprep.subr.mxu0 0.0
    %3184 = vmatpush1.msra.mxu0 0.0
    %3185 = vmatprep.subr.mxu0 0.0
    %3186 = vmatpush1.msra.mxu0 0.0
    %3187 = vmatprep.subr.mxu0 0.0
    %3188 = vmatpush1.msra.mxu0 0.0
    %3189 = vmatprep.subr.mxu0 0.0
    %3190 = vmatpush1.msra.mxu0 0.0
    %3191 = vmatprep.subr.mxu0 0.0
    %3192 = vmatpush1.msra.mxu0 0.0
    %3193 = vmatprep.subr.mxu0 0.0
    %3194 = vmatpush1.msra.mxu0 0.0
    %3195 = vmatprep.subr.mxu0 0.0
    %3196 = vmatpush1.msra.mxu0 0.0
    %3197 = vmatprep.subr.mxu0 0.0
    %3198 = vmatpush1.msra.mxu0 0.0
    %3199 = vmatprep.subr.mxu0 0.0
    %3200 = vmatpush1.msra.mxu0 0.0
    %3201 = vmatprep.subr.mxu0 0.0
    %3202 = vmatpush1.msra.mxu0 0.0
    %3203 = vmatprep.subr.mxu0 0.0
    %3204 = vmatpush1.msra.mxu0 0.0
    %3205 = vmatprep.subr.mxu0 0.0
    %3206 = vmatpush1.msra.mxu0 0.0
    %3207 = vmatprep.subr.mxu0 0.0
    %3208 = vmatpush1.msra.mxu0 0.0
    %3209 = vmatprep.subr.mxu0 0.0
    %3210 = vmatpush1.msra.mxu0 0.0
    %3211 = vmatprep.subr.mxu0 0.0
    %3212 = vmatpush1.msra.mxu0 0.0
    %3213 = vmatprep.subr.mxu0 0.0
    %3214 = vmatpush1.msra.mxu0 0.0
    %3215 = vmatprep.subr.mxu0 0.0
    %3216 = vmatpush1.msra.mxu0 0.0
    %3217 = vmatprep.mubr.f32.mxu0 0.0
    %v3218 = vand.u32 %v2660, 4294901760
    %v3219 = vsub.f32 %v2660, %v3218
    %v3220 = vand.u32 %v3219, 4294901760
    %3221 = vmatmul.mubr.f32.gmra.mrb[0].mxu0 %v3220
    %v3222 = vpop.f32.mrb[0].mxu0
    %v3223 = vadd.f32 %v3115, %v3222
    %v3224 = vpop.f32.mrb[0].mxu0
    %v3225 = vadd.f32 %v3117, %v3224
    %3226 = vmatprep.mubr.f32.mxu0 0.0
    %v3227 = vand.u32 %v2663, 4294901760
    %v3228 = vsub.f32 %v2663, %v3227
    %v3229 = vand.u32 %v3228, 4294901760
    %3230 = vmatmul.mubr.f32.gmra.mrb[0].mxu0 %v3229
    %v3231 = vpop.f32.mrb[0].mxu0
    %v3232 = vadd.f32 %v3123, %v3231
    %v3233 = vpop.f32.mrb[0].mxu0
    %v3234 = vadd.f32 %v3125, %v3233
    %3235 = vdwg.mxu0
    %v3236 = vand.u32 %v1437, 4294901760
    %v3237 = vsub.f32 %v1437, %v3236
    %v3238 = vand.u32 %v3237, 4294901760
    %3239 = vmatprep.subr.mxu0 %v3238
    %v3240 = vand.u32 %v1436, 4294901760
    %v3241 = vsub.f32 %v1436, %v3240
    %v3242 = vand.u32 %v3241, 4294901760
    %3243 = vmatpush1.msra.mxu0 %v3242
    %v3244 = vand.u32 %v1439, 4294901760
    %v3245 = vsub.f32 %v1439, %v3244
    %v3246 = vand.u32 %v3245, 4294901760
    %3247 = vmatprep.subr.mxu0 %v3246
    %v3248 = vand.u32 %v1438, 4294901760
    %v3249 = vsub.f32 %v1438, %v3248
    %v3250 = vand.u32 %v3249, 4294901760
    %3251 = vmatpush1.msra.mxu0 %v3250
    %v3252 = vand.u32 %v1441, 4294901760
    %v3253 = vsub.f32 %v1441, %v3252
    %v3254 = vand.u32 %v3253, 4294901760
    %3255 = vmatprep.subr.mxu0 %v3254
    %v3256 = vand.u32 %v1440, 4294901760
    %v3257 = vsub.f32 %v1440, %v3256
    %v3258 = vand.u32 %v3257, 4294901760
    %3259 = vmatpush1.msra.mxu0 %v3258
    %v3260 = vand.u32 %v1443, 4294901760
    %v3261 = vsub.f32 %v1443, %v3260
    %v3262 = vand.u32 %v3261, 4294901760
    %3263 = vmatprep.subr.mxu0 %v3262
    %v3264 = vand.u32 %v1442, 4294901760
    %v3265 = vsub.f32 %v1442, %v3264
    %v3266 = vand.u32 %v3265, 4294901760
    %3267 = vmatpush1.msra.mxu0 %v3266
    %v3268 = vand.u32 %v1445, 4294901760
    %v3269 = vsub.f32 %v1445, %v3268
    %v3270 = vand.u32 %v3269, 4294901760
    %3271 = vmatprep.subr.mxu0 %v3270
    %v3272 = vand.u32 %v1444, 4294901760
    %v3273 = vsub.f32 %v1444, %v3272
    %v3274 = vand.u32 %v3273, 4294901760
    %3275 = vmatpush1.msra.mxu0 %v3274
    %v3276 = vand.u32 %v1447, 4294901760
    %v3277 = vsub.f32 %v1447, %v3276
    %v3278 = vand.u32 %v3277, 4294901760
    %3279 = vmatprep.subr.mxu0 %v3278
    %v3280 = vand.u32 %v1446, 4294901760
    %v3281 = vsub.f32 %v1446, %v3280
    %v3282 = vand.u32 %v3281, 4294901760
    %3283 = vmatpush1.msra.mxu0 %v3282
    %v3284 = vand.u32 %v1449, 4294901760
    %v3285 = vsub.f32 %v1449, %v3284
    %v3286 = vand.u32 %v3285, 4294901760
    %3287 = vmatprep.subr.mxu0 %v3286
    %v3288 = vand.u32 %v1448, 4294901760
    %v3289 = vsub.f32 %v1448, %v3288
    %v3290 = vand.u32 %v3289, 4294901760
    %3291 = vmatpush1.msra.mxu0 %v3290
    %v3292 = vand.u32 %v1451, 4294901760
    %v3293 = vsub.f32 %v1451, %v3292
    %v3294 = vand.u32 %v3293, 4294901760
    %3295 = vmatprep.subr.mxu0 %v3294
    %v3296 = vand.u32 %v1450, 4294901760
    %v3297 = vsub.f32 %v1450, %v3296
    %v3298 = vand.u32 %v3297, 4294901760
    %3299 = vmatpush1.msra.mxu0 %v3298
    %v3300 = vand.u32 %v1453, 4294901760
    %v3301 = vsub.f32 %v1453, %v3300
    %v3302 = vand.u32 %v3301, 4294901760
    %3303 = vmatprep.subr.mxu0 %v3302
    %v3304 = vand.u32 %v1452, 4294901760
    %v3305 = vsub.f32 %v1452, %v3304
    %v3306 = vand.u32 %v3305, 4294901760
    %3307 = vmatpush1.msra.mxu0 %v3306
    %v3308 = vand.u32 %v1455, 4294901760
    %v3309 = vsub.f32 %v1455, %v3308
    %v3310 = vand.u32 %v3309, 4294901760
    %3311 = vmatprep.subr.mxu0 %v3310
    %v3312 = vand.u32 %v1454, 4294901760
    %v3313 = vsub.f32 %v1454, %v3312
    %v3314 = vand.u32 %v3313, 4294901760
    %3315 = vmatpush1.msra.mxu0 %v3314
    %v3316 = vand.u32 %v1457, 4294901760
    %v3317 = vsub.f32 %v1457, %v3316
    %v3318 = vand.u32 %v3317, 4294901760
    %3319 = vmatprep.subr.mxu0 %v3318
    %v3320 = vand.u32 %v1456, 4294901760
    %v3321 = vsub.f32 %v1456, %v3320
    %v3322 = vand.u32 %v3321, 4294901760
    %3323 = vmatpush1.msra.mxu0 %v3322
    %v3324 = vand.u32 %v1459, 4294901760
    %v3325 = vsub.f32 %v1459, %v3324
    %v3326 = vand.u32 %v3325, 4294901760
    %3327 = vmatprep.subr.mxu0 %v3326
    %v3328 = vand.u32 %v1458, 4294901760
    %v3329 = vsub.f32 %v1458, %v3328
    %v3330 = vand.u32 %v3329, 4294901760
    %3331 = vmatpush1.msra.mxu0 %v3330
    %v3332 = vand.u32 %v2670, 4294901760
    %v3333 = vsub.f32 %v2670, %v3332
    %v3334 = vand.u32 %v3333, 4294901760
    %3335 = vmatprep.subr.mxu0 %v3334
    %v3336 = vand.u32 %v2667, 4294901760
    %v3337 = vsub.f32 %v2667, %v3336
    %v3338 = vand.u32 %v3337, 4294901760
    %3339 = vmatpush1.msra.mxu0 %v3338
    %3340 = vmatprep.subr.mxu0 0.0
    %3341 = vmatpush1.msra.mxu0 0.0
    %3342 = vmatprep.subr.mxu0 0.0
    %3343 = vmatpush1.msra.mxu0 0.0
    %3344 = vmatprep.subr.mxu0 0.0
    %3345 = vmatpush1.msra.mxu0 0.0
    %3346 = vmatprep.subr.mxu0 0.0
    %3347 = vmatpush1.msra.mxu0 0.0
    %3348 = vmatprep.subr.mxu0 0.0
    %3349 = vmatpush1.msra.mxu0 0.0
    %3350 = vmatprep.subr.mxu0 0.0
    %3351 = vmatpush1.msra.mxu0 0.0
    %3352 = vmatprep.subr.mxu0 0.0
    %3353 = vmatpush1.msra.mxu0 0.0
    %3354 = vmatprep.subr.mxu0 0.0
    %3355 = vmatpush1.msra.mxu0 0.0
    %3356 = vmatprep.subr.mxu0 0.0
    %3357 = vmatpush1.msra.mxu0 0.0
    %3358 = vmatprep.subr.mxu0 0.0
    %3359 = vmatpush1.msra.mxu0 0.0
    %3360 = vmatprep.subr.mxu0 0.0
    %3361 = vmatpush1.msra.mxu0 0.0
    %3362 = vmatprep.subr.mxu0 0.0
    %3363 = vmatpush1.msra.mxu0 0.0
    %3364 = vmatprep.subr.mxu0 0.0
    %3365 = vmatpush1.msra.mxu0 0.0
    %3366 = vmatprep.subr.mxu0 0.0
    %3367 = vmatpush1.msra.mxu0 0.0
    %3368 = vmatprep.subr.mxu0 0.0
    %3369 = vmatpush1.msra.mxu0 0.0
    %3370 = vmatprep.subr.mxu0 0.0
    %3371 = vmatpush1.msra.mxu0 0.0
    %3372 = vmatprep.subr.mxu0 0.0
    %3373 = vmatpush1.msra.mxu0 0.0
    %3374 = vmatprep.subr.mxu0 0.0
    %3375 = vmatpush1.msra.mxu0 0.0
    %3376 = vmatprep.subr.mxu0 0.0
    %3377 = vmatpush1.msra.mxu0 0.0
    %3378 = vmatprep.mubr.f32.mxu0 0.0
    %v3379 = vand.u32 %v2660, 4294901760
    %3380 = vmatmul.mubr.f32.gmra.mrb[0].mxu0 %v3379
    %v3381 = vpop.f32.mrb[0].mxu0
    %v3382 = vadd.f32 %v3223, %v3381
    %v3383 = vpop.f32.mrb[0].mxu0
    %v3384 = vadd.f32 %v3225, %v3383
    %3385 = vmatprep.mubr.f32.mxu0 0.0
    %v3386 = vand.u32 %v2663, 4294901760
    %3387 = vmatmul.mubr.f32.gmra.mrb[0].mxu0 %v3386
    %v3388 = vpop.f32.mrb[0].mxu0
    %v3389 = vadd.f32 %v3232, %v3388
    %v3390 = vpop.f32.mrb[0].mxu0
    %v3391 = vadd.f32 %v3234, %v3390
    %3392 = vdwg.mxu0
    %v3393 = vand.u32 %v1437, 4294901760
    %3394 = vmatprep.subr.mxu0 %v3393
    %v3395 = vand.u32 %v1436, 4294901760
    %3396 = vmatpush1.msra.mxu0 %v3395
    %v3397 = vand.u32 %v1439, 4294901760
    %3398 = vmatprep.subr.mxu0 %v3397
    %v3399 = vand.u32 %v1438, 4294901760
    %3400 = vmatpush1.msra.mxu0 %v3399
    %v3401 = vand.u32 %v1441, 4294901760
    %3402 = vmatprep.subr.mxu0 %v3401
    %v3403 = vand.u32 %v1440, 4294901760
    %3404 = vmatpush1.msra.mxu0 %v3403
    %v3405 = vand.u32 %v1443, 4294901760
    %3406 = vmatprep.subr.mxu0 %v3405
    %v3407 = vand.u32 %v1442, 4294901760
    %3408 = vmatpush1.msra.mxu0 %v3407
    %v3409 = vand.u32 %v1445, 4294901760
    %3410 = vmatprep.subr.mxu0 %v3409
    %v3411 = vand.u32 %v1444, 4294901760
    %3412 = vmatpush1.msra.mxu0 %v3411
    %v3413 = vand.u32 %v1447, 4294901760
    %3414 = vmatprep.subr.mxu0 %v3413
    %v3415 = vand.u32 %v1446, 4294901760
    %3416 = vmatpush1.msra.mxu0 %v3415
    %v3417 = vand.u32 %v1449, 4294901760
    %3418 = vmatprep.subr.mxu0 %v3417
    %v3419 = vand.u32 %v1448, 4294901760
    %3420 = vmatpush1.msra.mxu0 %v3419
    %v3421 = vand.u32 %v1451, 4294901760
    %3422 = vmatprep.subr.mxu0 %v3421
    %v3423 = vand.u32 %v1450, 4294901760
    %3424 = vmatpush1.msra.mxu0 %v3423
    %v3425 = vand.u32 %v1453, 4294901760
    %3426 = vmatprep.subr.mxu0 %v3425
    %v3427 = vand.u32 %v1452, 4294901760
    %3428 = vmatpush1.msra.mxu0 %v3427
    %v3429 = vand.u32 %v1455, 4294901760
    %3430 = vmatprep.subr.mxu0 %v3429
    %v3431 = vand.u32 %v1454, 4294901760
    %3432 = vmatpush1.msra.mxu0 %v3431
    %v3433 = vand.u32 %v1457, 4294901760
    %3434 = vmatprep.subr.mxu0 %v3433
    %v3435 = vand.u32 %v1456, 4294901760
    %3436 = vmatpush1.msra.mxu0 %v3435
    %v3437 = vand.u32 %v1459, 4294901760
    %3438 = vmatprep.subr.mxu0 %v3437
    %v3439 = vand.u32 %v1458, 4294901760
    %3440 = vmatpush1.msra.mxu0 %v3439
    %v3441 = vand.u32 %v2670, 4294901760
    %3442 = vmatprep.subr.mxu0 %v3441
    %v3443 = vand.u32 %v2667, 4294901760
    %3444 = vmatpush1.msra.mxu0 %v3443
    %3445 = vmatprep.subr.mxu0 0.0
    %3446 = vmatpush1.msra.mxu0 0.0
    %3447 = vmatprep.subr.mxu0 0.0
    %3448 = vmatpush1.msra.mxu0 0.0
    %3449 = vmatprep.subr.mxu0 0.0
    %3450 = vmatpush1.msra.mxu0 0.0
    %3451 = vmatprep.subr.mxu0 0.0
    %3452 = vmatpush1.msra.mxu0 0.0
    %3453 = vmatprep.subr.mxu0 0.0
    %3454 = vmatpush1.msra.mxu0 0.0
    %3455 = vmatprep.subr.mxu0 0.0
    %3456 = vmatpush1.msra.mxu0 0.0
    %3457 = vmatprep.subr.mxu0 0.0
    %3458 = vmatpush1.msra.mxu0 0.0
    %3459 = vmatprep.subr.mxu0 0.0
    %3460 = vmatpush1.msra.mxu0 0.0
    %3461 = vmatprep.subr.mxu0 0.0
    %3462 = vmatpush1.msra.mxu0 0.0
    %3463 = vmatprep.subr.mxu0 0.0
    %3464 = vmatpush1.msra.mxu0 0.0
    %3465 = vmatprep.subr.mxu0 0.0
    %3466 = vmatpush1.msra.mxu0 0.0
    %3467 = vmatprep.subr.mxu0 0.0
    %3468 = vmatpush1.msra.mxu0 0.0
    %3469 = vmatprep.subr.mxu0 0.0
    %3470 = vmatpush1.msra.mxu0 0.0
    %3471 = vmatprep.subr.mxu0 0.0
    %3472 = vmatpush1.msra.mxu0 0.0
    %3473 = vmatprep.subr.mxu0 0.0
    %3474 = vmatpush1.msra.mxu0 0.0
    %3475 = vmatprep.subr.mxu0 0.0
    %3476 = vmatpush1.msra.mxu0 0.0
    %3477 = vmatprep.subr.mxu0 0.0
    %3478 = vmatpush1.msra.mxu0 0.0
    %3479 = vmatprep.subr.mxu0 0.0
    %3480 = vmatpush1.msra.mxu0 0.0
    %3481 = vmatprep.subr.mxu0 0.0
    %3482 = vmatpush1.msra.mxu0 0.0
    %3483 = vmatprep.mubr.f32.mxu0 0.0
    %v3484 = vand.u32 %v2660, 4294901760
    %3485 = vmatmul.mubr.f32.gmra.mrb[0].mxu0 %v3484
    %v3486 = vpop.f32.mrb[0].mxu0
    %v3487 = vadd.f32 %v3382, %v3486
    %v3488 = vpop.f32.mrb[0].mxu0
    %v3489 = vadd.f32 %v3384, %v3488
    %3490 = vmatprep.mubr.f32.mxu0 0.0
    %v3491 = vand.u32 %v2663, 4294901760
    %3492 = vmatmul.mubr.f32.gmra.mrb[0].mxu0 %v3491
    %v3493 = vpop.f32.mrb[0].mxu0
    %v3494 = vadd.f32 %v3389, %v3493
    %v3495 = vpop.f32.mrb[0].mxu0
    %v3496 = vadd.f32 %v3391, %v3495
    %3497 = vdwg.mxu0
    %v3498 = vld [vmem:[%s2] sm:$0xff]
    %v3499 = vld [vmem:[%s2 + $0x8] sm:$0xff]
    %v3500 = vmul.f32 %v3487, %v1269
    %v3501 = vmul.f32 %v3489, %v1269
    %v3502 = vmul.f32 %v3494, %v1271
    %v3503 = vmul.f32 %v3496, %v1271
    %3508 = vrot.lane.b32.xlu0 %v3500, 32
    %v3509 = vpop.permute.xlu0 %3508
    %3510 = vrot.lane.b32.xlu0 %v3501, 32
    %v3511 = vpop.permute.xlu0 %3510
    %3512 = vrot.lane.b32.xlu0 %v3502, 32
    %v3513 = vpop.permute.xlu0 %3512
    %3514 = vrot.lane.b32.xlu0 %v3503, 32
    %v3515 = vpop.permute.xlu0 %3514
    %vm3516 = vcmask 261120
    %v3517 = vsel %vm3516, %v3509, %v3511
    %v3518 = vsel %vm3516, %v3513, %v3515
    %v3523 = vsel %vm3516, %v3498, %v3509
    %v3524 = vsel %vm3516, %v3499, %v3513
    %3525 = vst [vmem:[#allocation2] sm:$0xff] %v3523
    %vm3526 = vcmask 392192
    %3527 = vst.msk [vmem:[#allocation2 + $0x8] sm:$0xff] %vm3526, %v3517
    %3528 = vst [vmem:[#allocation2 + $0x10] sm:$0xff] %v3524
    %3529 = vst.msk [vmem:[#allocation2 + $0x18] sm:$0xff] %vm3526, %v3518
    // Predicated region
    $region38: #{tpu_custom_call.1} parent=1 // pred_check
      _
    $region39: #{tpu_custom_call.1} parent=1 // pred_check_branch
      %3531 = sbr.rel (0) target = $region41
    $region40: #{tpu_custom_call.1} parent=1 // pred_region
      %s3533 = ssub.s32 512, 512
      %3534 = vsyncadd [#allocation3], %s3533
      %s3535 = sshll.u32 [#allocation2], 4
      %s3536 = int_to_ptr.vmem [resolvable:$true] %s3535
      %3541 = dma.vmem_to_hbm [thread:$0]  %s3536, 512, %s9, [#allocation3], 256, 256, 16
    $region41: #{tpu_custom_call.1} parent=1 // pred_fallthru
      _
    // Predicated region
    $region42: #{tpu_custom_call.1} parent=1 // pred_check
      _
    $region43: #{tpu_custom_call.1} parent=1 // pred_check_branch
      %3543 = sbr.rel (0) target = $region45
    $region44: #{tpu_custom_call.1} parent=1 // pred_region
      %3544 = dma.done [#allocation3], 512
    $region45: #{tpu_custom_call.1} parent=1 // pred_fallthru
      _
    %3545 = vsyncpa [#allocation3], 1

</llo_original>
